<compile_context>
chip_gen: v7x
topology: tpu7x:2x2x1
jax: 0.10.0
libtpu: 0.0.40
codegen_flags: <defaults>
</compile_context>

<pallas_src>
import functools

import jax
import jax.numpy as jnp
from jax import lax
from jax.experimental import pallas as pl
from jax.experimental.pallas import tpu as pltpu


def _round_up(a, m):
    return (a + m - 1) // m * m


# ----------------------------------------------------------------------------
# Pallas kernel: one batch tile (TB samples) per grid step.
# ----------------------------------------------------------------------------
def _ddql_kernel(x_ref,
                 w1_ref, b1_ref, w2_ref, b2_ref, w3_ref, b3_ref,
                 fc1w_ref, fc1b_ref, fc2w_ref, fc2b_ref,
                 out_ref, *, c_in, tb):
    # x_ref block: (1, 10*tb, 10*c_in) bf16; row = y*tb + b_local, col = x*c_in + c.
    x = x_ref[0]                                              # (10*tb, 10*c_in) bf16

    def conv3x3_relu(a_bf, w_ref, bias_ref, hin, win, cin, cout):
        # a_bf: (hin*tb, win*cin) bf16. Returns (ho*tb, wo*cout) f32 (same layout).
        ho, wo = hin - 2, win - 2
        acc = jnp.zeros((ho * tb, wo * cout), jnp.float32)
        for ky in range(3):
            # Rows for output y-offsets [0, ho) at input y = yo + ky are the
            # contiguous row range [ky*tb, (ky+ho)*tb).
            rows = a_bf[ky * tb:(ky + ho) * tb, :]
            for kx in range(3):
                patch = rows[:, kx * cin:(kx + wo) * cin]     # (ho*tb, wo*cin)
                acc = acc + jnp.dot(patch, w_ref[ky * 3 + kx],
                                    preferred_element_type=jnp.float32)
        return jnp.maximum(acc + bias_ref[...], 0.0)          # bias+ReLU in f32

    # Single bf16 cast per conv output (hoisted out of the tap loops).
    a1 = conv3x3_relu(x,  w1_ref, b1_ref, 10, 10, c_in, 16).astype(jnp.bfloat16)  # (8*tb, 128)
    a2 = conv3x3_relu(a1, w2_ref, b2_ref, 8, 8, 16, 32).astype(jnp.bfloat16)       # (6*tb, 192)
    a3 = conv3x3_relu(a2, w3_ref, b3_ref, 6, 6, 32, 64).astype(jnp.bfloat16)       # (4*tb, 256)

    # fc1: PyTorch NCHW flatten handled by the pre-permuted fc1 weight (4, 256, 512).
    h1 = jnp.zeros((tb, 512), jnp.float32)
    for h in range(4):
        h1 = h1 + jnp.dot(a3[h * tb:(h + 1) * tb, :], fc1w_ref[h],
                          preferred_element_type=jnp.float32)
    h1 = jnp.maximum(h1 + fc1b_ref[...], 0.0)                 # (tb, 512) f32

    # fc2 (output lane-padded to 128 in the wrapper for a dense, unmasked store).
    out = jnp.dot(h1.astype(jnp.bfloat16), fc2w_ref[...],
                  preferred_element_type=jnp.float32) + fc2b_ref[...]
    out_ref[...] = out.astype(out_ref.dtype)                  # (tb, 128)


# ----------------------------------------------------------------------------
# Wrapper (glue): batch tiling, layout conversion + pallas_call.
# ----------------------------------------------------------------------------
def ddql_forward_pallas(x_nchw, kparams, out_dim, *, tile_b=128):
    B, C, H, W = x_nchw.shape
    assert H == 10 and W == 10, "Expecting input height/width: 10"

    (w1, b1, w2, b2, w3, b3, fw1, fb1, fw2, fb2) = kparams
    out_pad = fw2.shape[-1]                                   # lane-padded (128)

    tb = _round_up(min(tile_b, _round_up(B, 8)), 8)           # batch tile (mult of 8)
    b_pad = _round_up(B, tb)
    n_tiles = b_pad // tb

    # NCHW -> (H, B, W*C) row-packed NHWC, zero-pad batch, pre-pack per tile so the
    # kernel sees a ready-made (H*tb, W*C) matrix with row = y*tb + b_local.
    # Cast to bf16 here: MXU operands are bf16 anyway, and it halves the input DMA.
    x_packed = jnp.transpose(x_nchw, (2, 0, 3, 1)).reshape(H, B, W * C)
    if b_pad != B:
        x_packed = jnp.pad(x_packed, ((0, 0), (0, b_pad - B), (0, 0)))
    x_tiles = (x_packed.reshape(H, n_tiles, tb, W * C)
               .transpose(1, 0, 2, 3)
               .reshape(n_tiles, H * tb, W * C)
               .astype(jnp.bfloat16))

    def const_spec(a):
        n = a.ndim
        return pl.BlockSpec(a.shape, lambda i, n=n: (0,) * n)

    weight_args = (w1, b1, w2, b2, w3, b3, fw1, fb1, fw2, fb2)

    out = pl.pallas_call(
        functools.partial(_ddql_kernel, c_in=C, tb=tb),
        out_shape=jax.ShapeDtypeStruct((b_pad, out_pad), jnp.float32),
        grid=(n_tiles,),
        in_specs=[pl.BlockSpec((1, H * tb, W * C), lambda i: (i, 0, 0))]
                 + [const_spec(a) for a in weight_args],
        out_specs=pl.BlockSpec((tb, out_pad), lambda i: (i, 0)),
        compiler_params=pltpu.CompilerParams(
            dimension_semantics=("parallel",),                # batch tiles are independent
            vmem_limit_bytes=32 << 20),
    )(x_tiles, *weight_args)

    return out[:B, :out_dim]


# ----------------------------------------------------------------------------
# Deterministic parameter init (PyTorch-convention shapes), then conversion
# to the kernel's layout (block-diagonal conv weights, permuted fc1, bf16 MXU
# weights, f32 biases, lane-padded fc2).
# ----------------------------------------------------------------------------
def init_torch_params(key, c, out_dim):
    shapes = {
        'conv1_w': (16, c, 3, 3),  'conv1_b': (16,),
        'conv2_w': (32, 16, 3, 3), 'conv2_b': (32,),
        'conv3_w': (64, 32, 3, 3), 'conv3_b': (64,),
        'fc1_w': (512, 1024),      'fc1_b': (512,),
        'fc2_w': (out_dim, 512),   'fc2_b': (out_dim,),
    }
    fan_in = {'conv1': c * 9, 'conv2': 16 * 9, 'conv3': 32 * 9,
              'fc1': 1024, 'fc2': 512}
    params = {}
    for name, shp in shapes.items():
        key, sub = jax.random.split(key)
        bound = 1.0 / jnp.sqrt(float(fan_in[name.split('_')[0]]))
        params[name] = jax.random.uniform(sub, shp, jnp.float32, -bound, bound)
    return params


def to_kernel_params(tp, out_dim, out_pad=128, mxu_dtype=jnp.bfloat16):
    def conv_bd(w, b, wo):
        cout, cin = w.shape[0], w.shape[1]
        mats = []
        for ky in range(3):
            for kx in range(3):
                blk = w[:, :, ky, kx].T                       # (cin, cout)
                mats.append(jnp.kron(jnp.eye(wo, dtype=w.dtype), blk))
        bd = jnp.stack(mats).astype(mxu_dtype)                # (9, wo*cin, wo*cout)
        bias = jnp.tile(b, wo).reshape(1, wo * cout).astype(jnp.float32)
        return bd, bias

    w1, b1 = conv_bd(tp['conv1_w'], tp['conv1_b'], 8)
    w2, b2 = conv_bd(tp['conv2_w'], tp['conv2_b'], 6)
    w3, b3 = conv_bd(tp['conv3_w'], tp['conv3_b'], 4)

    # fc1 weight: (512, 1024) in PyTorch NCHW flatten order (co, h, w)
    # -> (h, w*64+co, d) to match the kernel's NHWC row/col layout exactly.
    fw1 = (tp['fc1_w'].reshape(512, 64, 4, 4).transpose(2, 3, 1, 0)
           .reshape(4, 256, 512).astype(mxu_dtype))
    fb1 = tp['fc1_b'].reshape(1, 512).astype(jnp.float32)

    # fc2: lane-pad output dim to 128 for a dense (unmasked) final store.
    fw2 = jnp.zeros((512, out_pad), jnp.float32).at[:, :out_dim].set(
        tp['fc2_w'].T).astype(mxu_dtype)
    fb2 = jnp.zeros((1, out_pad), jnp.float32).at[:, :out_dim].set(tp['fc2_b'])
    return (w1, b1, w2, b2, w3, b3, fw1, fb1, fw2, fb2)


# ----------------------------------------------------------------------------
# Pure-JAX reference of the PyTorch forward (correctness check only).
# ----------------------------------------------------------------------------
def torch_ref_forward(x, tp):
    def conv(a, w, b):
        y = lax.conv_general_dilated(a, w, (1, 1), 'VALID',
                                     dimension_numbers=('NCHW', 'OIHW', 'NCHW'))
        return jax.nn.relu(y + b[None, :, None, None])
    a = conv(x, tp['conv1_w'], tp['conv1_b'])
    a = conv(a, tp['conv2_w'], tp['conv2_b'])
    a = conv(a, tp['conv3_w'], tp['conv3_b'])
    flat = a.reshape(a.shape[0], -1)                          # NCHW flatten
    h = jax.nn.relu(flat @ tp['fc1_w'].T + tp['fc1_b'])
    return h @ tp['fc2_w'].T + tp['fc2_b']


if __name__ == "__main__":
    key = jax.random.PRNGKey(0)
    B, C, OUT_DIM = 2, 4, 8                                   # input_dim=(4,10,10), output_dim=8
    k_x, k_p, k_x2 = jax.random.split(key, 3)

    x = jax.random.normal(k_x, (B, C, 10, 10), jnp.float32)

    online_tp = init_torch_params(k_p, C, OUT_DIM)
    target_tp = jax.tree_util.tree_map(lambda a: a, online_tp)  # target.load_state_dict(online)
    kernel_params = {
        'online': to_kernel_params(online_tp, OUT_DIM),
        'target': to_kernel_params(target_tp, OUT_DIM),
    }

    def forward(inp, model, **kw):
        """Equivalent of DDQLAgentNet.forward(input, model)."""
        return ddql_forward_pallas(inp, kernel_params[model], OUT_DIM, **kw)

    # bf16 MXU operands (f32 accumulation / f32 bias+ReLU) -> slightly looser tolerance.
    TOL = dict(atol=2e-2, rtol=2e-2)

    out_online = jax.block_until_ready(forward(x, 'online'))
    out_target = jax.block_until_ready(forward(x, 'target'))
    ref = torch_ref_forward(x, online_tp)
    assert out_online.shape == (B, OUT_DIM)
    assert jnp.allclose(out_online, ref, **TOL), float(jnp.max(jnp.abs(out_online - ref)))
    assert jnp.allclose(out_target, ref, **TOL)

    # Exercise multi-tile grid + batch padding (B=20 with an 8-sample batch tile).
    B2 = 20
    x2 = jax.random.normal(k_x2, (B2, C, 10, 10), jnp.float32)
    out2 = jax.block_until_ready(forward(x2, 'online', tile_b=8))
    ref2 = torch_ref_forward(x2, online_tp)
    assert out2.shape == (B2, OUT_DIM)
    assert jnp.allclose(out2, ref2, **TOL), float(jnp.max(jnp.abs(out2 - ref2)))

    print("KERNEL_OK")
</pallas_src>

<mosaic_0001>
module attributes {stable_mosaic.version = 11 : i64} {
  func.func @_ddql_kernel(%arg0: i32, %arg1: memref<1x80x40xbf16, #tpu.memory_space<vmem>>, %arg2: memref<9x32x128xbf16, #tpu.memory_space<vmem>>, %arg3: memref<1x128xf32, #tpu.memory_space<vmem>>, %arg4: memref<9x96x192xbf16, #tpu.memory_space<vmem>>, %arg5: memref<1x192xf32, #tpu.memory_space<vmem>>, %arg6: memref<9x128x256xbf16, #tpu.memory_space<vmem>>, %arg7: memref<1x256xf32, #tpu.memory_space<vmem>>, %arg8: memref<4x256x512xbf16, #tpu.memory_space<vmem>>, %arg9: memref<1x512xf32, #tpu.memory_space<vmem>>, %arg10: memref<512x128xbf16, #tpu.memory_space<vmem>>, %arg11: memref<1x128xf32, #tpu.memory_space<vmem>>, %arg12: memref<8x128xf32, #tpu.memory_space<vmem>>) attributes {dimension_semantics = [#tpu.dimension_semantics<parallel>], iteration_bounds = array<i64: 1>, scalar_prefetch = 0 : i64, scratch_operands = 0 : i64, tpu.core_type = #tpu.core_type<tc>, window_params = [{transform_indices = @transform_0, window_bounds = array<i64: 1, 80, 40>}, {pipeline_mode = #tpu.pipeline_mode<synchronous>, transform_indices = @transform_1, window_bounds = array<i64: 9, 32, 128>}, {pipeline_mode = #tpu.pipeline_mode<synchronous>, transform_indices = @transform_2, window_bounds = array<i64: 1, 128>}, {pipeline_mode = #tpu.pipeline_mode<synchronous>, transform_indices = @transform_3, window_bounds = array<i64: 9, 96, 192>}, {pipeline_mode = #tpu.pipeline_mode<synchronous>, transform_indices = @transform_4, window_bounds = array<i64: 1, 192>}, {pipeline_mode = #tpu.pipeline_mode<synchronous>, transform_indices = @transform_5, window_bounds = array<i64: 9, 128, 256>}, {pipeline_mode = #tpu.pipeline_mode<synchronous>, transform_indices = @transform_6, window_bounds = array<i64: 1, 256>}, {pipeline_mode = #tpu.pipeline_mode<synchronous>, transform_indices = @transform_7, window_bounds = array<i64: 4, 256, 512>}, {pipeline_mode = #tpu.pipeline_mode<synchronous>, transform_indices = @transform_8, window_bounds = array<i64: 1, 512>}, {pipeline_mode = #tpu.pipeline_mode<synchronous>, transform_indices = @transform_9, window_bounds = array<i64: 512, 128>}, {pipeline_mode = #tpu.pipeline_mode<synchronous>, transform_indices = @transform_10, window_bounds = array<i64: 1, 128>}, {transform_indices = @transform_11, window_bounds = array<i64: 8, 128>}]} {
    %c0 = arith.constant 0 : index
    %c0_0 = arith.constant 0 : index
    %c0_1 = arith.constant 0 : index
    %0 = vector.load %arg1[%c0, %c0_0, %c0_1] : memref<1x80x40xbf16, #tpu.memory_space<vmem>>, vector<1x80x40xbf16>
    %1 = vector.shape_cast %0 : vector<1x80x40xbf16> to vector<80x40xbf16>
    %cst = arith.constant 0.000000e+00 : f32
    %2 = vector.broadcast %cst : f32 to vector<64x128xf32>
    %3 = vector.extract_strided_slice %1 {offsets = [0, 0], sizes = [64, 40], strides = [1, 1]} : vector<80x40xbf16> to vector<64x40xbf16>
    %4 = vector.extract_strided_slice %3 {offsets = [0, 0], sizes = [64, 32], strides = [1, 1]} : vector<64x40xbf16> to vector<64x32xbf16>
    %c0_2 = arith.constant 0 : index
    %c0_3 = arith.constant 0 : index
    %c0_4 = arith.constant 0 : index
    %5 = vector.load %arg2[%c0_2, %c0_3, %c0_4] : memref<9x32x128xbf16, #tpu.memory_space<vmem>>, vector<1x32x128xbf16>
    %6 = vector.shape_cast %5 : vector<1x32x128xbf16> to vector<32x128xbf16>
    %cst_5 = arith.constant dense<0.000000e+00> : vector<64x128xf32>
    %7 = tpu.matmul %4, %6, %cst_5 {dimension_numbers = #tpu.dot_dimension_numbers<[1], [0], [0], [1], [0, 0, 1, 1], [], []>} : vector<64x32xbf16>, vector<32x128xbf16>, vector<64x128xf32> -> vector<64x128xf32>
    %8 = arith.addf %2, %7 : vector<64x128xf32>
    %9 = vector.extract_strided_slice %3 {offsets = [0, 4], sizes = [64, 32], strides = [1, 1]} : vector<64x40xbf16> to vector<64x32xbf16>
    %c1 = arith.constant 1 : index
    %c0_6 = arith.constant 0 : index
    %c0_7 = arith.constant 0 : index
    %10 = vector.load %arg2[%c1, %c0_6, %c0_7] : memref<9x32x128xbf16, #tpu.memory_space<vmem>>, vector<1x32x128xbf16>
    %11 = vector.shape_cast %10 : vector<1x32x128xbf16> to vector<32x128xbf16>
    %cst_8 = arith.constant dense<0.000000e+00> : vector<64x128xf32>
    %12 = tpu.matmul %9, %11, %cst_8 {dimension_numbers = #tpu.dot_dimension_numbers<[1], [0], [0], [1], [0, 0, 1, 1], [], []>} : vector<64x32xbf16>, vector<32x128xbf16>, vector<64x128xf32> -> vector<64x128xf32>
    %13 = arith.addf %8, %12 : vector<64x128xf32>
    %14 = vector.extract_strided_slice %3 {offsets = [0, 8], sizes = [64, 32], strides = [1, 1]} : vector<64x40xbf16> to vector<64x32xbf16>
    %c2 = arith.constant 2 : index
    %c0_9 = arith.constant 0 : index
    %c0_10 = arith.constant 0 : index
    %15 = vector.load %arg2[%c2, %c0_9, %c0_10] : memref<9x32x128xbf16, #tpu.memory_space<vmem>>, vector<1x32x128xbf16>
    %16 = vector.shape_cast %15 : vector<1x32x128xbf16> to vector<32x128xbf16>
    %cst_11 = arith.constant dense<0.000000e+00> : vector<64x128xf32>
    %17 = tpu.matmul %14, %16, %cst_11 {dimension_numbers = #tpu.dot_dimension_numbers<[1], [0], [0], [1], [0, 0, 1, 1], [], []>} : vector<64x32xbf16>, vector<32x128xbf16>, vector<64x128xf32> -> vector<64x128xf32>
    %18 = arith.addf %13, %17 : vector<64x128xf32>
    %19 = vector.extract_strided_slice %1 {offsets = [8, 0], sizes = [64, 40], strides = [1, 1]} : vector<80x40xbf16> to vector<64x40xbf16>
    %20 = vector.extract_strided_slice %19 {offsets = [0, 0], sizes = [64, 32], strides = [1, 1]} : vector<64x40xbf16> to vector<64x32xbf16>
    %c3 = arith.constant 3 : index
    %c0_12 = arith.constant 0 : index
    %c0_13 = arith.constant 0 : index
    %21 = vector.load %arg2[%c3, %c0_12, %c0_13] : memref<9x32x128xbf16, #tpu.memory_space<vmem>>, vector<1x32x128xbf16>
    %22 = vector.shape_cast %21 : vector<1x32x128xbf16> to vector<32x128xbf16>
    %cst_14 = arith.constant dense<0.000000e+00> : vector<64x128xf32>
    %23 = tpu.matmul %20, %22, %cst_14 {dimension_numbers = #tpu.dot_dimension_numbers<[1], [0], [0], [1], [0, 0, 1, 1], [], []>} : vector<64x32xbf16>, vector<32x128xbf16>, vector<64x128xf32> -> vector<64x128xf32>
    %24 = arith.addf %18, %23 : vector<64x128xf32>
    %25 = vector.extract_strided_slice %19 {offsets = [0, 4], sizes = [64, 32], strides = [1, 1]} : vector<64x40xbf16> to vector<64x32xbf16>
    %c4 = arith.constant 4 : index
    %c0_15 = arith.constant 0 : index
    %c0_16 = arith.constant 0 : index
    %26 = vector.load %arg2[%c4, %c0_15, %c0_16] : memref<9x32x128xbf16, #tpu.memory_space<vmem>>, vector<1x32x128xbf16>
    %27 = vector.shape_cast %26 : vector<1x32x128xbf16> to vector<32x128xbf16>
    %cst_17 = arith.constant dense<0.000000e+00> : vector<64x128xf32>
    %28 = tpu.matmul %25, %27, %cst_17 {dimension_numbers = #tpu.dot_dimension_numbers<[1], [0], [0], [1], [0, 0, 1, 1], [], []>} : vector<64x32xbf16>, vector<32x128xbf16>, vector<64x128xf32> -> vector<64x128xf32>
    %29 = arith.addf %24, %28 : vector<64x128xf32>
    %30 = vector.extract_strided_slice %19 {offsets = [0, 8], sizes = [64, 32], strides = [1, 1]} : vector<64x40xbf16> to vector<64x32xbf16>
    %c5 = arith.constant 5 : index
    %c0_18 = arith.constant 0 : index
    %c0_19 = arith.constant 0 : index
    %31 = vector.load %arg2[%c5, %c0_18, %c0_19] : memref<9x32x128xbf16, #tpu.memory_space<vmem>>, vector<1x32x128xbf16>
    %32 = vector.shape_cast %31 : vector<1x32x128xbf16> to vector<32x128xbf16>
    %cst_20 = arith.constant dense<0.000000e+00> : vector<64x128xf32>
    %33 = tpu.matmul %30, %32, %cst_20 {dimension_numbers = #tpu.dot_dimension_numbers<[1], [0], [0], [1], [0, 0, 1, 1], [], []>} : vector<64x32xbf16>, vector<32x128xbf16>, vector<64x128xf32> -> vector<64x128xf32>
    %34 = arith.addf %29, %33 : vector<64x128xf32>
    %35 = vector.extract_strided_slice %1 {offsets = [16, 0], sizes = [64, 40], strides = [1, 1]} : vector<80x40xbf16> to vector<64x40xbf16>
    %36 = vector.extract_strided_slice %35 {offsets = [0, 0], sizes = [64, 32], strides = [1, 1]} : vector<64x40xbf16> to vector<64x32xbf16>
    %c6 = arith.constant 6 : index
    %c0_21 = arith.constant 0 : index
    %c0_22 = arith.constant 0 : index
    %37 = vector.load %arg2[%c6, %c0_21, %c0_22] : memref<9x32x128xbf16, #tpu.memory_space<vmem>>, vector<1x32x128xbf16>
    %38 = vector.shape_cast %37 : vector<1x32x128xbf16> to vector<32x128xbf16>
    %cst_23 = arith.constant dense<0.000000e+00> : vector<64x128xf32>
    %39 = tpu.matmul %36, %38, %cst_23 {dimension_numbers = #tpu.dot_dimension_numbers<[1], [0], [0], [1], [0, 0, 1, 1], [], []>} : vector<64x32xbf16>, vector<32x128xbf16>, vector<64x128xf32> -> vector<64x128xf32>
    %40 = arith.addf %34, %39 : vector<64x128xf32>
    %41 = vector.extract_strided_slice %35 {offsets = [0, 4], sizes = [64, 32], strides = [1, 1]} : vector<64x40xbf16> to vector<64x32xbf16>
    %c7 = arith.constant 7 : index
    %c0_24 = arith.constant 0 : index
    %c0_25 = arith.constant 0 : index
    %42 = vector.load %arg2[%c7, %c0_24, %c0_25] : memref<9x32x128xbf16, #tpu.memory_space<vmem>>, vector<1x32x128xbf16>
    %43 = vector.shape_cast %42 : vector<1x32x128xbf16> to vector<32x128xbf16>
    %cst_26 = arith.constant dense<0.000000e+00> : vector<64x128xf32>
    %44 = tpu.matmul %41, %43, %cst_26 {dimension_numbers = #tpu.dot_dimension_numbers<[1], [0], [0], [1], [0, 0, 1, 1], [], []>} : vector<64x32xbf16>, vector<32x128xbf16>, vector<64x128xf32> -> vector<64x128xf32>
    %45 = arith.addf %40, %44 : vector<64x128xf32>
    %46 = vector.extract_strided_slice %35 {offsets = [0, 8], sizes = [64, 32], strides = [1, 1]} : vector<64x40xbf16> to vector<64x32xbf16>
    %c8 = arith.constant 8 : index
    %c0_27 = arith.constant 0 : index
    %c0_28 = arith.constant 0 : index
    %47 = vector.load %arg2[%c8, %c0_27, %c0_28] : memref<9x32x128xbf16, #tpu.memory_space<vmem>>, vector<1x32x128xbf16>
    %48 = vector.shape_cast %47 : vector<1x32x128xbf16> to vector<32x128xbf16>
    %cst_29 = arith.constant dense<0.000000e+00> : vector<64x128xf32>
    %49 = tpu.matmul %46, %48, %cst_29 {dimension_numbers = #tpu.dot_dimension_numbers<[1], [0], [0], [1], [0, 0, 1, 1], [], []>} : vector<64x32xbf16>, vector<32x128xbf16>, vector<64x128xf32> -> vector<64x128xf32>
    %50 = arith.addf %45, %49 : vector<64x128xf32>
    %c0_30 = arith.constant 0 : index
    %c0_31 = arith.constant 0 : index
    %51 = vector.load %arg3[%c0_30, %c0_31] : memref<1x128xf32, #tpu.memory_space<vmem>>, vector<1x128xf32>
    %52 = vector.broadcast %51 : vector<1x128xf32> to vector<64x128xf32>
    %53 = arith.addf %50, %52 : vector<64x128xf32>
    %cst_32 = arith.constant 0.000000e+00 : f32
    %54 = vector.broadcast %cst_32 : f32 to vector<64x128xf32>
    %55 = arith.maximumf %53, %54 : vector<64x128xf32>
    %56 = arith.truncf %55 : vector<64x128xf32> to vector<64x128xbf16>
    %cst_33 = arith.constant 0.000000e+00 : f32
    %57 = vector.broadcast %cst_33 : f32 to vector<48x192xf32>
    %58 = vector.extract_strided_slice %56 {offsets = [0, 0], sizes = [48, 128], strides = [1, 1]} : vector<64x128xbf16> to vector<48x128xbf16>
    %59 = vector.extract_strided_slice %58 {offsets = [0, 0], sizes = [48, 96], strides = [1, 1]} : vector<48x128xbf16> to vector<48x96xbf16>
    %c0_34 = arith.constant 0 : index
    %c0_35 = arith.constant 0 : index
    %c0_36 = arith.constant 0 : index
    %60 = vector.load %arg4[%c0_34, %c0_35, %c0_36] : memref<9x96x192xbf16, #tpu.memory_space<vmem>>, vector<1x96x192xbf16>
    %61 = vector.shape_cast %60 : vector<1x96x192xbf16> to vector<96x192xbf16>
    %cst_37 = arith.constant dense<0.000000e+00> : vector<48x192xf32>
    %62 = tpu.matmul %59, %61, %cst_37 {dimension_numbers = #tpu.dot_dimension_numbers<[1], [0], [0], [1], [0, 0, 1, 1], [], []>} : vector<48x96xbf16>, vector<96x192xbf16>, vector<48x192xf32> -> vector<48x192xf32>
    %63 = arith.addf %57, %62 : vector<48x192xf32>
    %64 = vector.extract_strided_slice %58 {offsets = [0, 16], sizes = [48, 96], strides = [1, 1]} : vector<48x128xbf16> to vector<48x96xbf16>
    %c1_38 = arith.constant 1 : index
    %c0_39 = arith.constant 0 : index
    %c0_40 = arith.constant 0 : index
    %65 = vector.load %arg4[%c1_38, %c0_39, %c0_40] : memref<9x96x192xbf16, #tpu.memory_space<vmem>>, vector<1x96x192xbf16>
    %66 = vector.shape_cast %65 : vector<1x96x192xbf16> to vector<96x192xbf16>
    %cst_41 = arith.constant dense<0.000000e+00> : vector<48x192xf32>
    %67 = tpu.matmul %64, %66, %cst_41 {dimension_numbers = #tpu.dot_dimension_numbers<[1], [0], [0], [1], [0, 0, 1, 1], [], []>} : vector<48x96xbf16>, vector<96x192xbf16>, vector<48x192xf32> -> vector<48x192xf32>
    %68 = arith.addf %63, %67 : vector<48x192xf32>
    %69 = vector.extract_strided_slice %58 {offsets = [0, 32], sizes = [48, 96], strides = [1, 1]} : vector<48x128xbf16> to vector<48x96xbf16>
    %c2_42 = arith.constant 2 : index
    %c0_43 = arith.constant 0 : index
    %c0_44 = arith.constant 0 : index
    %70 = vector.load %arg4[%c2_42, %c0_43, %c0_44] : memref<9x96x192xbf16, #tpu.memory_space<vmem>>, vector<1x96x192xbf16>
    %71 = vector.shape_cast %70 : vector<1x96x192xbf16> to vector<96x192xbf16>
    %cst_45 = arith.constant dense<0.000000e+00> : vector<48x192xf32>
    %72 = tpu.matmul %69, %71, %cst_45 {dimension_numbers = #tpu.dot_dimension_numbers<[1], [0], [0], [1], [0, 0, 1, 1], [], []>} : vector<48x96xbf16>, vector<96x192xbf16>, vector<48x192xf32> -> vector<48x192xf32>
    %73 = arith.addf %68, %72 : vector<48x192xf32>
    %74 = vector.extract_strided_slice %56 {offsets = [8, 0], sizes = [48, 128], strides = [1, 1]} : vector<64x128xbf16> to vector<48x128xbf16>
    %75 = vector.extract_strided_slice %74 {offsets = [0, 0], sizes = [48, 96], strides = [1, 1]} : vector<48x128xbf16> to vector<48x96xbf16>
    %c3_46 = arith.constant 3 : index
    %c0_47 = arith.constant 0 : index
    %c0_48 = arith.constant 0 : index
    %76 = vector.load %arg4[%c3_46, %c0_47, %c0_48] : memref<9x96x192xbf16, #tpu.memory_space<vmem>>, vector<1x96x192xbf16>
    %77 = vector.shape_cast %76 : vector<1x96x192xbf16> to vector<96x192xbf16>
    %cst_49 = arith.constant dense<0.000000e+00> : vector<48x192xf32>
    %78 = tpu.matmul %75, %77, %cst_49 {dimension_numbers = #tpu.dot_dimension_numbers<[1], [0], [0], [1], [0, 0, 1, 1], [], []>} : vector<48x96xbf16>, vector<96x192xbf16>, vector<48x192xf32> -> vector<48x192xf32>
    %79 = arith.addf %73, %78 : vector<48x192xf32>
    %80 = vector.extract_strided_slice %74 {offsets = [0, 16], sizes = [48, 96], strides = [1, 1]} : vector<48x128xbf16> to vector<48x96xbf16>
    %c4_50 = arith.constant 4 : index
    %c0_51 = arith.constant 0 : index
    %c0_52 = arith.constant 0 : index
    %81 = vector.load %arg4[%c4_50, %c0_51, %c0_52] : memref<9x96x192xbf16, #tpu.memory_space<vmem>>, vector<1x96x192xbf16>
    %82 = vector.shape_cast %81 : vector<1x96x192xbf16> to vector<96x192xbf16>
    %cst_53 = arith.constant dense<0.000000e+00> : vector<48x192xf32>
    %83 = tpu.matmul %80, %82, %cst_53 {dimension_numbers = #tpu.dot_dimension_numbers<[1], [0], [0], [1], [0, 0, 1, 1], [], []>} : vector<48x96xbf16>, vector<96x192xbf16>, vector<48x192xf32> -> vector<48x192xf32>
    %84 = arith.addf %79, %83 : vector<48x192xf32>
    %85 = vector.extract_strided_slice %74 {offsets = [0, 32], sizes = [48, 96], strides = [1, 1]} : vector<48x128xbf16> to vector<48x96xbf16>
    %c5_54 = arith.constant 5 : index
    %c0_55 = arith.constant 0 : index
    %c0_56 = arith.constant 0 : index
    %86 = vector.load %arg4[%c5_54, %c0_55, %c0_56] : memref<9x96x192xbf16, #tpu.memory_space<vmem>>, vector<1x96x192xbf16>
    %87 = vector.shape_cast %86 : vector<1x96x192xbf16> to vector<96x192xbf16>
    %cst_57 = arith.constant dense<0.000000e+00> : vector<48x192xf32>
    %88 = tpu.matmul %85, %87, %cst_57 {dimension_numbers = #tpu.dot_dimension_numbers<[1], [0], [0], [1], [0, 0, 1, 1], [], []>} : vector<48x96xbf16>, vector<96x192xbf16>, vector<48x192xf32> -> vector<48x192xf32>
    %89 = arith.addf %84, %88 : vector<48x192xf32>
    %90 = vector.extract_strided_slice %56 {offsets = [16, 0], sizes = [48, 128], strides = [1, 1]} : vector<64x128xbf16> to vector<48x128xbf16>
    %91 = vector.extract_strided_slice %90 {offsets = [0, 0], sizes = [48, 96], strides = [1, 1]} : vector<48x128xbf16> to vector<48x96xbf16>
    %c6_58 = arith.constant 6 : index
    %c0_59 = arith.constant 0 : index
    %c0_60 = arith.constant 0 : index
    %92 = vector.load %arg4[%c6_58, %c0_59, %c0_60] : memref<9x96x192xbf16, #tpu.memory_space<vmem>>, vector<1x96x192xbf16>
    %93 = vector.shape_cast %92 : vector<1x96x192xbf16> to vector<96x192xbf16>
    %cst_61 = arith.constant dense<0.000000e+00> : vector<48x192xf32>
    %94 = tpu.matmul %91, %93, %cst_61 {dimension_numbers = #tpu.dot_dimension_numbers<[1], [0], [0], [1], [0, 0, 1, 1], [], []>} : vector<48x96xbf16>, vector<96x192xbf16>, vector<48x192xf32> -> vector<48x192xf32>
    %95 = arith.addf %89, %94 : vector<48x192xf32>
    %96 = vector.extract_strided_slice %90 {offsets = [0, 16], sizes = [48, 96], strides = [1, 1]} : vector<48x128xbf16> to vector<48x96xbf16>
    %c7_62 = arith.constant 7 : index
    %c0_63 = arith.constant 0 : index
    %c0_64 = arith.constant 0 : index
    %97 = vector.load %arg4[%c7_62, %c0_63, %c0_64] : memref<9x96x192xbf16, #tpu.memory_space<vmem>>, vector<1x96x192xbf16>
    %98 = vector.shape_cast %97 : vector<1x96x192xbf16> to vector<96x192xbf16>
    %cst_65 = arith.constant dense<0.000000e+00> : vector<48x192xf32>
    %99 = tpu.matmul %96, %98, %cst_65 {dimension_numbers = #tpu.dot_dimension_numbers<[1], [0], [0], [1], [0, 0, 1, 1], [], []>} : vector<48x96xbf16>, vector<96x192xbf16>, vector<48x192xf32> -> vector<48x192xf32>
    %100 = arith.addf %95, %99 : vector<48x192xf32>
    %101 = vector.extract_strided_slice %90 {offsets = [0, 32], sizes = [48, 96], strides = [1, 1]} : vector<48x128xbf16> to vector<48x96xbf16>
    %c8_66 = arith.constant 8 : index
    %c0_67 = arith.constant 0 : index
    %c0_68 = arith.constant 0 : index
    %102 = vector.load %arg4[%c8_66, %c0_67, %c0_68] : memref<9x96x192xbf16, #tpu.memory_space<vmem>>, vector<1x96x192xbf16>
    %103 = vector.shape_cast %102 : vector<1x96x192xbf16> to vector<96x192xbf16>
    %cst_69 = arith.constant dense<0.000000e+00> : vector<48x192xf32>
    %104 = tpu.matmul %101, %103, %cst_69 {dimension_numbers = #tpu.dot_dimension_numbers<[1], [0], [0], [1], [0, 0, 1, 1], [], []>} : vector<48x96xbf16>, vector<96x192xbf16>, vector<48x192xf32> -> vector<48x192xf32>
    %105 = arith.addf %100, %104 : vector<48x192xf32>
    %c0_70 = arith.constant 0 : index
    %c0_71 = arith.constant 0 : index
    %106 = vector.load %arg5[%c0_70, %c0_71] : memref<1x192xf32, #tpu.memory_space<vmem>>, vector<1x192xf32>
    %107 = vector.broadcast %106 : vector<1x192xf32> to vector<48x192xf32>
    %108 = arith.addf %105, %107 : vector<48x192xf32>
    %cst_72 = arith.constant 0.000000e+00 : f32
    %109 = vector.broadcast %cst_72 : f32 to vector<48x192xf32>
    %110 = arith.maximumf %108, %109 : vector<48x192xf32>
    %111 = arith.truncf %110 : vector<48x192xf32> to vector<48x192xbf16>
    %cst_73 = arith.constant 0.000000e+00 : f32
    %112 = vector.broadcast %cst_73 : f32 to vector<32x256xf32>
    %113 = vector.extract_strided_slice %111 {offsets = [0, 0], sizes = [32, 192], strides = [1, 1]} : vector<48x192xbf16> to vector<32x192xbf16>
    %114 = vector.extract_strided_slice %113 {offsets = [0, 0], sizes = [32, 128], strides = [1, 1]} : vector<32x192xbf16> to vector<32x128xbf16>
    %c0_74 = arith.constant 0 : index
    %c0_75 = arith.constant 0 : index
    %c0_76 = arith.constant 0 : index
    %115 = vector.load %arg6[%c0_74, %c0_75, %c0_76] : memref<9x128x256xbf16, #tpu.memory_space<vmem>>, vector<1x128x256xbf16>
    %116 = vector.shape_cast %115 : vector<1x128x256xbf16> to vector<128x256xbf16>
    %cst_77 = arith.constant dense<0.000000e+00> : vector<32x256xf32>
    %117 = tpu.matmul %114, %116, %cst_77 {dimension_numbers = #tpu.dot_dimension_numbers<[1], [0], [0], [1], [0, 0, 1, 1], [], []>} : vector<32x128xbf16>, vector<128x256xbf16>, vector<32x256xf32> -> vector<32x256xf32>
    %118 = arith.addf %112, %117 : vector<32x256xf32>
    %119 = vector.extract_strided_slice %113 {offsets = [0, 32], sizes = [32, 128], strides = [1, 1]} : vector<32x192xbf16> to vector<32x128xbf16>
    %c1_78 = arith.constant 1 : index
    %c0_79 = arith.constant 0 : index
    %c0_80 = arith.constant 0 : index
    %120 = vector.load %arg6[%c1_78, %c0_79, %c0_80] : memref<9x128x256xbf16, #tpu.memory_space<vmem>>, vector<1x128x256xbf16>
    %121 = vector.shape_cast %120 : vector<1x128x256xbf16> to vector<128x256xbf16>
    %cst_81 = arith.constant dense<0.000000e+00> : vector<32x256xf32>
    %122 = tpu.matmul %119, %121, %cst_81 {dimension_numbers = #tpu.dot_dimension_numbers<[1], [0], [0], [1], [0, 0, 1, 1], [], []>} : vector<32x128xbf16>, vector<128x256xbf16>, vector<32x256xf32> -> vector<32x256xf32>
    %123 = arith.addf %118, %122 : vector<32x256xf32>
    %124 = vector.extract_strided_slice %113 {offsets = [0, 64], sizes = [32, 128], strides = [1, 1]} : vector<32x192xbf16> to vector<32x128xbf16>
    %c2_82 = arith.constant 2 : index
    %c0_83 = arith.constant 0 : index
    %c0_84 = arith.constant 0 : index
    %125 = vector.load %arg6[%c2_82, %c0_83, %c0_84] : memref<9x128x256xbf16, #tpu.memory_space<vmem>>, vector<1x128x256xbf16>
    %126 = vector.shape_cast %125 : vector<1x128x256xbf16> to vector<128x256xbf16>
    %cst_85 = arith.constant dense<0.000000e+00> : vector<32x256xf32>
    %127 = tpu.matmul %124, %126, %cst_85 {dimension_numbers = #tpu.dot_dimension_numbers<[1], [0], [0], [1], [0, 0, 1, 1], [], []>} : vector<32x128xbf16>, vector<128x256xbf16>, vector<32x256xf32> -> vector<32x256xf32>
    %128 = arith.addf %123, %127 : vector<32x256xf32>
    %129 = vector.extract_strided_slice %111 {offsets = [8, 0], sizes = [32, 192], strides = [1, 1]} : vector<48x192xbf16> to vector<32x192xbf16>
    %130 = vector.extract_strided_slice %129 {offsets = [0, 0], sizes = [32, 128], strides = [1, 1]} : vector<32x192xbf16> to vector<32x128xbf16>
    %c3_86 = arith.constant 3 : index
    %c0_87 = arith.constant 0 : index
    %c0_88 = arith.constant 0 : index
    %131 = vector.load %arg6[%c3_86, %c0_87, %c0_88] : memref<9x128x256xbf16, #tpu.memory_space<vmem>>, vector<1x128x256xbf16>
    %132 = vector.shape_cast %131 : vector<1x128x256xbf16> to vector<128x256xbf16>
    %cst_89 = arith.constant dense<0.000000e+00> : vector<32x256xf32>
    %133 = tpu.matmul %130, %132, %cst_89 {dimension_numbers = #tpu.dot_dimension_numbers<[1], [0], [0], [1], [0, 0, 1, 1], [], []>} : vector<32x128xbf16>, vector<128x256xbf16>, vector<32x256xf32> -> vector<32x256xf32>
    %134 = arith.addf %128, %133 : vector<32x256xf32>
    %135 = vector.extract_strided_slice %129 {offsets = [0, 32], sizes = [32, 128], strides = [1, 1]} : vector<32x192xbf16> to vector<32x128xbf16>
    %c4_90 = arith.constant 4 : index
    %c0_91 = arith.constant 0 : index
    %c0_92 = arith.constant 0 : index
    %136 = vector.load %arg6[%c4_90, %c0_91, %c0_92] : memref<9x128x256xbf16, #tpu.memory_space<vmem>>, vector<1x128x256xbf16>
    %137 = vector.shape_cast %136 : vector<1x128x256xbf16> to vector<128x256xbf16>
    %cst_93 = arith.constant dense<0.000000e+00> : vector<32x256xf32>
    %138 = tpu.matmul %135, %137, %cst_93 {dimension_numbers = #tpu.dot_dimension_numbers<[1], [0], [0], [1], [0, 0, 1, 1], [], []>} : vector<32x128xbf16>, vector<128x256xbf16>, vector<32x256xf32> -> vector<32x256xf32>
    %139 = arith.addf %134, %138 : vector<32x256xf32>
    %140 = vector.extract_strided_slice %129 {offsets = [0, 64], sizes = [32, 128], strides = [1, 1]} : vector<32x192xbf16> to vector<32x128xbf16>
    %c5_94 = arith.constant 5 : index
    %c0_95 = arith.constant 0 : index
    %c0_96 = arith.constant 0 : index
    %141 = vector.load %arg6[%c5_94, %c0_95, %c0_96] : memref<9x128x256xbf16, #tpu.memory_space<vmem>>, vector<1x128x256xbf16>
    %142 = vector.shape_cast %141 : vector<1x128x256xbf16> to vector<128x256xbf16>
    %cst_97 = arith.constant dense<0.000000e+00> : vector<32x256xf32>
    %143 = tpu.matmul %140, %142, %cst_97 {dimension_numbers = #tpu.dot_dimension_numbers<[1], [0], [0], [1], [0, 0, 1, 1], [], []>} : vector<32x128xbf16>, vector<128x256xbf16>, vector<32x256xf32> -> vector<32x256xf32>
    %144 = arith.addf %139, %143 : vector<32x256xf32>
    %145 = vector.extract_strided_slice %111 {offsets = [16, 0], sizes = [32, 192], strides = [1, 1]} : vector<48x192xbf16> to vector<32x192xbf16>
    %146 = vector.extract_strided_slice %145 {offsets = [0, 0], sizes = [32, 128], strides = [1, 1]} : vector<32x192xbf16> to vector<32x128xbf16>
    %c6_98 = arith.constant 6 : index
    %c0_99 = arith.constant 0 : index
    %c0_100 = arith.constant 0 : index
    %147 = vector.load %arg6[%c6_98, %c0_99, %c0_100] : memref<9x128x256xbf16, #tpu.memory_space<vmem>>, vector<1x128x256xbf16>
    %148 = vector.shape_cast %147 : vector<1x128x256xbf16> to vector<128x256xbf16>
    %cst_101 = arith.constant dense<0.000000e+00> : vector<32x256xf32>
    %149 = tpu.matmul %146, %148, %cst_101 {dimension_numbers = #tpu.dot_dimension_numbers<[1], [0], [0], [1], [0, 0, 1, 1], [], []>} : vector<32x128xbf16>, vector<128x256xbf16>, vector<32x256xf32> -> vector<32x256xf32>
    %150 = arith.addf %144, %149 : vector<32x256xf32>
    %151 = vector.extract_strided_slice %145 {offsets = [0, 32], sizes = [32, 128], strides = [1, 1]} : vector<32x192xbf16> to vector<32x128xbf16>
    %c7_102 = arith.constant 7 : index
    %c0_103 = arith.constant 0 : index
    %c0_104 = arith.constant 0 : index
    %152 = vector.load %arg6[%c7_102, %c0_103, %c0_104] : memref<9x128x256xbf16, #tpu.memory_space<vmem>>, vector<1x128x256xbf16>
    %153 = vector.shape_cast %152 : vector<1x128x256xbf16> to vector<128x256xbf16>
    %cst_105 = arith.constant dense<0.000000e+00> : vector<32x256xf32>
    %154 = tpu.matmul %151, %153, %cst_105 {dimension_numbers = #tpu.dot_dimension_numbers<[1], [0], [0], [1], [0, 0, 1, 1], [], []>} : vector<32x128xbf16>, vector<128x256xbf16>, vector<32x256xf32> -> vector<32x256xf32>
    %155 = arith.addf %150, %154 : vector<32x256xf32>
    %156 = vector.extract_strided_slice %145 {offsets = [0, 64], sizes = [32, 128], strides = [1, 1]} : vector<32x192xbf16> to vector<32x128xbf16>
    %c8_106 = arith.constant 8 : index
    %c0_107 = arith.constant 0 : index
    %c0_108 = arith.constant 0 : index
    %157 = vector.load %arg6[%c8_106, %c0_107, %c0_108] : memref<9x128x256xbf16, #tpu.memory_space<vmem>>, vector<1x128x256xbf16>
    %158 = vector.shape_cast %157 : vector<1x128x256xbf16> to vector<128x256xbf16>
    %cst_109 = arith.constant dense<0.000000e+00> : vector<32x256xf32>
    %159 = tpu.matmul %156, %158, %cst_109 {dimension_numbers = #tpu.dot_dimension_numbers<[1], [0], [0], [1], [0, 0, 1, 1], [], []>} : vector<32x128xbf16>, vector<128x256xbf16>, vector<32x256xf32> -> vector<32x256xf32>
    %160 = arith.addf %155, %159 : vector<32x256xf32>
    %c0_110 = arith.constant 0 : index
    %c0_111 = arith.constant 0 : index
    %161 = vector.load %arg7[%c0_110, %c0_111] : memref<1x256xf32, #tpu.memory_space<vmem>>, vector<1x256xf32>
    %162 = vector.broadcast %161 : vector<1x256xf32> to vector<32x256xf32>
    %163 = arith.addf %160, %162 : vector<32x256xf32>
    %cst_112 = arith.constant 0.000000e+00 : f32
    %164 = vector.broadcast %cst_112 : f32 to vector<32x256xf32>
    %165 = arith.maximumf %163, %164 : vector<32x256xf32>
    %166 = arith.truncf %165 : vector<32x256xf32> to vector<32x256xbf16>
    %cst_113 = arith.constant 0.000000e+00 : f32
    %167 = vector.broadcast %cst_113 : f32 to vector<8x512xf32>
    %168 = vector.extract_strided_slice %166 {offsets = [0, 0], sizes = [8, 256], strides = [1, 1]} : vector<32x256xbf16> to vector<8x256xbf16>
    %c0_114 = arith.constant 0 : index
    %c0_115 = arith.constant 0 : index
    %c0_116 = arith.constant 0 : index
    %169 = vector.load %arg8[%c0_114, %c0_115, %c0_116] : memref<4x256x512xbf16, #tpu.memory_space<vmem>>, vector<1x256x512xbf16>
    %170 = vector.shape_cast %169 : vector<1x256x512xbf16> to vector<256x512xbf16>
    %cst_117 = arith.constant dense<0.000000e+00> : vector<8x512xf32>
    %171 = tpu.matmul %168, %170, %cst_117 {dimension_numbers = #tpu.dot_dimension_numbers<[1], [0], [0], [1], [0, 0, 1, 1], [], []>} : vector<8x256xbf16>, vector<256x512xbf16>, vector<8x512xf32> -> vector<8x512xf32>
    %172 = arith.addf %167, %171 : vector<8x512xf32>
    %173 = vector.extract_strided_slice %166 {offsets = [8, 0], sizes = [8, 256], strides = [1, 1]} : vector<32x256xbf16> to vector<8x256xbf16>
    %c1_118 = arith.constant 1 : index
    %c0_119 = arith.constant 0 : index
    %c0_120 = arith.constant 0 : index
    %174 = vector.load %arg8[%c1_118, %c0_119, %c0_120] : memref<4x256x512xbf16, #tpu.memory_space<vmem>>, vector<1x256x512xbf16>
    %175 = vector.shape_cast %174 : vector<1x256x512xbf16> to vector<256x512xbf16>
    %cst_121 = arith.constant dense<0.000000e+00> : vector<8x512xf32>
    %176 = tpu.matmul %173, %175, %cst_121 {dimension_numbers = #tpu.dot_dimension_numbers<[1], [0], [0], [1], [0, 0, 1, 1], [], []>} : vector<8x256xbf16>, vector<256x512xbf16>, vector<8x512xf32> -> vector<8x512xf32>
    %177 = arith.addf %172, %176 : vector<8x512xf32>
    %178 = vector.extract_strided_slice %166 {offsets = [16, 0], sizes = [8, 256], strides = [1, 1]} : vector<32x256xbf16> to vector<8x256xbf16>
    %c2_122 = arith.constant 2 : index
    %c0_123 = arith.constant 0 : index
    %c0_124 = arith.constant 0 : index
    %179 = vector.load %arg8[%c2_122, %c0_123, %c0_124] : memref<4x256x512xbf16, #tpu.memory_space<vmem>>, vector<1x256x512xbf16>
    %180 = vector.shape_cast %179 : vector<1x256x512xbf16> to vector<256x512xbf16>
    %cst_125 = arith.constant dense<0.000000e+00> : vector<8x512xf32>
    %181 = tpu.matmul %178, %180, %cst_125 {dimension_numbers = #tpu.dot_dimension_numbers<[1], [0], [0], [1], [0, 0, 1, 1], [], []>} : vector<8x256xbf16>, vector<256x512xbf16>, vector<8x512xf32> -> vector<8x512xf32>
    %182 = arith.addf %177, %181 : vector<8x512xf32>
    %183 = vector.extract_strided_slice %166 {offsets = [24, 0], sizes = [8, 256], strides = [1, 1]} : vector<32x256xbf16> to vector<8x256xbf16>
    %c3_126 = arith.constant 3 : index
    %c0_127 = arith.constant 0 : index
    %c0_128 = arith.constant 0 : index
    %184 = vector.load %arg8[%c3_126, %c0_127, %c0_128] : memref<4x256x512xbf16, #tpu.memory_space<vmem>>, vector<1x256x512xbf16>
    %185 = vector.shape_cast %184 : vector<1x256x512xbf16> to vector<256x512xbf16>
    %cst_129 = arith.constant dense<0.000000e+00> : vector<8x512xf32>
    %186 = tpu.matmul %183, %185, %cst_129 {dimension_numbers = #tpu.dot_dimension_numbers<[1], [0], [0], [1], [0, 0, 1, 1], [], []>} : vector<8x256xbf16>, vector<256x512xbf16>, vector<8x512xf32> -> vector<8x512xf32>
    %187 = arith.addf %182, %186 : vector<8x512xf32>
    %c0_130 = arith.constant 0 : index
    %c0_131 = arith.constant 0 : index
    %188 = vector.load %arg9[%c0_130, %c0_131] : memref<1x512xf32, #tpu.memory_space<vmem>>, vector<1x512xf32>
    %189 = vector.broadcast %188 : vector<1x512xf32> to vector<8x512xf32>
    %190 = arith.addf %187, %189 : vector<8x512xf32>
    %cst_132 = arith.constant 0.000000e+00 : f32
    %191 = vector.broadcast %cst_132 : f32 to vector<8x512xf32>
    %192 = arith.maximumf %190, %191 : vector<8x512xf32>
    %193 = arith.truncf %192 : vector<8x512xf32> to vector<8x512xbf16>
    %c0_133 = arith.constant 0 : index
    %c0_134 = arith.constant 0 : index
    %194 = vector.load %arg10[%c0_133, %c0_134] : memref<512x128xbf16, #tpu.memory_space<vmem>>, vector<512x128xbf16>
    %cst_135 = arith.constant dense<0.000000e+00> : vector<8x128xf32>
    %195 = tpu.matmul %193, %194, %cst_135 {dimension_numbers = #tpu.dot_dimension_numbers<[1], [0], [0], [1], [0, 0, 1, 1], [], []>} : vector<8x512xbf16>, vector<512x128xbf16>, vector<8x128xf32> -> vector<8x128xf32>
    %c0_136 = arith.constant 0 : index
    %c0_137 = arith.constant 0 : index
    %196 = vector.load %arg11[%c0_136, %c0_137] : memref<1x128xf32, #tpu.memory_space<vmem>>, vector<1x128xf32>
    %197 = vector.broadcast %196 : vector<1x128xf32> to vector<8x128xf32>
    %198 = arith.addf %195, %197 : vector<8x128xf32>
    %c0_138 = arith.constant 0 : index
    %c0_139 = arith.constant 0 : index
    %199 = vector.load %arg12[%c0_138, %c0_139] : memref<8x128xf32, #tpu.memory_space<vmem>>, vector<8x128xf32>
    tpu.vector_store %arg12[%c0_138, %c0_139], %198 {strides = array<i32>} : memref<8x128xf32, #tpu.memory_space<vmem>>, vector<8x128xf32>,
    return
  }
  func.func @transform_0(%arg0: i32) -> (i32, i32, i32) {
    %c0_i32 = arith.constant 0 : i32
    %c0_i32_0 = arith.constant 0 : i32
    %c0_i32_1 = arith.constant 0 : i32
    return %arg0, %c0_i32, %c0_i32_0 : i32, i32, i32
  }
  func.func @transform_1(%arg0: i32) -> (i32, i32, i32) {
    %c0_i32 = arith.constant 0 : i32
    %c0_i32_0 = arith.constant 0 : i32
    %c0_i32_1 = arith.constant 0 : i32
    %c0_i32_2 = arith.constant 0 : i32
    return %c0_i32, %c0_i32_0, %c0_i32_1 : i32, i32, i32
  }
  func.func @transform_2(%arg0: i32) -> (i32, i32) {
    %c0_i32 = arith.constant 0 : i32
    %c0_i32_0 = arith.constant 0 : i32
    %c0_i32_1 = arith.constant 0 : i32
    return %c0_i32, %c0_i32_0 : i32, i32
  }
  func.func @transform_3(%arg0: i32) -> (i32, i32, i32) {
    %c0_i32 = arith.constant 0 : i32
    %c0_i32_0 = arith.constant 0 : i32
    %c0_i32_1 = arith.constant 0 : i32
    %c0_i32_2 = arith.constant 0 : i32
    return %c0_i32, %c0_i32_0, %c0_i32_1 : i32, i32, i32
  }
  func.func @transform_4(%arg0: i32) -> (i32, i32) {
    %c0_i32 = arith.constant 0 : i32
    %c0_i32_0 = arith.constant 0 : i32
    %c0_i32_1 = arith.constant 0 : i32
    return %c0_i32, %c0_i32_0 : i32, i32
  }
  func.func @transform_5(%arg0: i32) -> (i32, i32, i32) {
    %c0_i32 = arith.constant 0 : i32
    %c0_i32_0 = arith.constant 0 : i32
    %c0_i32_1 = arith.constant 0 : i32
    %c0_i32_2 = arith.constant 0 : i32
    return %c0_i32, %c0_i32_0, %c0_i32_1 : i32, i32, i32
  }
  func.func @transform_6(%arg0: i32) -> (i32, i32) {
    %c0_i32 = arith.constant 0 : i32
    %c0_i32_0 = arith.constant 0 : i32
    %c0_i32_1 = arith.constant 0 : i32
    return %c0_i32, %c0_i32_0 : i32, i32
  }
  func.func @transform_7(%arg0: i32) -> (i32, i32, i32) {
    %c0_i32 = arith.constant 0 : i32
    %c0_i32_0 = arith.constant 0 : i32
    %c0_i32_1 = arith.constant 0 : i32
    %c0_i32_2 = arith.constant 0 : i32
    return %c0_i32, %c0_i32_0, %c0_i32_1 : i32, i32, i32
  }
  func.func @transform_8(%arg0: i32) -> (i32, i32) {
    %c0_i32 = arith.constant 0 : i32
    %c0_i32_0 = arith.constant 0 : i32
    %c0_i32_1 = arith.constant 0 : i32
    return %c0_i32, %c0_i32_0 : i32, i32
  }
  func.func @transform_9(%arg0: i32) -> (i32, i32) {
    %c0_i32 = arith.constant 0 : i32
    %c0_i32_0 = arith.constant 0 : i32
    %c0_i32_1 = arith.constant 0 : i32
    return %c0_i32, %c0_i32_0 : i32, i32
  }
  func.func @transform_10(%arg0: i32) -> (i32, i32) {
    %c0_i32 = arith.constant 0 : i32
    %c0_i32_0 = arith.constant 0 : i32
    %c0_i32_1 = arith.constant 0 : i32
    return %c0_i32, %c0_i32_0 : i32, i32
  }
  func.func @transform_11(%arg0: i32) -> (i32, i32) {
    %c0_i32 = arith.constant 0 : i32
    %c0_i32_0 = arith.constant 0 : i32
    return %arg0, %c0_i32 : i32, i32
  }
}

</mosaic_0001>

<llo_original>
// kernel: tpu_custom_call.1
$region0: #{tpu_custom_call.1}
  #allocation0 [shape = 'u32[]', space=smem, size = 0x4, offset = 0x4, fixed_abs, tag = 'smem constant byte address 0x4 - core index']
  #allocation1 [shape = 'u32[144,128]{1,0:T(1,128)}', space=vmem, size = 0x12000, scoped, tag = 'internal scratch']
  %s0 = inlined_call_operand.vmem [shape: bf16[1,80,40], index: 0, kind: input, shape index: {}]
  %s1 = inlined_call_operand.hbm [shape: bf16[9,32,128], index: 1, kind: input, shape index: {}]
  %s2 = inlined_call_operand.vmem [shape: f32[1,128], index: 2, kind: input, shape index: {}]
  %s3 = inlined_call_operand.hbm [shape: bf16[9,96,192], index: 3, kind: input, shape index: {}]
  %s4 = inlined_call_operand.vmem [shape: f32[1,192], index: 4, kind: input, shape index: {}]
  %s5 = inlined_call_operand.hbm [shape: bf16[9,128,256], index: 5, kind: input, shape index: {}]
  %s6 = inlined_call_operand.vmem [shape: f32[1,256], index: 6, kind: input, shape index: {}]
  %s7 = inlined_call_operand.hbm [shape: bf16[4,256,512], index: 7, kind: input, shape index: {}]
  %s8 = inlined_call_operand.vmem [shape: f32[1,512], index: 8, kind: input, shape index: {}]
  %s9 = inlined_call_operand.hbm [shape: bf16[512,128], index: 9, kind: input, shape index: {}]
  %s10 = inlined_call_operand.vmem [shape: f32[1,128], index: 10, kind: input, shape index: {}]
  %s11 = inlined_call_operand.hbm [shape: f32[8,128], index: 11, kind: output, shape index: {}]
  %s12 = sld [smem:[#allocation0]]
  $region74: #{tpu_custom_call.1} parent=0
    _
  %s14 = ssub.s32 1, %s12
  %s15 = scalar_select 0, %s14, %s12
  $region1: #{tpu_custom_call.1} parent=0
    #allocation2 [shape = 'u8[73728]{0}', space=vmem, size = 0x12000, scoped, tag = 'input window, operand 1, single buffered']
    #allocation3 [shape = 's32[1]{0}', space=sflag, size = 0x4, scoped, tag = 'scoped memory for tpu_custom_call.1']
    #allocation4 [shape = 's32[1]{0}', space=sflag, size = 0x4, scoped, tag = 'scoped memory for tpu_custom_call.1']
    #allocation5 [shape = 'u8[442368]{0}', space=vmem, size = 0x6c000, scoped, tag = 'input window, operand 3, single buffered']
    #allocation6 [shape = 's32[1]{0}', space=sflag, size = 0x4, scoped, tag = 'scoped memory for tpu_custom_call.1']
    #allocation7 [shape = 'u8[589824]{0}', space=vmem, size = 0x90000, scoped, tag = 'input window, operand 5, single buffered']
    #allocation8 [shape = 'u8[1048576]{0}', space=vmem, size = 0x100000, scoped, tag = 'input window, operand 7, single buffered']
    #allocation9 [shape = 's32[1]{0}', space=sflag, size = 0x4, scoped, tag = 'scoped memory for tpu_custom_call.1']
    #allocation10 [shape = 'u8[131072]{0}', space=vmem, size = 0x20000, scoped, tag = 'input window, operand 9, single buffered']
    #allocation11 [shape = 'u8[4096]{0}', space=vmem, size = 0x1000, scoped, tag = 'output window, operand 0, single buffered']
    %16 = vsyncpa [#allocation3], 0
    %17 = vsyncpa [#allocation6], 0
    %18 = vsyncpa [#allocation9], 0
    %19 = vsyncpa [#allocation4], 0
    // Predicated region
    $region2: #{tpu_custom_call.1} parent=1 // pred_check
      _
    $region3: #{tpu_custom_call.1} parent=1 // pred_check_branch
      %21 = sbr.rel (0) target = $region5
    $region4: #{tpu_custom_call.1} parent=1 // pred_region
      _
    $region5: #{tpu_custom_call.1} parent=1 // pred_fallthru
      _
    // Predicated region
    $region6: #{tpu_custom_call.1} parent=1 // pred_check
      _
    $region7: #{tpu_custom_call.1} parent=1 // pred_check_branch
      %23 = sbr.rel (0) target = $region9
    $region8: #{tpu_custom_call.1} parent=1 // pred_region
      %s25 = ssub.s32 2304, 2304
      %26 = vsyncadd [#allocation3], %s25
      %s27 = sshll.u32 [#allocation2], 4
      %s28 = int_to_ptr.vmem [resolvable:$true] %s27
      %33 = dma.hbm_to_vmem [thread:$0]  %s1, 2304, %s28, [#allocation3], 64, 64, 4
    $region9: #{tpu_custom_call.1} parent=1 // pred_fallthru
      _
    // Predicated region
    $region10: #{tpu_custom_call.1} parent=1 // pred_check
      _
    $region11: #{tpu_custom_call.1} parent=1 // pred_check_branch
      %35 = sbr.rel (0) target = $region13
    $region12: #{tpu_custom_call.1} parent=1 // pred_region
      _
    $region13: #{tpu_custom_call.1} parent=1 // pred_fallthru
      _
    // Predicated region
    $region14: #{tpu_custom_call.1} parent=1 // pred_check
      _
    $region15: #{tpu_custom_call.1} parent=1 // pred_check_branch
      %37 = sbr.rel (0) target = $region17
    $region16: #{tpu_custom_call.1} parent=1 // pred_region
      %s39 = ssub.s32 13824, 13824
      %40 = vsyncadd [#allocation6], %s39
      %s41 = sshll.u32 [#allocation5], 4
      %s42 = int_to_ptr.vmem [resolvable:$true] %s41
      %47 = dma.hbm_to_vmem [thread:$0]  %s3, 13824, %s42, [#allocation6], 128, 128, 8
    $region17: #{tpu_custom_call.1} parent=1 // pred_fallthru
      _
    // Predicated region
    $region18: #{tpu_custom_call.1} parent=1 // pred_check
      _
    $region19: #{tpu_custom_call.1} parent=1 // pred_check_branch
      %49 = sbr.rel (0) target = $region21
    $region20: #{tpu_custom_call.1} parent=1 // pred_region
      _
    $region21: #{tpu_custom_call.1} parent=1 // pred_fallthru
      _
    // Predicated region
    $region22: #{tpu_custom_call.1} parent=1 // pred_check
      _
    $region23: #{tpu_custom_call.1} parent=1 // pred_check_branch
      %51 = sbr.rel (0) target = $region25
    $region24: #{tpu_custom_call.1} parent=1 // pred_region
      %s53 = ssub.s32 18432, 18432
      %54 = vsyncadd [#allocation6], %s53
      %s55 = sshll.u32 [#allocation7], 4
      %s56 = int_to_ptr.vmem [resolvable:$true] %s55
      %61 = dma.hbm_to_vmem [thread:$0]  %s5, 18432, %s56, [#allocation6], 128, 128, 8
    $region25: #{tpu_custom_call.1} parent=1 // pred_fallthru
      _
    // Predicated region
    $region26: #{tpu_custom_call.1} parent=1 // pred_check
      _
    $region27: #{tpu_custom_call.1} parent=1 // pred_check_branch
      %63 = sbr.rel (0) target = $region29
    $region28: #{tpu_custom_call.1} parent=1 // pred_region
      _
    $region29: #{tpu_custom_call.1} parent=1 // pred_fallthru
      _
    // Predicated region
    $region30: #{tpu_custom_call.1} parent=1 // pred_check
      _
    $region31: #{tpu_custom_call.1} parent=1 // pred_check_branch
      %65 = sbr.rel (0) target = $region33
    $region32: #{tpu_custom_call.1} parent=1 // pred_region
      %s67 = ssub.s32 32768, 32768
      %68 = vsyncadd [#allocation9], %s67
      %s69 = sshll.u32 [#allocation8], 4
      %s70 = int_to_ptr.vmem [resolvable:$true] %s69
      %75 = dma.hbm_to_vmem [thread:$0]  %s7, 32768, %s70, [#allocation9], 256, 256, 16
    $region33: #{tpu_custom_call.1} parent=1 // pred_fallthru
      _
    // Predicated region
    $region34: #{tpu_custom_call.1} parent=1 // pred_check
      _
    $region35: #{tpu_custom_call.1} parent=1 // pred_check_branch
      %77 = sbr.rel (0) target = $region37
    $region36: #{tpu_custom_call.1} parent=1 // pred_region
      _
    $region37: #{tpu_custom_call.1} parent=1 // pred_fallthru
      _
    // Predicated region
    $region38: #{tpu_custom_call.1} parent=1 // pred_check
      _
    $region39: #{tpu_custom_call.1} parent=1 // pred_check_branch
      %79 = sbr.rel (0) target = $region41
    $region40: #{tpu_custom_call.1} parent=1 // pred_region
      %s81 = ssub.s32 4096, 4096
      %82 = vsyncadd [#allocation9], %s81
      %s83 = sshll.u32 [#allocation10], 4
      %s84 = int_to_ptr.vmem [resolvable:$true] %s83
      %89 = dma.hbm_to_vmem [thread:$0]  %s9, 4096, %s84, [#allocation9], 64, 64, 4
    $region41: #{tpu_custom_call.1} parent=1 // pred_fallthru
      _
    // Predicated region
    $region42: #{tpu_custom_call.1} parent=1 // pred_check
      _
    $region43: #{tpu_custom_call.1} parent=1 // pred_check_branch
      %91 = sbr.rel (0) target = $region45
    $region44: #{tpu_custom_call.1} parent=1 // pred_region
      _
    $region45: #{tpu_custom_call.1} parent=1 // pred_fallthru
      _
    // Predicated region
    $region46: #{tpu_custom_call.1} parent=1 // pred_check
      _
    $region47: #{tpu_custom_call.1} parent=1 // pred_check_branch
      %93 = sbr.rel (0) target = $region49
    $region48: #{tpu_custom_call.1} parent=1 // pred_region
      %94 = dma.done [#allocation3], 2304
    $region49: #{tpu_custom_call.1} parent=1 // pred_fallthru
      _
    // Predicated region
    $region50: #{tpu_custom_call.1} parent=1 // pred_check
      _
    $region51: #{tpu_custom_call.1} parent=1 // pred_check_branch
      %96 = sbr.rel (0) target = $region53
    $region52: #{tpu_custom_call.1} parent=1 // pred_region
      %97 = dma.done [#allocation6], 13824
    $region53: #{tpu_custom_call.1} parent=1 // pred_fallthru
      _
    // Predicated region
    $region54: #{tpu_custom_call.1} parent=1 // pred_check
      _
    $region55: #{tpu_custom_call.1} parent=1 // pred_check_branch
      %99 = sbr.rel (0) target = $region57
    $region56: #{tpu_custom_call.1} parent=1 // pred_region
      %100 = dma.done [#allocation6], 18432
    $region57: #{tpu_custom_call.1} parent=1 // pred_fallthru
      _
    // Predicated region
    $region58: #{tpu_custom_call.1} parent=1 // pred_check
      _
    $region59: #{tpu_custom_call.1} parent=1 // pred_check_branch
      %102 = sbr.rel (0) target = $region61
    $region60: #{tpu_custom_call.1} parent=1 // pred_region
      %103 = dma.done [#allocation9], 32768
    $region61: #{tpu_custom_call.1} parent=1 // pred_fallthru
      _
    // Predicated region
    $region62: #{tpu_custom_call.1} parent=1 // pred_check
      _
    $region63: #{tpu_custom_call.1} parent=1 // pred_check_branch
      %105 = sbr.rel (0) target = $region65
    $region64: #{tpu_custom_call.1} parent=1 // pred_region
      %106 = dma.done [#allocation9], 4096
    $region65: #{tpu_custom_call.1} parent=1 // pred_fallthru
      _
    %v108 = vld [vmem:[%s0] sm:$0xf]
    %v109 = vld [vmem:[%s0 + $0x4] sm:$0xf]
    %v110 = vld [vmem:[%s0 + $0x8] sm:$0xf]
    %v111 = vld [vmem:[%s0 + $0xc] sm:$0xf]
    %v112 = vld [vmem:[%s0 + $0x10] sm:$0xf]
    %v113 = vld [vmem:[%s0 + $0x14] sm:$0xf]
    %v114 = vld [vmem:[%s0 + $0x18] sm:$0xf]
    %v115 = vld [vmem:[%s0 + $0x1c] sm:$0xf]
    %v116 = vld [vmem:[%s0 + $0x20] sm:$0xf]
    %v117 = vld [vmem:[%s0 + $0x24] sm:$0xf]
    %v118 = vld [vmem:[#allocation2] sm:$0xf]
    %v119 = vld [vmem:[#allocation2 + $0x4] sm:$0xf]
    %v120 = vld [vmem:[#allocation2 + $0x8] sm:$0xf]
    %v121 = vld [vmem:[#allocation2 + $0xc] sm:$0xf]
    %s122 = scalar_lea.vmem [#allocation2], 16
    %v123 = vld [vmem:[%s122] sm:$0xf]
    %v124 = vld [vmem:[%s122 + $0x4] sm:$0xf]
    %v125 = vld [vmem:[%s122 + $0x8] sm:$0xf]
    %v126 = vld [vmem:[%s122 + $0xc] sm:$0xf]
    %v135 = vunpack.c.l.b16 %v108
    %v136 = vunpack.c.l.b16 %v109
    %v137 = vunpack.c.l.b16 %v110
    %v138 = vunpack.c.l.b16 %v111
    %v139 = vunpack.c.l.b16 %v112
    %v140 = vunpack.c.l.b16 %v113
    %v141 = vunpack.c.l.b16 %v114
    %v142 = vunpack.c.l.b16 %v115
    %v143 = vpack.c.b16 %v136, %v135
    %v144 = vpack.c.b16 %v138, %v137
    %v145 = vpack.c.b16 %v140, %v139
    %v146 = vpack.c.b16 %v142, %v141
    %147 = vrot.lane.b32.xlu0 %v143, 124
    %v148 = vpop.permute.xlu0 %147
    %149 = vrot.lane.b32.xlu0 %v144, 124
    %v150 = vpop.permute.xlu0 %149
    %151 = vrot.lane.b32.xlu0 %v145, 124
    %v152 = vpop.permute.xlu0 %151
    %153 = vrot.lane.b32.xlu0 %v146, 124
    %v154 = vpop.permute.xlu0 %153
    %v159 = vunpack.c.l.b16 %v123
    %v160 = vunpack.c.l.b16 %v124
    %v161 = vunpack.c.l.b16 %v125
    %v162 = vunpack.c.l.b16 %v126
    %v163 = vpack.c.b16 %v160, %v159
    %v164 = vpack.c.b16 %v162, %v161
    %vm167 = vcmask 261120
    %v169 = vsel %vm167, %v148, 0
    %v172 = vsel %vm167, %v150, 0
    %v175 = vsel %vm167, %v152, 0
    %v178 = vsel %vm167, %v154, 0
    %180 = vmatprep.subr.bf16.mxu0 0
    %181 = vmatpush1.bf16.msra.mxu0 %v163
    %182 = vmatprep.subr.bf16.mxu0 0
    %183 = vmatpush1.bf16.msra.mxu0 %v164
    %184 = vmatprep.subr.bf16.mxu0 0
    %185 = vmatpush1.bf16.msra.mxu0 0
    %186 = vmatprep.subr.bf16.mxu0 0
    %187 = vmatpush1.bf16.msra.mxu0 0
    %188 = vmatprep.subr.bf16.mxu0 0
    %189 = vmatpush1.bf16.msra.mxu0 0
    %190 = vmatprep.subr.bf16.mxu0 0
    %191 = vmatpush1.bf16.msra.mxu0 0
    %192 = vmatprep.subr.bf16.mxu0 0
    %193 = vmatpush1.bf16.msra.mxu0 0
    %194 = vmatprep.subr.bf16.mxu0 0
    %195 = vmatpush1.bf16.msra.mxu0 0
    %196 = vmatprep.subr.bf16.mxu0 0
    %197 = vmatpush1.bf16.msra.mxu0 0
    %198 = vmatprep.subr.bf16.mxu0 0
    %199 = vmatpush1.bf16.msra.mxu0 0
    %200 = vmatprep.subr.bf16.mxu0 0
    %201 = vmatpush1.bf16.msra.mxu0 0
    %202 = vmatprep.subr.bf16.mxu0 0
    %203 = vmatpush1.bf16.msra.mxu0 0
    %204 = vmatprep.subr.bf16.mxu0 0
    %205 = vmatpush1.bf16.msra.mxu0 0
    %206 = vmatprep.subr.bf16.mxu0 0
    %207 = vmatpush1.bf16.msra.mxu0 0
    %208 = vmatprep.subr.bf16.mxu0 0
    %209 = vmatpush1.bf16.msra.mxu0 0
    %210 = vmatprep.subr.bf16.mxu0 0
    %211 = vmatpush1.bf16.msra.mxu0 0
    %212 = vmatprep.mubr.bf16.mxu0 0
    %213 = vmatmul.mubr.bf16.gmra.mrb[0].mxu0 %v169
    %v214 = vpop.f32.mrb[0].mxu0
    %v215 = vadd.f32 0.0, %v214
    %v216 = vpop.f32.mrb[0].mxu0
    %v217 = vpop.f32.mrb[0].mxu0
    %v218 = vadd.f32 0.0, %v217
    %v219 = vpop.f32.mrb[0].mxu0
    %220 = vmatprep.mubr.bf16.mxu0 0
    %221 = vmatmul.mubr.bf16.gmra.mrb[0].mxu0 %v172
    %v222 = vpop.f32.mrb[0].mxu0
    %v223 = vadd.f32 0.0, %v222
    %v224 = vpop.f32.mrb[0].mxu0
    %v225 = vpop.f32.mrb[0].mxu0
    %v226 = vadd.f32 0.0, %v225
    %v227 = vpop.f32.mrb[0].mxu0
    %228 = vmatprep.mubr.bf16.mxu0 0
    %229 = vmatmul.mubr.bf16.gmra.mrb[0].mxu0 %v175
    %v230 = vpop.f32.mrb[0].mxu0
    %v231 = vadd.f32 0.0, %v230
    %v232 = vpop.f32.mrb[0].mxu0
    %v233 = vpop.f32.mrb[0].mxu0
    %v234 = vadd.f32 0.0, %v233
    %v235 = vpop.f32.mrb[0].mxu0
    %236 = vmatprep.mubr.bf16.mxu0 0
    %237 = vmatmul.mubr.bf16.gmra.mrb[0].mxu0 %v178
    %v238 = vpop.f32.mrb[0].mxu0
    %v239 = vadd.f32 0.0, %v238
    %v240 = vpop.f32.mrb[0].mxu0
    %v241 = vpop.f32.mrb[0].mxu0
    %v242 = vadd.f32 0.0, %v241
    %v243 = vpop.f32.mrb[0].mxu0
    %244 = vdwg.mxu0
    %v249 = vunpack.c.l.b16 %v118
    %v250 = vunpack.c.l.b16 %v119
    %v251 = vunpack.c.l.b16 %v120
    %v252 = vunpack.c.l.b16 %v121
    %v253 = vpack.c.b16 %v250, %v249
    %v254 = vpack.c.b16 %v252, %v251
    %v258 = vsel %vm167, %v143, 0
    %v261 = vsel %vm167, %v144, 0
    %v264 = vsel %vm167, %v145, 0
    %v267 = vsel %vm167, %v146, 0
    %269 = vmatprep.subr.bf16.mxu0 0
    %270 = vmatpush1.bf16.msra.mxu0 %v253
    %271 = vmatprep.subr.bf16.mxu0 0
    %272 = vmatpush1.bf16.msra.mxu0 %v254
    %273 = vmatprep.subr.bf16.mxu0 0
    %274 = vmatpush1.bf16.msra.mxu0 0
    %275 = vmatprep.subr.bf16.mxu0 0
    %276 = vmatpush1.bf16.msra.mxu0 0
    %277 = vmatprep.subr.bf16.mxu0 0
    %278 = vmatpush1.bf16.msra.mxu0 0
    %279 = vmatprep.subr.bf16.mxu0 0
    %280 = vmatpush1.bf16.msra.mxu0 0
    %281 = vmatprep.subr.bf16.mxu0 0
    %282 = vmatpush1.bf16.msra.mxu0 0
    %283 = vmatprep.subr.bf16.mxu0 0
    %284 = vmatpush1.bf16.msra.mxu0 0
    %285 = vmatprep.subr.bf16.mxu0 0
    %286 = vmatpush1.bf16.msra.mxu0 0
    %287 = vmatprep.subr.bf16.mxu0 0
    %288 = vmatpush1.bf16.msra.mxu0 0
    %289 = vmatprep.subr.bf16.mxu0 0
    %290 = vmatpush1.bf16.msra.mxu0 0
    %291 = vmatprep.subr.bf16.mxu0 0
    %292 = vmatpush1.bf16.msra.mxu0 0
    %293 = vmatprep.subr.bf16.mxu0 0
    %294 = vmatpush1.bf16.msra.mxu0 0
    %295 = vmatprep.subr.bf16.mxu0 0
    %296 = vmatpush1.bf16.msra.mxu0 0
    %297 = vmatprep.subr.bf16.mxu0 0
    %298 = vmatpush1.bf16.msra.mxu0 0
    %299 = vmatprep.subr.bf16.mxu0 0
    %300 = vmatpush1.bf16.msra.mxu0 0
    %301 = vmatprep.mubr.bf16.mxu0 0
    %302 = vmatmul.mubr.bf16.gmra.mrb[0].mxu0 %v258
    %v303 = vpop.f32.mrb[0].mxu0
    %v304 = vadd.f32 %v215, %v303
    %v305 = vpop.f32.mrb[0].mxu0
    %v306 = vpop.f32.mrb[0].mxu0
    %v307 = vadd.f32 %v218, %v306
    %v308 = vpop.f32.mrb[0].mxu0
    %309 = vmatprep.mubr.bf16.mxu0 0
    %310 = vmatmul.mubr.bf16.gmra.mrb[0].mxu0 %v261
    %v311 = vpop.f32.mrb[0].mxu0
    %v312 = vadd.f32 %v223, %v311
    %v313 = vpop.f32.mrb[0].mxu0
    %v314 = vpop.f32.mrb[0].mxu0
    %v315 = vadd.f32 %v226, %v314
    %v316 = vpop.f32.mrb[0].mxu0
    %317 = vmatprep.mubr.bf16.mxu0 0
    %318 = vmatmul.mubr.bf16.gmra.mrb[0].mxu0 %v264
    %v319 = vpop.f32.mrb[0].mxu0
    %v320 = vadd.f32 %v231, %v319
    %v321 = vpop.f32.mrb[0].mxu0
    %v322 = vpop.f32.mrb[0].mxu0
    %v323 = vadd.f32 %v234, %v322
    %v324 = vpop.f32.mrb[0].mxu0
    %325 = vmatprep.mubr.bf16.mxu0 0
    %326 = vmatmul.mubr.bf16.gmra.mrb[0].mxu0 %v267
    %v327 = vpop.f32.mrb[0].mxu0
    %v328 = vadd.f32 %v239, %v327
    %v329 = vpop.f32.mrb[0].mxu0
    %v330 = vpop.f32.mrb[0].mxu0
    %v331 = vadd.f32 %v242, %v330
    %v332 = vpop.f32.mrb[0].mxu0
    %333 = vdwg.mxu0
    %s334 = scalar_lea.vmem [#allocation2], 32
    %v335 = vld [vmem:[%s334] sm:$0xf]
    %v336 = vld [vmem:[%s334 + $0x4] sm:$0xf]
    %v337 = vld [vmem:[%s334 + $0x8] sm:$0xf]
    %v338 = vld [vmem:[%s334 + $0xc] sm:$0xf]
    %339 = vrot.lane.b32.xlu0 %v143, 120
    %v340 = vpop.permute.xlu0 %339
    %341 = vrot.lane.b32.xlu0 %v144, 120
    %v342 = vpop.permute.xlu0 %341
    %343 = vrot.lane.b32.xlu0 %v145, 120
    %v344 = vpop.permute.xlu0 %343
    %345 = vrot.lane.b32.xlu0 %v146, 120
    %v346 = vpop.permute.xlu0 %345
    %v351 = vunpack.c.l.b16 %v335
    %v352 = vunpack.c.l.b16 %v336
    %v353 = vunpack.c.l.b16 %v337
    %v354 = vunpack.c.l.b16 %v338
    %v355 = vpack.c.b16 %v352, %v351
    %v356 = vpack.c.b16 %v354, %v353
    %v360 = vsel %vm167, %v340, 0
    %v363 = vsel %vm167, %v342, 0
    %v366 = vsel %vm167, %v344, 0
    %v369 = vsel %vm167, %v346, 0
    %371 = vmatprep.subr.bf16.mxu0 0
    %372 = vmatpush1.bf16.msra.mxu0 %v355
    %373 = vmatprep.subr.bf16.mxu0 0
    %374 = vmatpush1.bf16.msra.mxu0 %v356
    %375 = vmatprep.subr.bf16.mxu0 0
    %376 = vmatpush1.bf16.msra.mxu0 0
    %377 = vmatprep.subr.bf16.mxu0 0
    %378 = vmatpush1.bf16.msra.mxu0 0
    %379 = vmatprep.subr.bf16.mxu0 0
    %380 = vmatpush1.bf16.msra.mxu0 0
    %381 = vmatprep.subr.bf16.mxu0 0
    %382 = vmatpush1.bf16.msra.mxu0 0
    %383 = vmatprep.subr.bf16.mxu0 0
    %384 = vmatpush1.bf16.msra.mxu0 0
    %385 = vmatprep.subr.bf16.mxu0 0
    %386 = vmatpush1.bf16.msra.mxu0 0
    %387 = vmatprep.subr.bf16.mxu0 0
    %388 = vmatpush1.bf16.msra.mxu0 0
    %389 = vmatprep.subr.bf16.mxu0 0
    %390 = vmatpush1.bf16.msra.mxu0 0
    %391 = vmatprep.subr.bf16.mxu0 0
    %392 = vmatpush1.bf16.msra.mxu0 0
    %393 = vmatprep.subr.bf16.mxu0 0
    %394 = vmatpush1.bf16.msra.mxu0 0
    %395 = vmatprep.subr.bf16.mxu0 0
    %396 = vmatpush1.bf16.msra.mxu0 0
    %397 = vmatprep.subr.bf16.mxu0 0
    %398 = vmatpush1.bf16.msra.mxu0 0
    %399 = vmatprep.subr.bf16.mxu0 0
    %400 = vmatpush1.bf16.msra.mxu0 0
    %401 = vmatprep.subr.bf16.mxu0 0
    %402 = vmatpush1.bf16.msra.mxu0 0
    %403 = vmatprep.mubr.bf16.mxu0 0
    %404 = vmatmul.mubr.bf16.gmra.mrb[0].mxu0 %v360
    %v405 = vpop.f32.mrb[0].mxu0
    %v406 = vadd.f32 0.0, %v405
    %v407 = vpop.f32.mrb[0].mxu0
    %v408 = vpop.f32.mrb[0].mxu0
    %v409 = vadd.f32 0.0, %v408
    %v410 = vpop.f32.mrb[0].mxu0
    %411 = vmatprep.mubr.bf16.mxu0 0
    %412 = vmatmul.mubr.bf16.gmra.mrb[0].mxu0 %v363
    %v413 = vpop.f32.mrb[0].mxu0
    %v414 = vadd.f32 0.0, %v413
    %v415 = vpop.f32.mrb[0].mxu0
    %v416 = vpop.f32.mrb[0].mxu0
    %v417 = vadd.f32 0.0, %v416
    %v418 = vpop.f32.mrb[0].mxu0
    %419 = vmatprep.mubr.bf16.mxu0 0
    %420 = vmatmul.mubr.bf16.gmra.mrb[0].mxu0 %v366
    %v421 = vpop.f32.mrb[0].mxu0
    %v422 = vadd.f32 0.0, %v421
    %v423 = vpop.f32.mrb[0].mxu0
    %v424 = vpop.f32.mrb[0].mxu0
    %v425 = vadd.f32 0.0, %v424
    %v426 = vpop.f32.mrb[0].mxu0
    %427 = vmatprep.mubr.bf16.mxu0 0
    %428 = vmatmul.mubr.bf16.gmra.mrb[0].mxu0 %v369
    %v429 = vpop.f32.mrb[0].mxu0
    %v430 = vadd.f32 0.0, %v429
    %v431 = vpop.f32.mrb[0].mxu0
    %v432 = vpop.f32.mrb[0].mxu0
    %v433 = vadd.f32 0.0, %v432
    %v434 = vpop.f32.mrb[0].mxu0
    %435 = vdwg.mxu0
    %v436 = vadd.f32 %v304, %v406
    %v437 = vadd.f32 %v307, %v409
    %v438 = vadd.f32 %v312, %v414
    %v439 = vadd.f32 %v315, %v417
    %v440 = vadd.f32 %v320, %v422
    %v441 = vadd.f32 %v323, %v425
    %v442 = vadd.f32 %v328, %v430
    %v443 = vadd.f32 %v331, %v433
    %s444 = scalar_lea.vmem [#allocation2], 48
    %v445 = vld [vmem:[%s444] sm:$0xf]
    %v446 = vld [vmem:[%s444 + $0x4] sm:$0xf]
    %v447 = vld [vmem:[%s444 + $0x8] sm:$0xf]
    %v448 = vld [vmem:[%s444 + $0xc] sm:$0xf]
    %v450 = vunpack.c.l.b16 %v116
    %v451 = vpack.c.b16 %v137, %v136
    %v452 = vpack.c.b16 %v139, %v138
    %v453 = vpack.c.b16 %v141, %v140
    %v454 = vpack.c.b16 %v450, %v142
    %v459 = vunpack.c.l.b16 %v445
    %v460 = vunpack.c.l.b16 %v446
    %v461 = vunpack.c.l.b16 %v447
    %v462 = vunpack.c.l.b16 %v448
    %v463 = vpack.c.b16 %v460, %v459
    %v464 = vpack.c.b16 %v462, %v461
    %v468 = vsel %vm167, %v451, 0
    %v471 = vsel %vm167, %v452, 0
    %v474 = vsel %vm167, %v453, 0
    %v477 = vsel %vm167, %v454, 0
    %479 = vmatprep.subr.bf16.mxu0 0
    %480 = vmatpush1.bf16.msra.mxu0 %v463
    %481 = vmatprep.subr.bf16.mxu0 0
    %482 = vmatpush1.bf16.msra.mxu0 %v464
    %483 = vmatprep.subr.bf16.mxu0 0
    %484 = vmatpush1.bf16.msra.mxu0 0
    %485 = vmatprep.subr.bf16.mxu0 0
    %486 = vmatpush1.bf16.msra.mxu0 0
    %487 = vmatprep.subr.bf16.mxu0 0
    %488 = vmatpush1.bf16.msra.mxu0 0
    %489 = vmatprep.subr.bf16.mxu0 0
    %490 = vmatpush1.bf16.msra.mxu0 0
    %491 = vmatprep.subr.bf16.mxu0 0
    %492 = vmatpush1.bf16.msra.mxu0 0
    %493 = vmatprep.subr.bf16.mxu0 0
    %494 = vmatpush1.bf16.msra.mxu0 0
    %495 = vmatprep.subr.bf16.mxu0 0
    %496 = vmatpush1.bf16.msra.mxu0 0
    %497 = vmatprep.subr.bf16.mxu0 0
    %498 = vmatpush1.bf16.msra.mxu0 0
    %499 = vmatprep.subr.bf16.mxu0 0
    %500 = vmatpush1.bf16.msra.mxu0 0
    %501 = vmatprep.subr.bf16.mxu0 0
    %502 = vmatpush1.bf16.msra.mxu0 0
    %503 = vmatprep.subr.bf16.mxu0 0
    %504 = vmatpush1.bf16.msra.mxu0 0
    %505 = vmatprep.subr.bf16.mxu0 0
    %506 = vmatpush1.bf16.msra.mxu0 0
    %507 = vmatprep.subr.bf16.mxu0 0
    %508 = vmatpush1.bf16.msra.mxu0 0
    %509 = vmatprep.subr.bf16.mxu0 0
    %510 = vmatpush1.bf16.msra.mxu0 0
    %511 = vmatprep.mubr.bf16.mxu0 0
    %512 = vmatmul.mubr.bf16.gmra.mrb[0].mxu0 %v468
    %v513 = vpop.f32.mrb[0].mxu0
    %v514 = vadd.f32 0.0, %v513
    %v515 = vpop.f32.mrb[0].mxu0
    %v516 = vpop.f32.mrb[0].mxu0
    %v517 = vadd.f32 0.0, %v516
    %v518 = vpop.f32.mrb[0].mxu0
    %519 = vmatprep.mubr.bf16.mxu0 0
    %520 = vmatmul.mubr.bf16.gmra.mrb[0].mxu0 %v471
    %v521 = vpop.f32.mrb[0].mxu0
    %v522 = vadd.f32 0.0, %v521
    %v523 = vpop.f32.mrb[0].mxu0
    %v524 = vpop.f32.mrb[0].mxu0
    %v525 = vadd.f32 0.0, %v524
    %v526 = vpop.f32.mrb[0].mxu0
    %527 = vmatprep.mubr.bf16.mxu0 0
    %528 = vmatmul.mubr.bf16.gmra.mrb[0].mxu0 %v474
    %v529 = vpop.f32.mrb[0].mxu0
    %v530 = vadd.f32 0.0, %v529
    %v531 = vpop.f32.mrb[0].mxu0
    %v532 = vpop.f32.mrb[0].mxu0
    %v533 = vadd.f32 0.0, %v532
    %v534 = vpop.f32.mrb[0].mxu0
    %535 = vmatprep.mubr.bf16.mxu0 0
    %536 = vmatmul.mubr.bf16.gmra.mrb[0].mxu0 %v477
    %v537 = vpop.f32.mrb[0].mxu0
    %v538 = vadd.f32 0.0, %v537
    %v539 = vpop.f32.mrb[0].mxu0
    %v540 = vpop.f32.mrb[0].mxu0
    %v541 = vadd.f32 0.0, %v540
    %v542 = vpop.f32.mrb[0].mxu0
    %543 = vdwg.mxu0
    %v544 = vadd.f32 %v436, %v514
    %v545 = vadd.f32 %v437, %v517
    %v546 = vadd.f32 %v438, %v522
    %v547 = vadd.f32 %v439, %v525
    %v548 = vadd.f32 %v440, %v530
    %v549 = vadd.f32 %v441, %v533
    %v550 = vadd.f32 %v442, %v538
    %v551 = vadd.f32 %v443, %v541
    %s552 = scalar_lea.vmem [#allocation2], 64
    %v553 = vld [vmem:[%s552] sm:$0xf]
    %v554 = vld [vmem:[%s552 + $0x4] sm:$0xf]
    %v555 = vld [vmem:[%s552 + $0x8] sm:$0xf]
    %v556 = vld [vmem:[%s552 + $0xc] sm:$0xf]
    %557 = vrot.lane.b32.xlu0 %v451, 124
    %v558 = vpop.permute.xlu0 %557
    %559 = vrot.lane.b32.xlu0 %v452, 124
    %v560 = vpop.permute.xlu0 %559
    %561 = vrot.lane.b32.xlu0 %v453, 124
    %v562 = vpop.permute.xlu0 %561
    %563 = vrot.lane.b32.xlu0 %v454, 124
    %v564 = vpop.permute.xlu0 %563
    %v569 = vunpack.c.l.b16 %v553
    %v570 = vunpack.c.l.b16 %v554
    %v571 = vunpack.c.l.b16 %v555
    %v572 = vunpack.c.l.b16 %v556
    %v573 = vpack.c.b16 %v570, %v569
    %v574 = vpack.c.b16 %v572, %v571
    %v578 = vsel %vm167, %v558, 0
    %v581 = vsel %vm167, %v560, 0
    %v584 = vsel %vm167, %v562, 0
    %v587 = vsel %vm167, %v564, 0
    %589 = vmatprep.subr.bf16.mxu0 0
    %590 = vmatpush1.bf16.msra.mxu0 %v573
    %591 = vmatprep.subr.bf16.mxu0 0
    %592 = vmatpush1.bf16.msra.mxu0 %v574
    %593 = vmatprep.subr.bf16.mxu0 0
    %594 = vmatpush1.bf16.msra.mxu0 0
    %595 = vmatprep.subr.bf16.mxu0 0
    %596 = vmatpush1.bf16.msra.mxu0 0
    %597 = vmatprep.subr.bf16.mxu0 0
    %598 = vmatpush1.bf16.msra.mxu0 0
    %599 = vmatprep.subr.bf16.mxu0 0
    %600 = vmatpush1.bf16.msra.mxu0 0
    %601 = vmatprep.subr.bf16.mxu0 0
    %602 = vmatpush1.bf16.msra.mxu0 0
    %603 = vmatprep.subr.bf16.mxu0 0
    %604 = vmatpush1.bf16.msra.mxu0 0
    %605 = vmatprep.subr.bf16.mxu0 0
    %606 = vmatpush1.bf16.msra.mxu0 0
    %607 = vmatprep.subr.bf16.mxu0 0
    %608 = vmatpush1.bf16.msra.mxu0 0
    %609 = vmatprep.subr.bf16.mxu0 0
    %610 = vmatpush1.bf16.msra.mxu0 0
    %611 = vmatprep.subr.bf16.mxu0 0
    %612 = vmatpush1.bf16.msra.mxu0 0
    %613 = vmatprep.subr.bf16.mxu0 0
    %614 = vmatpush1.bf16.msra.mxu0 0
    %615 = vmatprep.subr.bf16.mxu0 0
    %616 = vmatpush1.bf16.msra.mxu0 0
    %617 = vmatprep.subr.bf16.mxu0 0
    %618 = vmatpush1.bf16.msra.mxu0 0
    %619 = vmatprep.subr.bf16.mxu0 0
    %620 = vmatpush1.bf16.msra.mxu0 0
    %621 = vmatprep.mubr.bf16.mxu0 0
    %622 = vmatmul.mubr.bf16.gmra.mrb[0].mxu0 %v578
    %v623 = vpop.f32.mrb[0].mxu0
    %v624 = vadd.f32 0.0, %v623
    %v625 = vpop.f32.mrb[0].mxu0
    %v626 = vpop.f32.mrb[0].mxu0
    %v627 = vadd.f32 0.0, %v626
    %v628 = vpop.f32.mrb[0].mxu0
    %629 = vmatprep.mubr.bf16.mxu0 0
    %630 = vmatmul.mubr.bf16.gmra.mrb[0].mxu0 %v581
    %v631 = vpop.f32.mrb[0].mxu0
    %v632 = vadd.f32 0.0, %v631
    %v633 = vpop.f32.mrb[0].mxu0
    %v634 = vpop.f32.mrb[0].mxu0
    %v635 = vadd.f32 0.0, %v634
    %v636 = vpop.f32.mrb[0].mxu0
    %637 = vmatprep.mubr.bf16.mxu0 0
    %638 = vmatmul.mubr.bf16.gmra.mrb[0].mxu0 %v584
    %v639 = vpop.f32.mrb[0].mxu0
    %v640 = vadd.f32 0.0, %v639
    %v641 = vpop.f32.mrb[0].mxu0
    %v642 = vpop.f32.mrb[0].mxu0
    %v643 = vadd.f32 0.0, %v642
    %v644 = vpop.f32.mrb[0].mxu0
    %645 = vmatprep.mubr.bf16.mxu0 0
    %646 = vmatmul.mubr.bf16.gmra.mrb[0].mxu0 %v587
    %v647 = vpop.f32.mrb[0].mxu0
    %v648 = vadd.f32 0.0, %v647
    %v649 = vpop.f32.mrb[0].mxu0
    %v650 = vpop.f32.mrb[0].mxu0
    %v651 = vadd.f32 0.0, %v650
    %v652 = vpop.f32.mrb[0].mxu0
    %653 = vdwg.mxu0
    %v654 = vadd.f32 %v544, %v624
    %v655 = vadd.f32 %v545, %v627
    %v656 = vadd.f32 %v546, %v632
    %v657 = vadd.f32 %v547, %v635
    %v658 = vadd.f32 %v548, %v640
    %v659 = vadd.f32 %v549, %v643
    %v660 = vadd.f32 %v550, %v648
    %v661 = vadd.f32 %v551, %v651
    %s662 = scalar_lea.vmem [#allocation2], 80
    %v663 = vld [vmem:[%s662] sm:$0xf]
    %v664 = vld [vmem:[%s662 + $0x4] sm:$0xf]
    %v665 = vld [vmem:[%s662 + $0x8] sm:$0xf]
    %v666 = vld [vmem:[%s662 + $0xc] sm:$0xf]
    %667 = vrot.lane.b32.xlu0 %v451, 120
    %v668 = vpop.permute.xlu0 %667
    %669 = vrot.lane.b32.xlu0 %v452, 120
    %v670 = vpop.permute.xlu0 %669
    %671 = vrot.lane.b32.xlu0 %v453, 120
    %v672 = vpop.permute.xlu0 %671
    %673 = vrot.lane.b32.xlu0 %v454, 120
    %v674 = vpop.permute.xlu0 %673
    %v679 = vunpack.c.l.b16 %v663
    %v680 = vunpack.c.l.b16 %v664
    %v681 = vunpack.c.l.b16 %v665
    %v682 = vunpack.c.l.b16 %v666
    %v683 = vpack.c.b16 %v680, %v679
    %v684 = vpack.c.b16 %v682, %v681
    %v688 = vsel %vm167, %v668, 0
    %v691 = vsel %vm167, %v670, 0
    %v694 = vsel %vm167, %v672, 0
    %v697 = vsel %vm167, %v674, 0
    %699 = vmatprep.subr.bf16.mxu0 0
    %700 = vmatpush1.bf16.msra.mxu0 %v683
    %701 = vmatprep.subr.bf16.mxu0 0
    %702 = vmatpush1.bf16.msra.mxu0 %v684
    %703 = vmatprep.subr.bf16.mxu0 0
    %704 = vmatpush1.bf16.msra.mxu0 0
    %705 = vmatprep.subr.bf16.mxu0 0
    %706 = vmatpush1.bf16.msra.mxu0 0
    %707 = vmatprep.subr.bf16.mxu0 0
    %708 = vmatpush1.bf16.msra.mxu0 0
    %709 = vmatprep.subr.bf16.mxu0 0
    %710 = vmatpush1.bf16.msra.mxu0 0
    %711 = vmatprep.subr.bf16.mxu0 0
    %712 = vmatpush1.bf16.msra.mxu0 0
    %713 = vmatprep.subr.bf16.mxu0 0
    %714 = vmatpush1.bf16.msra.mxu0 0
    %715 = vmatprep.subr.bf16.mxu0 0
    %716 = vmatpush1.bf16.msra.mxu0 0
    %717 = vmatprep.subr.bf16.mxu0 0
    %718 = vmatpush1.bf16.msra.mxu0 0
    %719 = vmatprep.subr.bf16.mxu0 0
    %720 = vmatpush1.bf16.msra.mxu0 0
    %721 = vmatprep.subr.bf16.mxu0 0
    %722 = vmatpush1.bf16.msra.mxu0 0
    %723 = vmatprep.subr.bf16.mxu0 0
    %724 = vmatpush1.bf16.msra.mxu0 0
    %725 = vmatprep.subr.bf16.mxu0 0
    %726 = vmatpush1.bf16.msra.mxu0 0
    %727 = vmatprep.subr.bf16.mxu0 0
    %728 = vmatpush1.bf16.msra.mxu0 0
    %729 = vmatprep.subr.bf16.mxu0 0
    %730 = vmatpush1.bf16.msra.mxu0 0
    %731 = vmatprep.mubr.bf16.mxu0 0
    %732 = vmatmul.mubr.bf16.gmra.mrb[0].mxu0 %v688
    %v733 = vpop.f32.mrb[0].mxu0
    %v734 = vadd.f32 0.0, %v733
    %v735 = vpop.f32.mrb[0].mxu0
    %v736 = vpop.f32.mrb[0].mxu0
    %v737 = vadd.f32 0.0, %v736
    %v738 = vpop.f32.mrb[0].mxu0
    %739 = vmatprep.mubr.bf16.mxu0 0
    %740 = vmatmul.mubr.bf16.gmra.mrb[0].mxu0 %v691
    %v741 = vpop.f32.mrb[0].mxu0
    %v742 = vadd.f32 0.0, %v741
    %v743 = vpop.f32.mrb[0].mxu0
    %v744 = vpop.f32.mrb[0].mxu0
    %v745 = vadd.f32 0.0, %v744
    %v746 = vpop.f32.mrb[0].mxu0
    %747 = vmatprep.mubr.bf16.mxu0 0
    %748 = vmatmul.mubr.bf16.gmra.mrb[0].mxu0 %v694
    %v749 = vpop.f32.mrb[0].mxu0
    %v750 = vadd.f32 0.0, %v749
    %v751 = vpop.f32.mrb[0].mxu0
    %v752 = vpop.f32.mrb[0].mxu0
    %v753 = vadd.f32 0.0, %v752
    %v754 = vpop.f32.mrb[0].mxu0
    %755 = vmatprep.mubr.bf16.mxu0 0
    %756 = vmatmul.mubr.bf16.gmra.mrb[0].mxu0 %v697
    %v757 = vpop.f32.mrb[0].mxu0
    %v758 = vadd.f32 0.0, %v757
    %v759 = vpop.f32.mrb[0].mxu0
    %v760 = vpop.f32.mrb[0].mxu0
    %v761 = vadd.f32 0.0, %v760
    %v762 = vpop.f32.mrb[0].mxu0
    %763 = vdwg.mxu0
    %v764 = vadd.f32 %v654, %v734
    %v765 = vadd.f32 %v655, %v737
    %v766 = vadd.f32 %v656, %v742
    %v767 = vadd.f32 %v657, %v745
    %v768 = vadd.f32 %v658, %v750
    %v769 = vadd.f32 %v659, %v753
    %v770 = vadd.f32 %v660, %v758
    %v771 = vadd.f32 %v661, %v761
    %s772 = scalar_lea.vmem [#allocation2], 96
    %v773 = vld [vmem:[%s772] sm:$0xf]
    %v774 = vld [vmem:[%s772 + $0x4] sm:$0xf]
    %v775 = vld [vmem:[%s772 + $0x8] sm:$0xf]
    %v776 = vld [vmem:[%s772 + $0xc] sm:$0xf]
    %v778 = vunpack.c.l.b16 %v117
    %v779 = vpack.c.b16 %v778, %v450
    %v784 = vunpack.c.l.b16 %v773
    %v785 = vunpack.c.l.b16 %v774
    %v786 = vunpack.c.l.b16 %v775
    %v787 = vunpack.c.l.b16 %v776
    %v788 = vpack.c.b16 %v785, %v784
    %v789 = vpack.c.b16 %v787, %v786
    %v793 = vsel %vm167, %v779, 0
    %795 = vmatprep.subr.bf16.mxu0 0
    %796 = vmatpush1.bf16.msra.mxu0 %v788
    %797 = vmatprep.subr.bf16.mxu0 0
    %798 = vmatpush1.bf16.msra.mxu0 %v789
    %799 = vmatprep.subr.bf16.mxu0 0
    %800 = vmatpush1.bf16.msra.mxu0 0
    %801 = vmatprep.subr.bf16.mxu0 0
    %802 = vmatpush1.bf16.msra.mxu0 0
    %803 = vmatprep.subr.bf16.mxu0 0
    %804 = vmatpush1.bf16.msra.mxu0 0
    %805 = vmatprep.subr.bf16.mxu0 0
    %806 = vmatpush1.bf16.msra.mxu0 0
    %807 = vmatprep.subr.bf16.mxu0 0
    %808 = vmatpush1.bf16.msra.mxu0 0
    %809 = vmatprep.subr.bf16.mxu0 0
    %810 = vmatpush1.bf16.msra.mxu0 0
    %811 = vmatprep.subr.bf16.mxu0 0
    %812 = vmatpush1.bf16.msra.mxu0 0
    %813 = vmatprep.subr.bf16.mxu0 0
    %814 = vmatpush1.bf16.msra.mxu0 0
    %815 = vmatprep.subr.bf16.mxu0 0
    %816 = vmatpush1.bf16.msra.mxu0 0
    %817 = vmatprep.subr.bf16.mxu0 0
    %818 = vmatpush1.bf16.msra.mxu0 0
    %819 = vmatprep.subr.bf16.mxu0 0
    %820 = vmatpush1.bf16.msra.mxu0 0
    %821 = vmatprep.subr.bf16.mxu0 0
    %822 = vmatpush1.bf16.msra.mxu0 0
    %823 = vmatprep.subr.bf16.mxu0 0
    %824 = vmatpush1.bf16.msra.mxu0 0
    %825 = vmatprep.subr.bf16.mxu0 0
    %826 = vmatpush1.bf16.msra.mxu0 0
    %827 = vmatprep.mubr.bf16.mxu0 0
    %828 = vmatmul.mubr.bf16.gmra.mrb[0].mxu0 %v261
    %v829 = vpop.f32.mrb[0].mxu0
    %v830 = vadd.f32 0.0, %v829
    %v831 = vpop.f32.mrb[0].mxu0
    %v832 = vpop.f32.mrb[0].mxu0
    %v833 = vadd.f32 0.0, %v832
    %v834 = vpop.f32.mrb[0].mxu0
    %835 = vmatprep.mubr.bf16.mxu0 0
    %836 = vmatmul.mubr.bf16.gmra.mrb[0].mxu0 %v264
    %v837 = vpop.f32.mrb[0].mxu0
    %v838 = vadd.f32 0.0, %v837
    %v839 = vpop.f32.mrb[0].mxu0
    %v840 = vpop.f32.mrb[0].mxu0
    %v841 = vadd.f32 0.0, %v840
    %v842 = vpop.f32.mrb[0].mxu0
    %843 = vmatprep.mubr.bf16.mxu0 0
    %844 = vmatmul.mubr.bf16.gmra.mrb[0].mxu0 %v267
    %v845 = vpop.f32.mrb[0].mxu0
    %v846 = vadd.f32 0.0, %v845
    %v847 = vpop.f32.mrb[0].mxu0
    %v848 = vpop.f32.mrb[0].mxu0
    %v849 = vadd.f32 0.0, %v848
    %v850 = vpop.f32.mrb[0].mxu0
    %851 = vmatprep.mubr.bf16.mxu0 0
    %852 = vmatmul.mubr.bf16.gmra.mrb[0].mxu0 %v793
    %v853 = vpop.f32.mrb[0].mxu0
    %v854 = vadd.f32 0.0, %v853
    %v855 = vpop.f32.mrb[0].mxu0
    %v856 = vpop.f32.mrb[0].mxu0
    %v857 = vadd.f32 0.0, %v856
    %v858 = vpop.f32.mrb[0].mxu0
    %859 = vdwg.mxu0
    %v860 = vadd.f32 %v764, %v830
    %v861 = vadd.f32 %v765, %v833
    %v862 = vadd.f32 %v766, %v838
    %v863 = vadd.f32 %v767, %v841
    %v864 = vadd.f32 %v768, %v846
    %v865 = vadd.f32 %v769, %v849
    %v866 = vadd.f32 %v770, %v854
    %v867 = vadd.f32 %v771, %v857
    %s868 = scalar_lea.vmem [#allocation2], 112
    %v869 = vld [vmem:[%s868] sm:$0xf]
    %v870 = vld [vmem:[%s868 + $0x4] sm:$0xf]
    %v871 = vld [vmem:[%s868 + $0x8] sm:$0xf]
    %v872 = vld [vmem:[%s868 + $0xc] sm:$0xf]
    %873 = vrot.lane.b32.xlu0 %v779, 124
    %v874 = vpop.permute.xlu0 %873
    %v879 = vunpack.c.l.b16 %v869
    %v880 = vunpack.c.l.b16 %v870
    %v881 = vunpack.c.l.b16 %v871
    %v882 = vunpack.c.l.b16 %v872
    %v883 = vpack.c.b16 %v880, %v879
    %v884 = vpack.c.b16 %v882, %v881
    %v888 = vsel %vm167, %v874, 0
    %890 = vmatprep.subr.bf16.mxu0 0
    %891 = vmatpush1.bf16.msra.mxu0 %v883
    %892 = vmatprep.subr.bf16.mxu0 0
    %893 = vmatpush1.bf16.msra.mxu0 %v884
    %894 = vmatprep.subr.bf16.mxu0 0
    %895 = vmatpush1.bf16.msra.mxu0 0
    %896 = vmatprep.subr.bf16.mxu0 0
    %897 = vmatpush1.bf16.msra.mxu0 0
    %898 = vmatprep.subr.bf16.mxu0 0
    %899 = vmatpush1.bf16.msra.mxu0 0
    %900 = vmatprep.subr.bf16.mxu0 0
    %901 = vmatpush1.bf16.msra.mxu0 0
    %902 = vmatprep.subr.bf16.mxu0 0
    %903 = vmatpush1.bf16.msra.mxu0 0
    %904 = vmatprep.subr.bf16.mxu0 0
    %905 = vmatpush1.bf16.msra.mxu0 0
    %906 = vmatprep.subr.bf16.mxu0 0
    %907 = vmatpush1.bf16.msra.mxu0 0
    %908 = vmatprep.subr.bf16.mxu0 0
    %909 = vmatpush1.bf16.msra.mxu0 0
    %910 = vmatprep.subr.bf16.mxu0 0
    %911 = vmatpush1.bf16.msra.mxu0 0
    %912 = vmatprep.subr.bf16.mxu0 0
    %913 = vmatpush1.bf16.msra.mxu0 0
    %914 = vmatprep.subr.bf16.mxu0 0
    %915 = vmatpush1.bf16.msra.mxu0 0
    %916 = vmatprep.subr.bf16.mxu0 0
    %917 = vmatpush1.bf16.msra.mxu0 0
    %918 = vmatprep.subr.bf16.mxu0 0
    %919 = vmatpush1.bf16.msra.mxu0 0
    %920 = vmatprep.subr.bf16.mxu0 0
    %921 = vmatpush1.bf16.msra.mxu0 0
    %922 = vmatprep.mubr.bf16.mxu0 0
    %923 = vmatmul.mubr.bf16.gmra.mrb[0].mxu0 %v172
    %v924 = vpop.f32.mrb[0].mxu0
    %v925 = vadd.f32 0.0, %v924
    %v926 = vpop.f32.mrb[0].mxu0
    %v927 = vpop.f32.mrb[0].mxu0
    %v928 = vadd.f32 0.0, %v927
    %v929 = vpop.f32.mrb[0].mxu0
    %930 = vmatprep.mubr.bf16.mxu0 0
    %931 = vmatmul.mubr.bf16.gmra.mrb[0].mxu0 %v175
    %v932 = vpop.f32.mrb[0].mxu0
    %v933 = vadd.f32 0.0, %v932
    %v934 = vpop.f32.mrb[0].mxu0
    %v935 = vpop.f32.mrb[0].mxu0
    %v936 = vadd.f32 0.0, %v935
    %v937 = vpop.f32.mrb[0].mxu0
    %938 = vmatprep.mubr.bf16.mxu0 0
    %939 = vmatmul.mubr.bf16.gmra.mrb[0].mxu0 %v178
    %v940 = vpop.f32.mrb[0].mxu0
    %v941 = vadd.f32 0.0, %v940
    %v942 = vpop.f32.mrb[0].mxu0
    %v943 = vpop.f32.mrb[0].mxu0
    %v944 = vadd.f32 0.0, %v943
    %v945 = vpop.f32.mrb[0].mxu0
    %946 = vmatprep.mubr.bf16.mxu0 0
    %947 = vmatmul.mubr.bf16.gmra.mrb[0].mxu0 %v888
    %v948 = vpop.f32.mrb[0].mxu0
    %v949 = vadd.f32 0.0, %v948
    %v950 = vpop.f32.mrb[0].mxu0
    %v951 = vpop.f32.mrb[0].mxu0
    %v952 = vadd.f32 0.0, %v951
    %v953 = vpop.f32.mrb[0].mxu0
    %954 = vdwg.mxu0
    %v955 = vadd.f32 %v860, %v925
    %v956 = vadd.f32 %v861, %v928
    %v957 = vadd.f32 %v862, %v933
    %v958 = vadd.f32 %v863, %v936
    %v959 = vadd.f32 %v864, %v941
    %v960 = vadd.f32 %v865, %v944
    %v961 = vadd.f32 %v866, %v949
    %v962 = vadd.f32 %v867, %v952
    %s963 = scalar_lea.vmem [#allocation2], 128
    %v964 = vld [vmem:[%s963] sm:$0xf]
    %v965 = vld [vmem:[%s963 + $0x4] sm:$0xf]
    %v966 = vld [vmem:[%s963 + $0x8] sm:$0xf]
    %v967 = vld [vmem:[%s963 + $0xc] sm:$0xf]
    %968 = vrot.lane.b32.xlu0 %v779, 120
    %v969 = vpop.permute.xlu0 %968
    %v974 = vunpack.c.l.b16 %v964
    %v975 = vunpack.c.l.b16 %v965
    %v976 = vunpack.c.l.b16 %v966
    %v977 = vunpack.c.l.b16 %v967
    %v978 = vpack.c.b16 %v975, %v974
    %v979 = vpack.c.b16 %v977, %v976
    %v983 = vsel %vm167, %v969, 0
    %985 = vmatprep.subr.bf16.mxu0 0
    %986 = vmatpush1.bf16.msra.mxu0 %v978
    %987 = vmatprep.subr.bf16.mxu0 0
    %988 = vmatpush1.bf16.msra.mxu0 %v979
    %989 = vmatprep.subr.bf16.mxu0 0
    %990 = vmatpush1.bf16.msra.mxu0 0
    %991 = vmatprep.subr.bf16.mxu0 0
    %992 = vmatpush1.bf16.msra.mxu0 0
    %993 = vmatprep.subr.bf16.mxu0 0
    %994 = vmatpush1.bf16.msra.mxu0 0
    %995 = vmatprep.subr.bf16.mxu0 0
    %996 = vmatpush1.bf16.msra.mxu0 0
    %997 = vmatprep.subr.bf16.mxu0 0
    %998 = vmatpush1.bf16.msra.mxu0 0
    %999 = vmatprep.subr.bf16.mxu0 0
    %1000 = vmatpush1.bf16.msra.mxu0 0
    %1001 = vmatprep.subr.bf16.mxu0 0
    %1002 = vmatpush1.bf16.msra.mxu0 0
    %1003 = vmatprep.subr.bf16.mxu0 0
    %1004 = vmatpush1.bf16.msra.mxu0 0
    %1005 = vmatprep.subr.bf16.mxu0 0
    %1006 = vmatpush1.bf16.msra.mxu0 0
    %1007 = vmatprep.subr.bf16.mxu0 0
    %1008 = vmatpush1.bf16.msra.mxu0 0
    %1009 = vmatprep.subr.bf16.mxu0 0
    %1010 = vmatpush1.bf16.msra.mxu0 0
    %1011 = vmatprep.subr.bf16.mxu0 0
    %1012 = vmatpush1.bf16.msra.mxu0 0
    %1013 = vmatprep.subr.bf16.mxu0 0
    %1014 = vmatpush1.bf16.msra.mxu0 0
    %1015 = vmatprep.subr.bf16.mxu0 0
    %1016 = vmatpush1.bf16.msra.mxu0 0
    %1017 = vmatprep.mubr.bf16.mxu0 0
    %1018 = vmatmul.mubr.bf16.gmra.mrb[0].mxu0 %v363
    %v1019 = vpop.f32.mrb[0].mxu0
    %v1020 = vadd.f32 0.0, %v1019
    %v1021 = vpop.f32.mrb[0].mxu0
    %v1022 = vpop.f32.mrb[0].mxu0
    %v1023 = vadd.f32 0.0, %v1022
    %v1024 = vpop.f32.mrb[0].mxu0
    %1025 = vmatprep.mubr.bf16.mxu0 0
    %1026 = vmatmul.mubr.bf16.gmra.mrb[0].mxu0 %v366
    %v1027 = vpop.f32.mrb[0].mxu0
    %v1028 = vadd.f32 0.0, %v1027
    %v1029 = vpop.f32.mrb[0].mxu0
    %v1030 = vpop.f32.mrb[0].mxu0
    %v1031 = vadd.f32 0.0, %v1030
    %v1032 = vpop.f32.mrb[0].mxu0
    %1033 = vmatprep.mubr.bf16.mxu0 0
    %1034 = vmatmul.mubr.bf16.gmra.mrb[0].mxu0 %v369
    %v1035 = vpop.f32.mrb[0].mxu0
    %v1036 = vadd.f32 0.0, %v1035
    %v1037 = vpop.f32.mrb[0].mxu0
    %v1038 = vpop.f32.mrb[0].mxu0
    %v1039 = vadd.f32 0.0, %v1038
    %v1040 = vpop.f32.mrb[0].mxu0
    %1041 = vmatprep.mubr.bf16.mxu0 0
    %1042 = vmatmul.mubr.bf16.gmra.mrb[0].mxu0 %v983
    %v1043 = vpop.f32.mrb[0].mxu0
    %v1044 = vadd.f32 0.0, %v1043
    %v1045 = vpop.f32.mrb[0].mxu0
    %v1046 = vpop.f32.mrb[0].mxu0
    %v1047 = vadd.f32 0.0, %v1046
    %v1048 = vpop.f32.mrb[0].mxu0
    %1049 = vdwg.mxu0
    %v1050 = vadd.f32 %v955, %v1020
    %v1051 = vadd.f32 %v956, %v1023
    %v1052 = vadd.f32 %v957, %v1028
    %v1053 = vadd.f32 %v958, %v1031
    %v1054 = vadd.f32 %v959, %v1036
    %v1055 = vadd.f32 %v960, %v1039
    %v1056 = vadd.f32 %v961, %v1044
    %v1057 = vadd.f32 %v962, %v1047
    %v1058 = vld [vmem:[%s2] sm:$0x1]
    %v1060 = vlaneseq
    %v1061 = vshrl.u32 %v1060, 7
    %v1062 = vsub.s32 0, %v1061
    %v1063 = vrot.slane %v1058, %v1062
    %v1065 = vadd.f32 %v1050, %v1063
    %v1066 = vadd.f32 %v1051, %v1063
    %v1067 = vadd.f32 %v1052, %v1063
    %v1068 = vadd.f32 %v1053, %v1063
    %v1069 = vadd.f32 %v1054, %v1063
    %v1070 = vadd.f32 %v1055, %v1063
    %v1071 = vadd.f32 %v1056, %v1063
    %v1072 = vadd.f32 %v1057, %v1063
    %v1073 = vmax.f32 %v1065, 0.0
    %v1074 = vmax.f32 %v1066, 0.0
    %v1075 = vmax.f32 %v1067, 0.0
    %v1076 = vmax.f32 %v1068, 0.0
    %v1077 = vmax.f32 %v1069, 0.0
    %v1078 = vmax.f32 %v1070, 0.0
    %v1079 = vmax.f32 %v1071, 0.0
    %v1080 = vmax.f32 %v1072, 0.0
    %v1081 = vpack.c.bf16 %v1074, %v1073
    %v1082 = vpack.c.bf16 %v1076, %v1075
    %v1083 = vpack.c.bf16 %v1078, %v1077
    %v1084 = vpack.c.bf16 %v1080, %v1079
    %v1085 = vld [vmem:[#allocation5] sm:$0xff]
    %v1086 = vld [vmem:[#allocation5 + $0x8] sm:$0xff]
    %v1087 = vld [vmem:[#allocation5 + $0x10] sm:$0xff]
    %v1088 = vld [vmem:[#allocation5 + $0x18] sm:$0xff]
    %v1089 = vld [vmem:[#allocation5 + $0x20] sm:$0xff]
    %v1090 = vld [vmem:[#allocation5 + $0x28] sm:$0xff]
    %v1091 = vld [vmem:[#allocation5 + $0x30] sm:$0xff]
    %v1092 = vld [vmem:[#allocation5 + $0x38] sm:$0xff]
    %v1093 = vld [vmem:[#allocation5 + $0x40] sm:$0xff]
    %v1094 = vld [vmem:[#allocation5 + $0x48] sm:$0xff]
    %v1095 = vld [vmem:[#allocation5 + $0x50] sm:$0xff]
    %v1096 = vld [vmem:[#allocation5 + $0x58] sm:$0xff]
    %s1097 = scalar_lea.vmem [#allocation5], 96
    %v1098 = vld [vmem:[%s1097] sm:$0xff]
    %v1099 = vld [vmem:[%s1097 + $0x8] sm:$0xff]
    %v1100 = vld [vmem:[%s1097 + $0x10] sm:$0xff]
    %v1101 = vld [vmem:[%s1097 + $0x18] sm:$0xff]
    %v1102 = vld [vmem:[%s1097 + $0x20] sm:$0xff]
    %v1103 = vld [vmem:[%s1097 + $0x28] sm:$0xff]
    %v1104 = vld [vmem:[%s1097 + $0x30] sm:$0xff]
    %v1105 = vld [vmem:[%s1097 + $0x38] sm:$0xff]
    %v1106 = vld [vmem:[%s1097 + $0x40] sm:$0xff]
    %v1107 = vld [vmem:[%s1097 + $0x48] sm:$0xff]
    %v1108 = vld [vmem:[%s1097 + $0x50] sm:$0xff]
    %v1109 = vld [vmem:[%s1097 + $0x58] sm:$0xff]
    %1113 = vrot.lane.b32.xlu0 %v1081, 112
    %v1114 = vpop.permute.xlu0 %1113
    %1115 = vrot.lane.b32.xlu0 %v1082, 112
    %v1116 = vpop.permute.xlu0 %1115
    %1117 = vrot.lane.b32.xlu0 %v1083, 112
    %v1118 = vpop.permute.xlu0 %1117
    %v1131 = vunpack.c.l.b16 %v1098
    %v1132 = vunpack.c.h.b16 %v1098
    %v1133 = vunpack.c.l.b16 %v1099
    %v1134 = vunpack.c.h.b16 %v1099
    %v1135 = vunpack.c.l.b16 %v1100
    %v1136 = vunpack.c.h.b16 %v1100
    %v1137 = vunpack.c.l.b16 %v1101
    %v1138 = vunpack.c.h.b16 %v1101
    %v1139 = vunpack.c.l.b16 %v1102
    %v1140 = vunpack.c.h.b16 %v1102
    %v1141 = vunpack.c.l.b16 %v1103
    %v1142 = vunpack.c.h.b16 %v1103
    %v1143 = vunpack.c.l.b16 %v1104
    %v1144 = vunpack.c.h.b16 %v1104
    %v1145 = vunpack.c.l.b16 %v1105
    %v1146 = vunpack.c.h.b16 %v1105
    %v1147 = vunpack.c.l.b16 %v1106
    %v1148 = vunpack.c.h.b16 %v1106
    %v1149 = vunpack.c.l.b16 %v1107
    %v1150 = vunpack.c.h.b16 %v1107
    %v1151 = vunpack.c.l.b16 %v1108
    %v1152 = vunpack.c.h.b16 %v1108
    %v1153 = vunpack.c.l.b16 %v1109
    %v1154 = vunpack.c.h.b16 %v1109
    %v1155 = vpack.c.b16 %v1133, %v1131
    %v1156 = vpack.c.b16 %v1134, %v1132
    %v1157 = vpack.c.b16 %v1137, %v1135
    %v1158 = vpack.c.b16 %v1138, %v1136
    %v1159 = vpack.c.b16 %v1141, %v1139
    %v1160 = vpack.c.b16 %v1142, %v1140
    %v1161 = vpack.c.b16 %v1145, %v1143
    %v1162 = vpack.c.b16 %v1146, %v1144
    %v1163 = vpack.c.b16 %v1149, %v1147
    %v1164 = vpack.c.b16 %v1150, %v1148
    %v1165 = vpack.c.b16 %v1153, %v1151
    %v1166 = vpack.c.b16 %v1154, %v1152
    %vm1179 = vcmask 785408
    %v1181 = vsel %vm1179, %v1114, 0
    %v1184 = vsel %vm1179, %v1116, 0
    %v1187 = vsel %vm1179, %v1118, 0
    %1189 = vmatprep.subr.bf16.mxu0 %v1156
    %1190 = vmatpush1.bf16.msra.mxu0 %v1155
    %1191 = vmatprep.subr.bf16.mxu0 %v1158
    %1192 = vmatpush1.bf16.msra.mxu0 %v1157
    %1193 = vmatprep.subr.bf16.mxu0 %v1160
    %1194 = vmatpush1.bf16.msra.mxu0 %v1159
    %1195 = vmatprep.subr.bf16.mxu0 %v1162
    %1196 = vmatpush1.bf16.msra.mxu0 %v1161
    %1197 = vmatprep.subr.bf16.mxu0 %v1164
    %1198 = vmatpush1.bf16.msra.mxu0 %v1163
    %1199 = vmatprep.subr.bf16.mxu0 %v1166
    %1200 = vmatpush1.bf16.msra.mxu0 %v1165
    %1201 = vmatprep.subr.bf16.mxu0 0
    %1202 = vmatpush1.bf16.msra.mxu0 0
    %1203 = vmatprep.subr.bf16.mxu0 0
    %1204 = vmatpush1.bf16.msra.mxu0 0
    %1205 = vmatprep.subr.bf16.mxu0 0
    %1206 = vmatpush1.bf16.msra.mxu0 0
    %1207 = vmatprep.subr.bf16.mxu0 0
    %1208 = vmatpush1.bf16.msra.mxu0 0
    %1209 = vmatprep.subr.bf16.mxu0 0
    %1210 = vmatpush1.bf16.msra.mxu0 0
    %1211 = vmatprep.subr.bf16.mxu0 0
    %1212 = vmatpush1.bf16.msra.mxu0 0
    %1213 = vmatprep.subr.bf16.mxu0 0
    %1214 = vmatpush1.bf16.msra.mxu0 0
    %1215 = vmatprep.subr.bf16.mxu0 0
    %1216 = vmatpush1.bf16.msra.mxu0 0
    %1217 = vmatprep.subr.bf16.mxu0 0
    %1218 = vmatpush1.bf16.msra.mxu0 0
    %1219 = vmatprep.subr.bf16.mxu0 0
    %1220 = vmatpush1.bf16.msra.mxu0 0
    %1221 = vmatprep.mubr.bf16.mxu0 0
    %1222 = vmatmul.mubr.bf16.gmra.mrb[0].mxu0 %v1181
    %v1223 = vpop.f32.mrb[0].mxu0
    %v1224 = vadd.f32 0.0, %v1223
    %v1225 = vpop.f32.mrb[0].mxu0
    %v1226 = vadd.f32 0.0, %v1225
    %v1227 = vpop.f32.mrb[0].mxu0
    %v1228 = vadd.f32 0.0, %v1227
    %v1229 = vpop.f32.mrb[0].mxu0
    %v1230 = vadd.f32 0.0, %v1229
    %1231 = vmatprep.mubr.bf16.mxu0 0
    %1232 = vmatmul.mubr.bf16.gmra.mrb[0].mxu0 %v1184
    %v1233 = vpop.f32.mrb[0].mxu0
    %v1234 = vadd.f32 0.0, %v1233
    %v1235 = vpop.f32.mrb[0].mxu0
    %v1236 = vadd.f32 0.0, %v1235
    %v1237 = vpop.f32.mrb[0].mxu0
    %v1238 = vadd.f32 0.0, %v1237
    %v1239 = vpop.f32.mrb[0].mxu0
    %v1240 = vadd.f32 0.0, %v1239
    %1241 = vmatprep.mubr.bf16.mxu0 0
    %1242 = vmatmul.mubr.bf16.gmra.mrb[0].mxu0 %v1187
    %v1243 = vpop.f32.mrb[0].mxu0
    %v1244 = vadd.f32 0.0, %v1243
    %v1245 = vpop.f32.mrb[0].mxu0
    %v1246 = vadd.f32 0.0, %v1245
    %v1247 = vpop.f32.mrb[0].mxu0
    %v1248 = vadd.f32 0.0, %v1247
    %v1249 = vpop.f32.mrb[0].mxu0
    %v1250 = vadd.f32 0.0, %v1249
    %1251 = vdwg.mxu0
    %v1264 = vunpack.c.l.b16 %v1085
    %v1265 = vunpack.c.h.b16 %v1085
    %v1266 = vunpack.c.l.b16 %v1086
    %v1267 = vunpack.c.h.b16 %v1086
    %v1268 = vunpack.c.l.b16 %v1087
    %v1269 = vunpack.c.h.b16 %v1087
    %v1270 = vunpack.c.l.b16 %v1088
    %v1271 = vunpack.c.h.b16 %v1088
    %v1272 = vunpack.c.l.b16 %v1089
    %v1273 = vunpack.c.h.b16 %v1089
    %v1274 = vunpack.c.l.b16 %v1090
    %v1275 = vunpack.c.h.b16 %v1090
    %v1276 = vunpack.c.l.b16 %v1091
    %v1277 = vunpack.c.h.b16 %v1091
    %v1278 = vunpack.c.l.b16 %v1092
    %v1279 = vunpack.c.h.b16 %v1092
    %v1280 = vunpack.c.l.b16 %v1093
    %v1281 = vunpack.c.h.b16 %v1093
    %v1282 = vunpack.c.l.b16 %v1094
    %v1283 = vunpack.c.h.b16 %v1094
    %v1284 = vunpack.c.l.b16 %v1095
    %v1285 = vunpack.c.h.b16 %v1095
    %v1286 = vunpack.c.l.b16 %v1096
    %v1287 = vunpack.c.h.b16 %v1096
    %v1288 = vpack.c.b16 %v1266, %v1264
    %v1289 = vpack.c.b16 %v1267, %v1265
    %v1290 = vpack.c.b16 %v1270, %v1268
    %v1291 = vpack.c.b16 %v1271, %v1269
    %v1292 = vpack.c.b16 %v1274, %v1272
    %v1293 = vpack.c.b16 %v1275, %v1273
    %v1294 = vpack.c.b16 %v1278, %v1276
    %v1295 = vpack.c.b16 %v1279, %v1277
    %v1296 = vpack.c.b16 %v1282, %v1280
    %v1297 = vpack.c.b16 %v1283, %v1281
    %v1298 = vpack.c.b16 %v1286, %v1284
    %v1299 = vpack.c.b16 %v1287, %v1285
    %v1313 = vsel %vm1179, %v1081, 0
    %v1316 = vsel %vm1179, %v1082, 0
    %v1319 = vsel %vm1179, %v1083, 0
    %1321 = vmatprep.subr.bf16.mxu0 %v1289
    %1322 = vmatpush1.bf16.msra.mxu0 %v1288
    %1323 = vmatprep.subr.bf16.mxu0 %v1291
    %1324 = vmatpush1.bf16.msra.mxu0 %v1290
    %1325 = vmatprep.subr.bf16.mxu0 %v1293
    %1326 = vmatpush1.bf16.msra.mxu0 %v1292
    %1327 = vmatprep.subr.bf16.mxu0 %v1295
    %1328 = vmatpush1.bf16.msra.mxu0 %v1294
    %1329 = vmatprep.subr.bf16.mxu0 %v1297
    %1330 = vmatpush1.bf16.msra.mxu0 %v1296
    %1331 = vmatprep.subr.bf16.mxu0 %v1299
    %1332 = vmatpush1.bf16.msra.mxu0 %v1298
    %1333 = vmatprep.subr.bf16.mxu0 0
    %1334 = vmatpush1.bf16.msra.mxu0 0
    %1335 = vmatprep.subr.bf16.mxu0 0
    %1336 = vmatpush1.bf16.msra.mxu0 0
    %1337 = vmatprep.subr.bf16.mxu0 0
    %1338 = vmatpush1.bf16.msra.mxu0 0
    %1339 = vmatprep.subr.bf16.mxu0 0
    %1340 = vmatpush1.bf16.msra.mxu0 0
    %1341 = vmatprep.subr.bf16.mxu0 0
    %1342 = vmatpush1.bf16.msra.mxu0 0
    %1343 = vmatprep.subr.bf16.mxu0 0
    %1344 = vmatpush1.bf16.msra.mxu0 0
    %1345 = vmatprep.subr.bf16.mxu0 0
    %1346 = vmatpush1.bf16.msra.mxu0 0
    %1347 = vmatprep.subr.bf16.mxu0 0
    %1348 = vmatpush1.bf16.msra.mxu0 0
    %1349 = vmatprep.subr.bf16.mxu0 0
    %1350 = vmatpush1.bf16.msra.mxu0 0
    %1351 = vmatprep.subr.bf16.mxu0 0
    %1352 = vmatpush1.bf16.msra.mxu0 0
    %1353 = vmatprep.mubr.bf16.mxu0 0
    %1354 = vmatmul.mubr.bf16.gmra.mrb[0].mxu0 %v1313
    %v1355 = vpop.f32.mrb[0].mxu0
    %v1356 = vadd.f32 %v1224, %v1355
    %v1357 = vpop.f32.mrb[0].mxu0
    %v1358 = vadd.f32 %v1226, %v1357
    %v1359 = vpop.f32.mrb[0].mxu0
    %v1360 = vadd.f32 %v1228, %v1359
    %v1361 = vpop.f32.mrb[0].mxu0
    %v1362 = vadd.f32 %v1230, %v1361
    %1363 = vmatprep.mubr.bf16.mxu0 0
    %1364 = vmatmul.mubr.bf16.gmra.mrb[0].mxu0 %v1316
    %v1365 = vpop.f32.mrb[0].mxu0
    %v1366 = vadd.f32 %v1234, %v1365
    %v1367 = vpop.f32.mrb[0].mxu0
    %v1368 = vadd.f32 %v1236, %v1367
    %v1369 = vpop.f32.mrb[0].mxu0
    %v1370 = vadd.f32 %v1238, %v1369
    %v1371 = vpop.f32.mrb[0].mxu0
    %v1372 = vadd.f32 %v1240, %v1371
    %1373 = vmatprep.mubr.bf16.mxu0 0
    %1374 = vmatmul.mubr.bf16.gmra.mrb[0].mxu0 %v1319
    %v1375 = vpop.f32.mrb[0].mxu0
    %v1376 = vadd.f32 %v1244, %v1375
    %v1377 = vpop.f32.mrb[0].mxu0
    %v1378 = vadd.f32 %v1246, %v1377
    %v1379 = vpop.f32.mrb[0].mxu0
    %v1380 = vadd.f32 %v1248, %v1379
    %v1381 = vpop.f32.mrb[0].mxu0
    %v1382 = vadd.f32 %v1250, %v1381
    %1383 = vdwg.mxu0
    %s1384 = scalar_lea.vmem [#allocation5], 192
    %v1385 = vld [vmem:[%s1384] sm:$0xff]
    %v1386 = vld [vmem:[%s1384 + $0x8] sm:$0xff]
    %v1387 = vld [vmem:[%s1384 + $0x10] sm:$0xff]
    %v1388 = vld [vmem:[%s1384 + $0x18] sm:$0xff]
    %v1389 = vld [vmem:[%s1384 + $0x20] sm:$0xff]
    %v1390 = vld [vmem:[%s1384 + $0x28] sm:$0xff]
    %v1391 = vld [vmem:[%s1384 + $0x30] sm:$0xff]
    %v1392 = vld [vmem:[%s1384 + $0x38] sm:$0xff]
    %v1393 = vld [vmem:[%s1384 + $0x40] sm:$0xff]
    %v1394 = vld [vmem:[%s1384 + $0x48] sm:$0xff]
    %v1395 = vld [vmem:[%s1384 + $0x50] sm:$0xff]
    %v1396 = vld [vmem:[%s1384 + $0x58] sm:$0xff]
    %1397 = vrot.lane.b32.xlu0 %v1081, 96
    %v1398 = vpop.permute.xlu0 %1397
    %1399 = vrot.lane.b32.xlu0 %v1082, 96
    %v1400 = vpop.permute.xlu0 %1399
    %1401 = vrot.lane.b32.xlu0 %v1083, 96
    %v1402 = vpop.permute.xlu0 %1401
    %v1415 = vunpack.c.l.b16 %v1385
    %v1416 = vunpack.c.h.b16 %v1385
    %v1417 = vunpack.c.l.b16 %v1386
    %v1418 = vunpack.c.h.b16 %v1386
    %v1419 = vunpack.c.l.b16 %v1387
    %v1420 = vunpack.c.h.b16 %v1387
    %v1421 = vunpack.c.l.b16 %v1388
    %v1422 = vunpack.c.h.b16 %v1388
    %v1423 = vunpack.c.l.b16 %v1389
    %v1424 = vunpack.c.h.b16 %v1389
    %v1425 = vunpack.c.l.b16 %v1390
    %v1426 = vunpack.c.h.b16 %v1390
    %v1427 = vunpack.c.l.b16 %v1391
    %v1428 = vunpack.c.h.b16 %v1391
    %v1429 = vunpack.c.l.b16 %v1392
    %v1430 = vunpack.c.h.b16 %v1392
    %v1431 = vunpack.c.l.b16 %v1393
    %v1432 = vunpack.c.h.b16 %v1393
    %v1433 = vunpack.c.l.b16 %v1394
    %v1434 = vunpack.c.h.b16 %v1394
    %v1435 = vunpack.c.l.b16 %v1395
    %v1436 = vunpack.c.h.b16 %v1395
    %v1437 = vunpack.c.l.b16 %v1396
    %v1438 = vunpack.c.h.b16 %v1396
    %v1439 = vpack.c.b16 %v1417, %v1415
    %v1440 = vpack.c.b16 %v1418, %v1416
    %v1441 = vpack.c.b16 %v1421, %v1419
    %v1442 = vpack.c.b16 %v1422, %v1420
    %v1443 = vpack.c.b16 %v1425, %v1423
    %v1444 = vpack.c.b16 %v1426, %v1424
    %v1445 = vpack.c.b16 %v1429, %v1427
    %v1446 = vpack.c.b16 %v1430, %v1428
    %v1447 = vpack.c.b16 %v1433, %v1431
    %v1448 = vpack.c.b16 %v1434, %v1432
    %v1449 = vpack.c.b16 %v1437, %v1435
    %v1450 = vpack.c.b16 %v1438, %v1436
    %v1464 = vsel %vm1179, %v1398, 0
    %v1467 = vsel %vm1179, %v1400, 0
    %v1470 = vsel %vm1179, %v1402, 0
    %1472 = vmatprep.subr.bf16.mxu0 %v1440
    %1473 = vmatpush1.bf16.msra.mxu0 %v1439
    %1474 = vmatprep.subr.bf16.mxu0 %v1442
    %1475 = vmatpush1.bf16.msra.mxu0 %v1441
    %1476 = vmatprep.subr.bf16.mxu0 %v1444
    %1477 = vmatpush1.bf16.msra.mxu0 %v1443
    %1478 = vmatprep.subr.bf16.mxu0 %v1446
    %1479 = vmatpush1.bf16.msra.mxu0 %v1445
    %1480 = vmatprep.subr.bf16.mxu0 %v1448
    %1481 = vmatpush1.bf16.msra.mxu0 %v1447
    %1482 = vmatprep.subr.bf16.mxu0 %v1450
    %1483 = vmatpush1.bf16.msra.mxu0 %v1449
    %1484 = vmatprep.subr.bf16.mxu0 0
    %1485 = vmatpush1.bf16.msra.mxu0 0
    %1486 = vmatprep.subr.bf16.mxu0 0
    %1487 = vmatpush1.bf16.msra.mxu0 0
    %1488 = vmatprep.subr.bf16.mxu0 0
    %1489 = vmatpush1.bf16.msra.mxu0 0
    %1490 = vmatprep.subr.bf16.mxu0 0
    %1491 = vmatpush1.bf16.msra.mxu0 0
    %1492 = vmatprep.subr.bf16.mxu0 0
    %1493 = vmatpush1.bf16.msra.mxu0 0
    %1494 = vmatprep.subr.bf16.mxu0 0
    %1495 = vmatpush1.bf16.msra.mxu0 0
    %1496 = vmatprep.subr.bf16.mxu0 0
    %1497 = vmatpush1.bf16.msra.mxu0 0
    %1498 = vmatprep.subr.bf16.mxu0 0
    %1499 = vmatpush1.bf16.msra.mxu0 0
    %1500 = vmatprep.subr.bf16.mxu0 0
    %1501 = vmatpush1.bf16.msra.mxu0 0
    %1502 = vmatprep.subr.bf16.mxu0 0
    %1503 = vmatpush1.bf16.msra.mxu0 0
    %1504 = vmatprep.mubr.bf16.mxu0 0
    %1505 = vmatmul.mubr.bf16.gmra.mrb[0].mxu0 %v1464
    %v1506 = vpop.f32.mrb[0].mxu0
    %v1507 = vadd.f32 0.0, %v1506
    %v1508 = vpop.f32.mrb[0].mxu0
    %v1509 = vadd.f32 0.0, %v1508
    %v1510 = vpop.f32.mrb[0].mxu0
    %v1511 = vadd.f32 0.0, %v1510
    %v1512 = vpop.f32.mrb[0].mxu0
    %v1513 = vadd.f32 0.0, %v1512
    %1514 = vmatprep.mubr.bf16.mxu0 0
    %1515 = vmatmul.mubr.bf16.gmra.mrb[0].mxu0 %v1467
    %v1516 = vpop.f32.mrb[0].mxu0
    %v1517 = vadd.f32 0.0, %v1516
    %v1518 = vpop.f32.mrb[0].mxu0
    %v1519 = vadd.f32 0.0, %v1518
    %v1520 = vpop.f32.mrb[0].mxu0
    %v1521 = vadd.f32 0.0, %v1520
    %v1522 = vpop.f32.mrb[0].mxu0
    %v1523 = vadd.f32 0.0, %v1522
    %1524 = vmatprep.mubr.bf16.mxu0 0
    %1525 = vmatmul.mubr.bf16.gmra.mrb[0].mxu0 %v1470
    %v1526 = vpop.f32.mrb[0].mxu0
    %v1527 = vadd.f32 0.0, %v1526
    %v1528 = vpop.f32.mrb[0].mxu0
    %v1529 = vadd.f32 0.0, %v1528
    %v1530 = vpop.f32.mrb[0].mxu0
    %v1531 = vadd.f32 0.0, %v1530
    %v1532 = vpop.f32.mrb[0].mxu0
    %v1533 = vadd.f32 0.0, %v1532
    %1534 = vdwg.mxu0
    %v1535 = vadd.f32 %v1356, %v1507
    %v1536 = vadd.f32 %v1358, %v1509
    %v1537 = vadd.f32 %v1360, %v1511
    %v1538 = vadd.f32 %v1362, %v1513
    %v1539 = vadd.f32 %v1366, %v1517
    %v1540 = vadd.f32 %v1368, %v1519
    %v1541 = vadd.f32 %v1370, %v1521
    %v1542 = vadd.f32 %v1372, %v1523
    %v1543 = vadd.f32 %v1376, %v1527
    %v1544 = vadd.f32 %v1378, %v1529
    %v1545 = vadd.f32 %v1380, %v1531
    %v1546 = vadd.f32 %v1382, %v1533
    %s1547 = scalar_lea.vmem [#allocation5], 288
    %v1548 = vld [vmem:[%s1547] sm:$0xff]
    %v1549 = vld [vmem:[%s1547 + $0x8] sm:$0xff]
    %v1550 = vld [vmem:[%s1547 + $0x10] sm:$0xff]
    %v1551 = vld [vmem:[%s1547 + $0x18] sm:$0xff]
    %v1552 = vld [vmem:[%s1547 + $0x20] sm:$0xff]
    %v1553 = vld [vmem:[%s1547 + $0x28] sm:$0xff]
    %v1554 = vld [vmem:[%s1547 + $0x30] sm:$0xff]
    %v1555 = vld [vmem:[%s1547 + $0x38] sm:$0xff]
    %v1556 = vld [vmem:[%s1547 + $0x40] sm:$0xff]
    %v1557 = vld [vmem:[%s1547 + $0x48] sm:$0xff]
    %v1558 = vld [vmem:[%s1547 + $0x50] sm:$0xff]
    %v1559 = vld [vmem:[%s1547 + $0x58] sm:$0xff]
    %vm1561 = vcmask 1043456
    %v1562 = vrot.slane %v1081, 4
    %v1563 = vrot.slane %v1082, 4
    %v1564 = vsel %vm1561, %v1562, %v1563
    %v1565 = vrot.slane %v1083, 4
    %v1566 = vsel %vm1561, %v1563, %v1565
    %v1567 = vrot.slane %v1084, 4
    %v1568 = vsel %vm1561, %v1565, %v1567
    %v1581 = vunpack.c.l.b16 %v1548
    %v1582 = vunpack.c.h.b16 %v1548
    %v1583 = vunpack.c.l.b16 %v1549
    %v1584 = vunpack.c.h.b16 %v1549
    %v1585 = vunpack.c.l.b16 %v1550
    %v1586 = vunpack.c.h.b16 %v1550
    %v1587 = vunpack.c.l.b16 %v1551
    %v1588 = vunpack.c.h.b16 %v1551
    %v1589 = vunpack.c.l.b16 %v1552
    %v1590 = vunpack.c.h.b16 %v1552
    %v1591 = vunpack.c.l.b16 %v1553
    %v1592 = vunpack.c.h.b16 %v1553
    %v1593 = vunpack.c.l.b16 %v1554
    %v1594 = vunpack.c.h.b16 %v1554
    %v1595 = vunpack.c.l.b16 %v1555
    %v1596 = vunpack.c.h.b16 %v1555
    %v1597 = vunpack.c.l.b16 %v1556
    %v1598 = vunpack.c.h.b16 %v1556
    %v1599 = vunpack.c.l.b16 %v1557
    %v1600 = vunpack.c.h.b16 %v1557
    %v1601 = vunpack.c.l.b16 %v1558
    %v1602 = vunpack.c.h.b16 %v1558
    %v1603 = vunpack.c.l.b16 %v1559
    %v1604 = vunpack.c.h.b16 %v1559
    %v1605 = vpack.c.b16 %v1583, %v1581
    %v1606 = vpack.c.b16 %v1584, %v1582
    %v1607 = vpack.c.b16 %v1587, %v1585
    %v1608 = vpack.c.b16 %v1588, %v1586
    %v1609 = vpack.c.b16 %v1591, %v1589
    %v1610 = vpack.c.b16 %v1592, %v1590
    %v1611 = vpack.c.b16 %v1595, %v1593
    %v1612 = vpack.c.b16 %v1596, %v1594
    %v1613 = vpack.c.b16 %v1599, %v1597
    %v1614 = vpack.c.b16 %v1600, %v1598
    %v1615 = vpack.c.b16 %v1603, %v1601
    %v1616 = vpack.c.b16 %v1604, %v1602
    %v1630 = vsel %vm1179, %v1564, 0
    %v1633 = vsel %vm1179, %v1566, 0
    %v1636 = vsel %vm1179, %v1568, 0
    %1638 = vmatprep.subr.bf16.mxu0 %v1606
    %1639 = vmatpush1.bf16.msra.mxu0 %v1605
    %1640 = vmatprep.subr.bf16.mxu0 %v1608
    %1641 = vmatpush1.bf16.msra.mxu0 %v1607
    %1642 = vmatprep.subr.bf16.mxu0 %v1610
    %1643 = vmatpush1.bf16.msra.mxu0 %v1609
    %1644 = vmatprep.subr.bf16.mxu0 %v1612
    %1645 = vmatpush1.bf16.msra.mxu0 %v1611
    %1646 = vmatprep.subr.bf16.mxu0 %v1614
    %1647 = vmatpush1.bf16.msra.mxu0 %v1613
    %1648 = vmatprep.subr.bf16.mxu0 %v1616
    %1649 = vmatpush1.bf16.msra.mxu0 %v1615
    %1650 = vmatprep.subr.bf16.mxu0 0
    %1651 = vmatpush1.bf16.msra.mxu0 0
    %1652 = vmatprep.subr.bf16.mxu0 0
    %1653 = vmatpush1.bf16.msra.mxu0 0
    %1654 = vmatprep.subr.bf16.mxu0 0
    %1655 = vmatpush1.bf16.msra.mxu0 0
    %1656 = vmatprep.subr.bf16.mxu0 0
    %1657 = vmatpush1.bf16.msra.mxu0 0
    %1658 = vmatprep.subr.bf16.mxu0 0
    %1659 = vmatpush1.bf16.msra.mxu0 0
    %1660 = vmatprep.subr.bf16.mxu0 0
    %1661 = vmatpush1.bf16.msra.mxu0 0
    %1662 = vmatprep.subr.bf16.mxu0 0
    %1663 = vmatpush1.bf16.msra.mxu0 0
    %1664 = vmatprep.subr.bf16.mxu0 0
    %1665 = vmatpush1.bf16.msra.mxu0 0
    %1666 = vmatprep.subr.bf16.mxu0 0
    %1667 = vmatpush1.bf16.msra.mxu0 0
    %1668 = vmatprep.subr.bf16.mxu0 0
    %1669 = vmatpush1.bf16.msra.mxu0 0
    %1670 = vmatprep.mubr.bf16.mxu0 0
    %1671 = vmatmul.mubr.bf16.gmra.mrb[0].mxu0 %v1630
    %v1672 = vpop.f32.mrb[0].mxu0
    %v1673 = vadd.f32 0.0, %v1672
    %v1674 = vpop.f32.mrb[0].mxu0
    %v1675 = vadd.f32 0.0, %v1674
    %v1676 = vpop.f32.mrb[0].mxu0
    %v1677 = vadd.f32 0.0, %v1676
    %v1678 = vpop.f32.mrb[0].mxu0
    %v1679 = vadd.f32 0.0, %v1678
    %1680 = vmatprep.mubr.bf16.mxu0 0
    %1681 = vmatmul.mubr.bf16.gmra.mrb[0].mxu0 %v1633
    %v1682 = vpop.f32.mrb[0].mxu0
    %v1683 = vadd.f32 0.0, %v1682
    %v1684 = vpop.f32.mrb[0].mxu0
    %v1685 = vadd.f32 0.0, %v1684
    %v1686 = vpop.f32.mrb[0].mxu0
    %v1687 = vadd.f32 0.0, %v1686
    %v1688 = vpop.f32.mrb[0].mxu0
    %v1689 = vadd.f32 0.0, %v1688
    %1690 = vmatprep.mubr.bf16.mxu0 0
    %1691 = vmatmul.mubr.bf16.gmra.mrb[0].mxu0 %v1636
    %v1692 = vpop.f32.mrb[0].mxu0
    %v1693 = vadd.f32 0.0, %v1692
    %v1694 = vpop.f32.mrb[0].mxu0
    %v1695 = vadd.f32 0.0, %v1694
    %v1696 = vpop.f32.mrb[0].mxu0
    %v1697 = vadd.f32 0.0, %v1696
    %v1698 = vpop.f32.mrb[0].mxu0
    %v1699 = vadd.f32 0.0, %v1698
    %1700 = vdwg.mxu0
    %v1701 = vadd.f32 %v1535, %v1673
    %v1702 = vadd.f32 %v1536, %v1675
    %v1703 = vadd.f32 %v1537, %v1677
    %v1704 = vadd.f32 %v1538, %v1679
    %v1705 = vadd.f32 %v1539, %v1683
    %v1706 = vadd.f32 %v1540, %v1685
    %v1707 = vadd.f32 %v1541, %v1687
    %v1708 = vadd.f32 %v1542, %v1689
    %v1709 = vadd.f32 %v1543, %v1693
    %v1710 = vadd.f32 %v1544, %v1695
    %v1711 = vadd.f32 %v1545, %v1697
    %v1712 = vadd.f32 %v1546, %v1699
    %s1713 = scalar_lea.vmem [#allocation5], 384
    %v1714 = vld [vmem:[%s1713] sm:$0xff]
    %v1715 = vld [vmem:[%s1713 + $0x8] sm:$0xff]
    %v1716 = vld [vmem:[%s1713 + $0x10] sm:$0xff]
    %v1717 = vld [vmem:[%s1713 + $0x18] sm:$0xff]
    %v1718 = vld [vmem:[%s1713 + $0x20] sm:$0xff]
    %v1719 = vld [vmem:[%s1713 + $0x28] sm:$0xff]
    %v1720 = vld [vmem:[%s1713 + $0x30] sm:$0xff]
    %v1721 = vld [vmem:[%s1713 + $0x38] sm:$0xff]
    %v1722 = vld [vmem:[%s1713 + $0x40] sm:$0xff]
    %v1723 = vld [vmem:[%s1713 + $0x48] sm:$0xff]
    %v1724 = vld [vmem:[%s1713 + $0x50] sm:$0xff]
    %v1725 = vld [vmem:[%s1713 + $0x58] sm:$0xff]
    %1726 = vrot.lane.b32.xlu0 %v1564, 112
    %v1727 = vpop.permute.xlu0 %1726
    %1728 = vrot.lane.b32.xlu0 %v1566, 112
    %v1729 = vpop.permute.xlu0 %1728
    %1730 = vrot.lane.b32.xlu0 %v1568, 112
    %v1731 = vpop.permute.xlu0 %1730
    %v1744 = vunpack.c.l.b16 %v1714
    %v1745 = vunpack.c.h.b16 %v1714
    %v1746 = vunpack.c.l.b16 %v1715
    %v1747 = vunpack.c.h.b16 %v1715
    %v1748 = vunpack.c.l.b16 %v1716
    %v1749 = vunpack.c.h.b16 %v1716
    %v1750 = vunpack.c.l.b16 %v1717
    %v1751 = vunpack.c.h.b16 %v1717
    %v1752 = vunpack.c.l.b16 %v1718
    %v1753 = vunpack.c.h.b16 %v1718
    %v1754 = vunpack.c.l.b16 %v1719
    %v1755 = vunpack.c.h.b16 %v1719
    %v1756 = vunpack.c.l.b16 %v1720
    %v1757 = vunpack.c.h.b16 %v1720
    %v1758 = vunpack.c.l.b16 %v1721
    %v1759 = vunpack.c.h.b16 %v1721
    %v1760 = vunpack.c.l.b16 %v1722
    %v1761 = vunpack.c.h.b16 %v1722
    %v1762 = vunpack.c.l.b16 %v1723
    %v1763 = vunpack.c.h.b16 %v1723
    %v1764 = vunpack.c.l.b16 %v1724
    %v1765 = vunpack.c.h.b16 %v1724
    %v1766 = vunpack.c.l.b16 %v1725
    %v1767 = vunpack.c.h.b16 %v1725
    %v1768 = vpack.c.b16 %v1746, %v1744
    %v1769 = vpack.c.b16 %v1747, %v1745
    %v1770 = vpack.c.b16 %v1750, %v1748
    %v1771 = vpack.c.b16 %v1751, %v1749
    %v1772 = vpack.c.b16 %v1754, %v1752
    %v1773 = vpack.c.b16 %v1755, %v1753
    %v1774 = vpack.c.b16 %v1758, %v1756
    %v1775 = vpack.c.b16 %v1759, %v1757
    %v1776 = vpack.c.b16 %v1762, %v1760
    %v1777 = vpack.c.b16 %v1763, %v1761
    %v1778 = vpack.c.b16 %v1766, %v1764
    %v1779 = vpack.c.b16 %v1767, %v1765
    %v1793 = vsel %vm1179, %v1727, 0
    %v1796 = vsel %vm1179, %v1729, 0
    %v1799 = vsel %vm1179, %v1731, 0
    %1801 = vmatprep.subr.bf16.mxu0 %v1769
    %1802 = vmatpush1.bf16.msra.mxu0 %v1768
    %1803 = vmatprep.subr.bf16.mxu0 %v1771
    %1804 = vmatpush1.bf16.msra.mxu0 %v1770
    %1805 = vmatprep.subr.bf16.mxu0 %v1773
    %1806 = vmatpush1.bf16.msra.mxu0 %v1772
    %1807 = vmatprep.subr.bf16.mxu0 %v1775
    %1808 = vmatpush1.bf16.msra.mxu0 %v1774
    %1809 = vmatprep.subr.bf16.mxu0 %v1777
    %1810 = vmatpush1.bf16.msra.mxu0 %v1776
    %1811 = vmatprep.subr.bf16.mxu0 %v1779
    %1812 = vmatpush1.bf16.msra.mxu0 %v1778
    %1813 = vmatprep.subr.bf16.mxu0 0
    %1814 = vmatpush1.bf16.msra.mxu0 0
    %1815 = vmatprep.subr.bf16.mxu0 0
    %1816 = vmatpush1.bf16.msra.mxu0 0
    %1817 = vmatprep.subr.bf16.mxu0 0
    %1818 = vmatpush1.bf16.msra.mxu0 0
    %1819 = vmatprep.subr.bf16.mxu0 0
    %1820 = vmatpush1.bf16.msra.mxu0 0
    %1821 = vmatprep.subr.bf16.mxu0 0
    %1822 = vmatpush1.bf16.msra.mxu0 0
    %1823 = vmatprep.subr.bf16.mxu0 0
    %1824 = vmatpush1.bf16.msra.mxu0 0
    %1825 = vmatprep.subr.bf16.mxu0 0
    %1826 = vmatpush1.bf16.msra.mxu0 0
    %1827 = vmatprep.subr.bf16.mxu0 0
    %1828 = vmatpush1.bf16.msra.mxu0 0
    %1829 = vmatprep.subr.bf16.mxu0 0
    %1830 = vmatpush1.bf16.msra.mxu0 0
    %1831 = vmatprep.subr.bf16.mxu0 0
    %1832 = vmatpush1.bf16.msra.mxu0 0
    %1833 = vmatprep.mubr.bf16.mxu0 0
    %1834 = vmatmul.mubr.bf16.gmra.mrb[0].mxu0 %v1793
    %v1835 = vpop.f32.mrb[0].mxu0
    %v1836 = vadd.f32 0.0, %v1835
    %v1837 = vpop.f32.mrb[0].mxu0
    %v1838 = vadd.f32 0.0, %v1837
    %v1839 = vpop.f32.mrb[0].mxu0
    %v1840 = vadd.f32 0.0, %v1839
    %v1841 = vpop.f32.mrb[0].mxu0
    %v1842 = vadd.f32 0.0, %v1841
    %1843 = vmatprep.mubr.bf16.mxu0 0
    %1844 = vmatmul.mubr.bf16.gmra.mrb[0].mxu0 %v1796
    %v1845 = vpop.f32.mrb[0].mxu0
    %v1846 = vadd.f32 0.0, %v1845
    %v1847 = vpop.f32.mrb[0].mxu0
    %v1848 = vadd.f32 0.0, %v1847
    %v1849 = vpop.f32.mrb[0].mxu0
    %v1850 = vadd.f32 0.0, %v1849
    %v1851 = vpop.f32.mrb[0].mxu0
    %v1852 = vadd.f32 0.0, %v1851
    %1853 = vmatprep.mubr.bf16.mxu0 0
    %1854 = vmatmul.mubr.bf16.gmra.mrb[0].mxu0 %v1799
    %v1855 = vpop.f32.mrb[0].mxu0
    %v1856 = vadd.f32 0.0, %v1855
    %v1857 = vpop.f32.mrb[0].mxu0
    %v1858 = vadd.f32 0.0, %v1857
    %v1859 = vpop.f32.mrb[0].mxu0
    %v1860 = vadd.f32 0.0, %v1859
    %v1861 = vpop.f32.mrb[0].mxu0
    %v1862 = vadd.f32 0.0, %v1861
    %1863 = vdwg.mxu0
    %v1864 = vadd.f32 %v1701, %v1836
    %v1865 = vadd.f32 %v1702, %v1838
    %v1866 = vadd.f32 %v1703, %v1840
    %v1867 = vadd.f32 %v1704, %v1842
    %v1868 = vadd.f32 %v1705, %v1846
    %v1869 = vadd.f32 %v1706, %v1848
    %v1870 = vadd.f32 %v1707, %v1850
    %v1871 = vadd.f32 %v1708, %v1852
    %v1872 = vadd.f32 %v1709, %v1856
    %v1873 = vadd.f32 %v1710, %v1858
    %v1874 = vadd.f32 %v1711, %v1860
    %v1875 = vadd.f32 %v1712, %v1862
    %s1876 = scalar_lea.vmem [#allocation5], 480
    %v1877 = vld [vmem:[%s1876] sm:$0xff]
    %v1878 = vld [vmem:[%s1876 + $0x8] sm:$0xff]
    %v1879 = vld [vmem:[%s1876 + $0x10] sm:$0xff]
    %v1880 = vld [vmem:[%s1876 + $0x18] sm:$0xff]
    %v1881 = vld [vmem:[%s1876 + $0x20] sm:$0xff]
    %v1882 = vld [vmem:[%s1876 + $0x28] sm:$0xff]
    %v1883 = vld [vmem:[%s1876 + $0x30] sm:$0xff]
    %v1884 = vld [vmem:[%s1876 + $0x38] sm:$0xff]
    %v1885 = vld [vmem:[%s1876 + $0x40] sm:$0xff]
    %v1886 = vld [vmem:[%s1876 + $0x48] sm:$0xff]
    %v1887 = vld [vmem:[%s1876 + $0x50] sm:$0xff]
    %v1888 = vld [vmem:[%s1876 + $0x58] sm:$0xff]
    %1889 = vrot.lane.b32.xlu0 %v1564, 96
    %v1890 = vpop.permute.xlu0 %1889
    %1891 = vrot.lane.b32.xlu0 %v1566, 96
    %v1892 = vpop.permute.xlu0 %1891
    %1893 = vrot.lane.b32.xlu0 %v1568, 96
    %v1894 = vpop.permute.xlu0 %1893
    %v1907 = vunpack.c.l.b16 %v1877
    %v1908 = vunpack.c.h.b16 %v1877
    %v1909 = vunpack.c.l.b16 %v1878
    %v1910 = vunpack.c.h.b16 %v1878
    %v1911 = vunpack.c.l.b16 %v1879
    %v1912 = vunpack.c.h.b16 %v1879
    %v1913 = vunpack.c.l.b16 %v1880
    %v1914 = vunpack.c.h.b16 %v1880
    %v1915 = vunpack.c.l.b16 %v1881
    %v1916 = vunpack.c.h.b16 %v1881
    %v1917 = vunpack.c.l.b16 %v1882
    %v1918 = vunpack.c.h.b16 %v1882
    %v1919 = vunpack.c.l.b16 %v1883
    %v1920 = vunpack.c.h.b16 %v1883
    %v1921 = vunpack.c.l.b16 %v1884
    %v1922 = vunpack.c.h.b16 %v1884
    %v1923 = vunpack.c.l.b16 %v1885
    %v1924 = vunpack.c.h.b16 %v1885
    %v1925 = vunpack.c.l.b16 %v1886
    %v1926 = vunpack.c.h.b16 %v1886
    %v1927 = vunpack.c.l.b16 %v1887
    %v1928 = vunpack.c.h.b16 %v1887
    %v1929 = vunpack.c.l.b16 %v1888
    %v1930 = vunpack.c.h.b16 %v1888
    %v1931 = vpack.c.b16 %v1909, %v1907
    %v1932 = vpack.c.b16 %v1910, %v1908
    %v1933 = vpack.c.b16 %v1913, %v1911
    %v1934 = vpack.c.b16 %v1914, %v1912
    %v1935 = vpack.c.b16 %v1917, %v1915
    %v1936 = vpack.c.b16 %v1918, %v1916
    %v1937 = vpack.c.b16 %v1921, %v1919
    %v1938 = vpack.c.b16 %v1922, %v1920
    %v1939 = vpack.c.b16 %v1925, %v1923
    %v1940 = vpack.c.b16 %v1926, %v1924
    %v1941 = vpack.c.b16 %v1929, %v1927
    %v1942 = vpack.c.b16 %v1930, %v1928
    %v1956 = vsel %vm1179, %v1890, 0
    %v1959 = vsel %vm1179, %v1892, 0
    %v1962 = vsel %vm1179, %v1894, 0
    %1964 = vmatprep.subr.bf16.mxu0 %v1932
    %1965 = vmatpush1.bf16.msra.mxu0 %v1931
    %1966 = vmatprep.subr.bf16.mxu0 %v1934
    %1967 = vmatpush1.bf16.msra.mxu0 %v1933
    %1968 = vmatprep.subr.bf16.mxu0 %v1936
    %1969 = vmatpush1.bf16.msra.mxu0 %v1935
    %1970 = vmatprep.subr.bf16.mxu0 %v1938
    %1971 = vmatpush1.bf16.msra.mxu0 %v1937
    %1972 = vmatprep.subr.bf16.mxu0 %v1940
    %1973 = vmatpush1.bf16.msra.mxu0 %v1939
    %1974 = vmatprep.subr.bf16.mxu0 %v1942
    %1975 = vmatpush1.bf16.msra.mxu0 %v1941
    %1976 = vmatprep.subr.bf16.mxu0 0
    %1977 = vmatpush1.bf16.msra.mxu0 0
    %1978 = vmatprep.subr.bf16.mxu0 0
    %1979 = vmatpush1.bf16.msra.mxu0 0
    %1980 = vmatprep.subr.bf16.mxu0 0
    %1981 = vmatpush1.bf16.msra.mxu0 0
    %1982 = vmatprep.subr.bf16.mxu0 0
    %1983 = vmatpush1.bf16.msra.mxu0 0
    %1984 = vmatprep.subr.bf16.mxu0 0
    %1985 = vmatpush1.bf16.msra.mxu0 0
    %1986 = vmatprep.subr.bf16.mxu0 0
    %1987 = vmatpush1.bf16.msra.mxu0 0
    %1988 = vmatprep.subr.bf16.mxu0 0
    %1989 = vmatpush1.bf16.msra.mxu0 0
    %1990 = vmatprep.subr.bf16.mxu0 0
    %1991 = vmatpush1.bf16.msra.mxu0 0
    %1992 = vmatprep.subr.bf16.mxu0 0
    %1993 = vmatpush1.bf16.msra.mxu0 0
    %1994 = vmatprep.subr.bf16.mxu0 0
    %1995 = vmatpush1.bf16.msra.mxu0 0
    %1996 = vmatprep.mubr.bf16.mxu0 0
    %1997 = vmatmul.mubr.bf16.gmra.mrb[0].mxu0 %v1956
    %v1998 = vpop.f32.mrb[0].mxu0
    %v1999 = vadd.f32 0.0, %v1998
    %v2000 = vpop.f32.mrb[0].mxu0
    %v2001 = vadd.f32 0.0, %v2000
    %v2002 = vpop.f32.mrb[0].mxu0
    %v2003 = vadd.f32 0.0, %v2002
    %v2004 = vpop.f32.mrb[0].mxu0
    %v2005 = vadd.f32 0.0, %v2004
    %2006 = vmatprep.mubr.bf16.mxu0 0
    %2007 = vmatmul.mubr.bf16.gmra.mrb[0].mxu0 %v1959
    %v2008 = vpop.f32.mrb[0].mxu0
    %v2009 = vadd.f32 0.0, %v2008
    %v2010 = vpop.f32.mrb[0].mxu0
    %v2011 = vadd.f32 0.0, %v2010
    %v2012 = vpop.f32.mrb[0].mxu0
    %v2013 = vadd.f32 0.0, %v2012
    %v2014 = vpop.f32.mrb[0].mxu0
    %v2015 = vadd.f32 0.0, %v2014
    %2016 = vmatprep.mubr.bf16.mxu0 0
    %2017 = vmatmul.mubr.bf16.gmra.mrb[0].mxu0 %v1962
    %v2018 = vpop.f32.mrb[0].mxu0
    %v2019 = vadd.f32 0.0, %v2018
    %v2020 = vpop.f32.mrb[0].mxu0
    %v2021 = vadd.f32 0.0, %v2020
    %v2022 = vpop.f32.mrb[0].mxu0
    %v2023 = vadd.f32 0.0, %v2022
    %v2024 = vpop.f32.mrb[0].mxu0
    %v2025 = vadd.f32 0.0, %v2024
    %2026 = vdwg.mxu0
    %v2027 = vadd.f32 %v1864, %v1999
    %v2028 = vadd.f32 %v1865, %v2001
    %v2029 = vadd.f32 %v1866, %v2003
    %v2030 = vadd.f32 %v1867, %v2005
    %v2031 = vadd.f32 %v1868, %v2009
    %v2032 = vadd.f32 %v1869, %v2011
    %v2033 = vadd.f32 %v1870, %v2013
    %v2034 = vadd.f32 %v1871, %v2015
    %v2035 = vadd.f32 %v1872, %v2019
    %v2036 = vadd.f32 %v1873, %v2021
    %v2037 = vadd.f32 %v1874, %v2023
    %v2038 = vadd.f32 %v1875, %v2025
    %s2039 = scalar_lea.vmem [#allocation5], 576
    %v2040 = vld [vmem:[%s2039] sm:$0xff]
    %v2041 = vld [vmem:[%s2039 + $0x8] sm:$0xff]
    %v2042 = vld [vmem:[%s2039 + $0x10] sm:$0xff]
    %v2043 = vld [vmem:[%s2039 + $0x18] sm:$0xff]
    %v2044 = vld [vmem:[%s2039 + $0x20] sm:$0xff]
    %v2045 = vld [vmem:[%s2039 + $0x28] sm:$0xff]
    %v2046 = vld [vmem:[%s2039 + $0x30] sm:$0xff]
    %v2047 = vld [vmem:[%s2039 + $0x38] sm:$0xff]
    %v2048 = vld [vmem:[%s2039 + $0x40] sm:$0xff]
    %v2049 = vld [vmem:[%s2039 + $0x48] sm:$0xff]
    %v2050 = vld [vmem:[%s2039 + $0x50] sm:$0xff]
    %v2051 = vld [vmem:[%s2039 + $0x58] sm:$0xff]
    %v2064 = vunpack.c.l.b16 %v2040
    %v2065 = vunpack.c.h.b16 %v2040
    %v2066 = vunpack.c.l.b16 %v2041
    %v2067 = vunpack.c.h.b16 %v2041
    %v2068 = vunpack.c.l.b16 %v2042
    %v2069 = vunpack.c.h.b16 %v2042
    %v2070 = vunpack.c.l.b16 %v2043
    %v2071 = vunpack.c.h.b16 %v2043
    %v2072 = vunpack.c.l.b16 %v2044
    %v2073 = vunpack.c.h.b16 %v2044
    %v2074 = vunpack.c.l.b16 %v2045
    %v2075 = vunpack.c.h.b16 %v2045
    %v2076 = vunpack.c.l.b16 %v2046
    %v2077 = vunpack.c.h.b16 %v2046
    %v2078 = vunpack.c.l.b16 %v2047
    %v2079 = vunpack.c.h.b16 %v2047
    %v2080 = vunpack.c.l.b16 %v2048
    %v2081 = vunpack.c.h.b16 %v2048
    %v2082 = vunpack.c.l.b16 %v2049
    %v2083 = vunpack.c.h.b16 %v2049
    %v2084 = vunpack.c.l.b16 %v2050
    %v2085 = vunpack.c.h.b16 %v2050
    %v2086 = vunpack.c.l.b16 %v2051
    %v2087 = vunpack.c.h.b16 %v2051
    %v2088 = vpack.c.b16 %v2066, %v2064
    %v2089 = vpack.c.b16 %v2067, %v2065
    %v2090 = vpack.c.b16 %v2070, %v2068
    %v2091 = vpack.c.b16 %v2071, %v2069
    %v2092 = vpack.c.b16 %v2074, %v2072
    %v2093 = vpack.c.b16 %v2075, %v2073
    %v2094 = vpack.c.b16 %v2078, %v2076
    %v2095 = vpack.c.b16 %v2079, %v2077
    %v2096 = vpack.c.b16 %v2082, %v2080
    %v2097 = vpack.c.b16 %v2083, %v2081
    %v2098 = vpack.c.b16 %v2086, %v2084
    %v2099 = vpack.c.b16 %v2087, %v2085
    %v2113 = vsel %vm1179, %v1084, 0
    %2115 = vmatprep.subr.bf16.mxu0 %v2089
    %2116 = vmatpush1.bf16.msra.mxu0 %v2088
    %2117 = vmatprep.subr.bf16.mxu0 %v2091
    %2118 = vmatpush1.bf16.msra.mxu0 %v2090
    %2119 = vmatprep.subr.bf16.mxu0 %v2093
    %2120 = vmatpush1.bf16.msra.mxu0 %v2092
    %2121 = vmatprep.subr.bf16.mxu0 %v2095
    %2122 = vmatpush1.bf16.msra.mxu0 %v2094
    %2123 = vmatprep.subr.bf16.mxu0 %v2097
    %2124 = vmatpush1.bf16.msra.mxu0 %v2096
    %2125 = vmatprep.subr.bf16.mxu0 %v2099
    %2126 = vmatpush1.bf16.msra.mxu0 %v2098
    %2127 = vmatprep.subr.bf16.mxu0 0
    %2128 = vmatpush1.bf16.msra.mxu0 0
    %2129 = vmatprep.subr.bf16.mxu0 0
    %2130 = vmatpush1.bf16.msra.mxu0 0
    %2131 = vmatprep.subr.bf16.mxu0 0
    %2132 = vmatpush1.bf16.msra.mxu0 0
    %2133 = vmatprep.subr.bf16.mxu0 0
    %2134 = vmatpush1.bf16.msra.mxu0 0
    %2135 = vmatprep.subr.bf16.mxu0 0
    %2136 = vmatpush1.bf16.msra.mxu0 0
    %2137 = vmatprep.subr.bf16.mxu0 0
    %2138 = vmatpush1.bf16.msra.mxu0 0
    %2139 = vmatprep.subr.bf16.mxu0 0
    %2140 = vmatpush1.bf16.msra.mxu0 0
    %2141 = vmatprep.subr.bf16.mxu0 0
    %2142 = vmatpush1.bf16.msra.mxu0 0
    %2143 = vmatprep.subr.bf16.mxu0 0
    %2144 = vmatpush1.bf16.msra.mxu0 0
    %2145 = vmatprep.subr.bf16.mxu0 0
    %2146 = vmatpush1.bf16.msra.mxu0 0
    %2147 = vmatprep.mubr.bf16.mxu0 0
    %2148 = vmatmul.mubr.bf16.gmra.mrb[0].mxu0 %v1316
    %v2149 = vpop.f32.mrb[0].mxu0
    %v2150 = vadd.f32 0.0, %v2149
    %v2151 = vpop.f32.mrb[0].mxu0
    %v2152 = vadd.f32 0.0, %v2151
    %v2153 = vpop.f32.mrb[0].mxu0
    %v2154 = vadd.f32 0.0, %v2153
    %v2155 = vpop.f32.mrb[0].mxu0
    %v2156 = vadd.f32 0.0, %v2155
    %2157 = vmatprep.mubr.bf16.mxu0 0
    %2158 = vmatmul.mubr.bf16.gmra.mrb[0].mxu0 %v1319
    %v2159 = vpop.f32.mrb[0].mxu0
    %v2160 = vadd.f32 0.0, %v2159
    %v2161 = vpop.f32.mrb[0].mxu0
    %v2162 = vadd.f32 0.0, %v2161
    %v2163 = vpop.f32.mrb[0].mxu0
    %v2164 = vadd.f32 0.0, %v2163
    %v2165 = vpop.f32.mrb[0].mxu0
    %v2166 = vadd.f32 0.0, %v2165
    %2167 = vmatprep.mubr.bf16.mxu0 0
    %2168 = vmatmul.mubr.bf16.gmra.mrb[0].mxu0 %v2113
    %v2169 = vpop.f32.mrb[0].mxu0
    %v2170 = vadd.f32 0.0, %v2169
    %v2171 = vpop.f32.mrb[0].mxu0
    %v2172 = vadd.f32 0.0, %v2171
    %v2173 = vpop.f32.mrb[0].mxu0
    %v2174 = vadd.f32 0.0, %v2173
    %v2175 = vpop.f32.mrb[0].mxu0
    %v2176 = vadd.f32 0.0, %v2175
    %2177 = vdwg.mxu0
    %v2178 = vadd.f32 %v2027, %v2150
    %v2179 = vadd.f32 %v2028, %v2152
    %v2180 = vadd.f32 %v2029, %v2154
    %v2181 = vadd.f32 %v2030, %v2156
    %v2182 = vadd.f32 %v2031, %v2160
    %v2183 = vadd.f32 %v2032, %v2162
    %v2184 = vadd.f32 %v2033, %v2164
    %v2185 = vadd.f32 %v2034, %v2166
    %v2186 = vadd.f32 %v2035, %v2170
    %v2187 = vadd.f32 %v2036, %v2172
    %v2188 = vadd.f32 %v2037, %v2174
    %v2189 = vadd.f32 %v2038, %v2176
    %s2190 = scalar_lea.vmem [#allocation5], 672
    %v2191 = vld [vmem:[%s2190] sm:$0xff]
    %v2192 = vld [vmem:[%s2190 + $0x8] sm:$0xff]
    %v2193 = vld [vmem:[%s2190 + $0x10] sm:$0xff]
    %v2194 = vld [vmem:[%s2190 + $0x18] sm:$0xff]
    %v2195 = vld [vmem:[%s2190 + $0x20] sm:$0xff]
    %v2196 = vld [vmem:[%s2190 + $0x28] sm:$0xff]
    %v2197 = vld [vmem:[%s2190 + $0x30] sm:$0xff]
    %v2198 = vld [vmem:[%s2190 + $0x38] sm:$0xff]
    %v2199 = vld [vmem:[%s2190 + $0x40] sm:$0xff]
    %v2200 = vld [vmem:[%s2190 + $0x48] sm:$0xff]
    %v2201 = vld [vmem:[%s2190 + $0x50] sm:$0xff]
    %v2202 = vld [vmem:[%s2190 + $0x58] sm:$0xff]
    %2203 = vrot.lane.b32.xlu0 %v1084, 112
    %v2204 = vpop.permute.xlu0 %2203
    %v2217 = vunpack.c.l.b16 %v2191
    %v2218 = vunpack.c.h.b16 %v2191
    %v2219 = vunpack.c.l.b16 %v2192
    %v2220 = vunpack.c.h.b16 %v2192
    %v2221 = vunpack.c.l.b16 %v2193
    %v2222 = vunpack.c.h.b16 %v2193
    %v2223 = vunpack.c.l.b16 %v2194
    %v2224 = vunpack.c.h.b16 %v2194
    %v2225 = vunpack.c.l.b16 %v2195
    %v2226 = vunpack.c.h.b16 %v2195
    %v2227 = vunpack.c.l.b16 %v2196
    %v2228 = vunpack.c.h.b16 %v2196
    %v2229 = vunpack.c.l.b16 %v2197
    %v2230 = vunpack.c.h.b16 %v2197
    %v2231 = vunpack.c.l.b16 %v2198
    %v2232 = vunpack.c.h.b16 %v2198
    %v2233 = vunpack.c.l.b16 %v2199
    %v2234 = vunpack.c.h.b16 %v2199
    %v2235 = vunpack.c.l.b16 %v2200
    %v2236 = vunpack.c.h.b16 %v2200
    %v2237 = vunpack.c.l.b16 %v2201
    %v2238 = vunpack.c.h.b16 %v2201
    %v2239 = vunpack.c.l.b16 %v2202
    %v2240 = vunpack.c.h.b16 %v2202
    %v2241 = vpack.c.b16 %v2219, %v2217
    %v2242 = vpack.c.b16 %v2220, %v2218
    %v2243 = vpack.c.b16 %v2223, %v2221
    %v2244 = vpack.c.b16 %v2224, %v2222
    %v2245 = vpack.c.b16 %v2227, %v2225
    %v2246 = vpack.c.b16 %v2228, %v2226
    %v2247 = vpack.c.b16 %v2231, %v2229
    %v2248 = vpack.c.b16 %v2232, %v2230
    %v2249 = vpack.c.b16 %v2235, %v2233
    %v2250 = vpack.c.b16 %v2236, %v2234
    %v2251 = vpack.c.b16 %v2239, %v2237
    %v2252 = vpack.c.b16 %v2240, %v2238
    %v2266 = vsel %vm1179, %v2204, 0
    %2268 = vmatprep.subr.bf16.mxu0 %v2242
    %2269 = vmatpush1.bf16.msra.mxu0 %v2241
    %2270 = vmatprep.subr.bf16.mxu0 %v2244
    %2271 = vmatpush1.bf16.msra.mxu0 %v2243
    %2272 = vmatprep.subr.bf16.mxu0 %v2246
    %2273 = vmatpush1.bf16.msra.mxu0 %v2245
    %2274 = vmatprep.subr.bf16.mxu0 %v2248
    %2275 = vmatpush1.bf16.msra.mxu0 %v2247
    %2276 = vmatprep.subr.bf16.mxu0 %v2250
    %2277 = vmatpush1.bf16.msra.mxu0 %v2249
    %2278 = vmatprep.subr.bf16.mxu0 %v2252
    %2279 = vmatpush1.bf16.msra.mxu0 %v2251
    %2280 = vmatprep.subr.bf16.mxu0 0
    %2281 = vmatpush1.bf16.msra.mxu0 0
    %2282 = vmatprep.subr.bf16.mxu0 0
    %2283 = vmatpush1.bf16.msra.mxu0 0
    %2284 = vmatprep.subr.bf16.mxu0 0
    %2285 = vmatpush1.bf16.msra.mxu0 0
    %2286 = vmatprep.subr.bf16.mxu0 0
    %2287 = vmatpush1.bf16.msra.mxu0 0
    %2288 = vmatprep.subr.bf16.mxu0 0
    %2289 = vmatpush1.bf16.msra.mxu0 0
    %2290 = vmatprep.subr.bf16.mxu0 0
    %2291 = vmatpush1.bf16.msra.mxu0 0
    %2292 = vmatprep.subr.bf16.mxu0 0
    %2293 = vmatpush1.bf16.msra.mxu0 0
    %2294 = vmatprep.subr.bf16.mxu0 0
    %2295 = vmatpush1.bf16.msra.mxu0 0
    %2296 = vmatprep.subr.bf16.mxu0 0
    %2297 = vmatpush1.bf16.msra.mxu0 0
    %2298 = vmatprep.subr.bf16.mxu0 0
    %2299 = vmatpush1.bf16.msra.mxu0 0
    %2300 = vmatprep.mubr.bf16.mxu0 0
    %2301 = vmatmul.mubr.bf16.gmra.mrb[0].mxu0 %v1184
    %v2302 = vpop.f32.mrb[0].mxu0
    %v2303 = vadd.f32 0.0, %v2302
    %v2304 = vpop.f32.mrb[0].mxu0
    %v2305 = vadd.f32 0.0, %v2304
    %v2306 = vpop.f32.mrb[0].mxu0
    %v2307 = vadd.f32 0.0, %v2306
    %v2308 = vpop.f32.mrb[0].mxu0
    %v2309 = vadd.f32 0.0, %v2308
    %2310 = vmatprep.mubr.bf16.mxu0 0
    %2311 = vmatmul.mubr.bf16.gmra.mrb[0].mxu0 %v1187
    %v2312 = vpop.f32.mrb[0].mxu0
    %v2313 = vadd.f32 0.0, %v2312
    %v2314 = vpop.f32.mrb[0].mxu0
    %v2315 = vadd.f32 0.0, %v2314
    %v2316 = vpop.f32.mrb[0].mxu0
    %v2317 = vadd.f32 0.0, %v2316
    %v2318 = vpop.f32.mrb[0].mxu0
    %v2319 = vadd.f32 0.0, %v2318
    %2320 = vmatprep.mubr.bf16.mxu0 0
    %2321 = vmatmul.mubr.bf16.gmra.mrb[0].mxu0 %v2266
    %v2322 = vpop.f32.mrb[0].mxu0
    %v2323 = vadd.f32 0.0, %v2322
    %v2324 = vpop.f32.mrb[0].mxu0
    %v2325 = vadd.f32 0.0, %v2324
    %v2326 = vpop.f32.mrb[0].mxu0
    %v2327 = vadd.f32 0.0, %v2326
    %v2328 = vpop.f32.mrb[0].mxu0
    %v2329 = vadd.f32 0.0, %v2328
    %2330 = vdwg.mxu0
    %v2331 = vadd.f32 %v2178, %v2303
    %v2332 = vadd.f32 %v2179, %v2305
    %v2333 = vadd.f32 %v2180, %v2307
    %v2334 = vadd.f32 %v2181, %v2309
    %v2335 = vadd.f32 %v2182, %v2313
    %v2336 = vadd.f32 %v2183, %v2315
    %v2337 = vadd.f32 %v2184, %v2317
    %v2338 = vadd.f32 %v2185, %v2319
    %v2339 = vadd.f32 %v2186, %v2323
    %v2340 = vadd.f32 %v2187, %v2325
    %v2341 = vadd.f32 %v2188, %v2327
    %v2342 = vadd.f32 %v2189, %v2329
    %s2343 = scalar_lea.vmem [#allocation5], 768
    %v2344 = vld [vmem:[%s2343] sm:$0xff]
    %v2345 = vld [vmem:[%s2343 + $0x8] sm:$0xff]
    %v2346 = vld [vmem:[%s2343 + $0x10] sm:$0xff]
    %v2347 = vld [vmem:[%s2343 + $0x18] sm:$0xff]
    %v2348 = vld [vmem:[%s2343 + $0x20] sm:$0xff]
    %v2349 = vld [vmem:[%s2343 + $0x28] sm:$0xff]
    %v2350 = vld [vmem:[%s2343 + $0x30] sm:$0xff]
    %v2351 = vld [vmem:[%s2343 + $0x38] sm:$0xff]
    %v2352 = vld [vmem:[%s2343 + $0x40] sm:$0xff]
    %v2353 = vld [vmem:[%s2343 + $0x48] sm:$0xff]
    %v2354 = vld [vmem:[%s2343 + $0x50] sm:$0xff]
    %v2355 = vld [vmem:[%s2343 + $0x58] sm:$0xff]
    %2356 = vrot.lane.b32.xlu0 %v1084, 96
    %v2357 = vpop.permute.xlu0 %2356
    %v2370 = vunpack.c.l.b16 %v2344
    %v2371 = vunpack.c.h.b16 %v2344
    %v2372 = vunpack.c.l.b16 %v2345
    %v2373 = vunpack.c.h.b16 %v2345
    %v2374 = vunpack.c.l.b16 %v2346
    %v2375 = vunpack.c.h.b16 %v2346
    %v2376 = vunpack.c.l.b16 %v2347
    %v2377 = vunpack.c.h.b16 %v2347
    %v2378 = vunpack.c.l.b16 %v2348
    %v2379 = vunpack.c.h.b16 %v2348
    %v2380 = vunpack.c.l.b16 %v2349
    %v2381 = vunpack.c.h.b16 %v2349
    %v2382 = vunpack.c.l.b16 %v2350
    %v2383 = vunpack.c.h.b16 %v2350
    %v2384 = vunpack.c.l.b16 %v2351
    %v2385 = vunpack.c.h.b16 %v2351
    %v2386 = vunpack.c.l.b16 %v2352
    %v2387 = vunpack.c.h.b16 %v2352
    %v2388 = vunpack.c.l.b16 %v2353
    %v2389 = vunpack.c.h.b16 %v2353
    %v2390 = vunpack.c.l.b16 %v2354
    %v2391 = vunpack.c.h.b16 %v2354
    %v2392 = vunpack.c.l.b16 %v2355
    %v2393 = vunpack.c.h.b16 %v2355
    %v2394 = vpack.c.b16 %v2372, %v2370
    %v2395 = vpack.c.b16 %v2373, %v2371
    %v2396 = vpack.c.b16 %v2376, %v2374
    %v2397 = vpack.c.b16 %v2377, %v2375
    %v2398 = vpack.c.b16 %v2380, %v2378
    %v2399 = vpack.c.b16 %v2381, %v2379
    %v2400 = vpack.c.b16 %v2384, %v2382
    %v2401 = vpack.c.b16 %v2385, %v2383
    %v2402 = vpack.c.b16 %v2388, %v2386
    %v2403 = vpack.c.b16 %v2389, %v2387
    %v2404 = vpack.c.b16 %v2392, %v2390
    %v2405 = vpack.c.b16 %v2393, %v2391
    %v2419 = vsel %vm1179, %v2357, 0
    %2421 = vmatprep.subr.bf16.mxu0 %v2395
    %2422 = vmatpush1.bf16.msra.mxu0 %v2394
    %2423 = vmatprep.subr.bf16.mxu0 %v2397
    %2424 = vmatpush1.bf16.msra.mxu0 %v2396
    %2425 = vmatprep.subr.bf16.mxu0 %v2399
    %2426 = vmatpush1.bf16.msra.mxu0 %v2398
    %2427 = vmatprep.subr.bf16.mxu0 %v2401
    %2428 = vmatpush1.bf16.msra.mxu0 %v2400
    %2429 = vmatprep.subr.bf16.mxu0 %v2403
    %2430 = vmatpush1.bf16.msra.mxu0 %v2402
    %2431 = vmatprep.subr.bf16.mxu0 %v2405
    %2432 = vmatpush1.bf16.msra.mxu0 %v2404
    %2433 = vmatprep.subr.bf16.mxu0 0
    %2434 = vmatpush1.bf16.msra.mxu0 0
    %2435 = vmatprep.subr.bf16.mxu0 0
    %2436 = vmatpush1.bf16.msra.mxu0 0
    %2437 = vmatprep.subr.bf16.mxu0 0
    %2438 = vmatpush1.bf16.msra.mxu0 0
    %2439 = vmatprep.subr.bf16.mxu0 0
    %2440 = vmatpush1.bf16.msra.mxu0 0
    %2441 = vmatprep.subr.bf16.mxu0 0
    %2442 = vmatpush1.bf16.msra.mxu0 0
    %2443 = vmatprep.subr.bf16.mxu0 0
    %2444 = vmatpush1.bf16.msra.mxu0 0
    %2445 = vmatprep.subr.bf16.mxu0 0
    %2446 = vmatpush1.bf16.msra.mxu0 0
    %2447 = vmatprep.subr.bf16.mxu0 0
    %2448 = vmatpush1.bf16.msra.mxu0 0
    %2449 = vmatprep.subr.bf16.mxu0 0
    %2450 = vmatpush1.bf16.msra.mxu0 0
    %2451 = vmatprep.subr.bf16.mxu0 0
    %2452 = vmatpush1.bf16.msra.mxu0 0
    %2453 = vmatprep.mubr.bf16.mxu0 0
    %2454 = vmatmul.mubr.bf16.gmra.mrb[0].mxu0 %v1467
    %v2455 = vpop.f32.mrb[0].mxu0
    %v2456 = vadd.f32 0.0, %v2455
    %v2457 = vpop.f32.mrb[0].mxu0
    %v2458 = vadd.f32 0.0, %v2457
    %v2459 = vpop.f32.mrb[0].mxu0
    %v2460 = vadd.f32 0.0, %v2459
    %v2461 = vpop.f32.mrb[0].mxu0
    %v2462 = vadd.f32 0.0, %v2461
    %2463 = vmatprep.mubr.bf16.mxu0 0
    %2464 = vmatmul.mubr.bf16.gmra.mrb[0].mxu0 %v1470
    %v2465 = vpop.f32.mrb[0].mxu0
    %v2466 = vadd.f32 0.0, %v2465
    %v2467 = vpop.f32.mrb[0].mxu0
    %v2468 = vadd.f32 0.0, %v2467
    %v2469 = vpop.f32.mrb[0].mxu0
    %v2470 = vadd.f32 0.0, %v2469
    %v2471 = vpop.f32.mrb[0].mxu0
    %v2472 = vadd.f32 0.0, %v2471
    %2473 = vmatprep.mubr.bf16.mxu0 0
    %2474 = vmatmul.mubr.bf16.gmra.mrb[0].mxu0 %v2419
    %v2475 = vpop.f32.mrb[0].mxu0
    %v2476 = vadd.f32 0.0, %v2475
    %v2477 = vpop.f32.mrb[0].mxu0
    %v2478 = vadd.f32 0.0, %v2477
    %v2479 = vpop.f32.mrb[0].mxu0
    %v2480 = vadd.f32 0.0, %v2479
    %v2481 = vpop.f32.mrb[0].mxu0
    %v2482 = vadd.f32 0.0, %v2481
    %2483 = vdwg.mxu0
    %v2484 = vadd.f32 %v2331, %v2456
    %v2485 = vadd.f32 %v2332, %v2458
    %v2486 = vadd.f32 %v2333, %v2460
    %v2487 = vadd.f32 %v2334, %v2462
    %v2488 = vadd.f32 %v2335, %v2466
    %v2489 = vadd.f32 %v2336, %v2468
    %v2490 = vadd.f32 %v2337, %v2470
    %v2491 = vadd.f32 %v2338, %v2472
    %v2492 = vadd.f32 %v2339, %v2476
    %v2493 = vadd.f32 %v2340, %v2478
    %v2494 = vadd.f32 %v2341, %v2480
    %v2495 = vadd.f32 %v2342, %v2482
    %v2496 = vld [vmem:[%s4] sm:$0x3]
    %v2498 = vlaneseq
    %v2499 = vshrl.u32 %v2498, 7
    %v2500 = vsub.s32 0, %v2499
    %v2501 = vrot.slane %v2496, %v2500
    %v2502 = vlaneseq
    %v2503 = vshrl.u32 %v2502, 7
    %v2504 = vsub.s32 1, %v2503
    %v2505 = vrot.slane %v2496, %v2504
    %v2508 = vadd.f32 %v2484, %v2501
    %v2509 = vadd.f32 %v2485, %v2505
    %v2510 = vadd.f32 %v2486, %v2501
    %v2511 = vadd.f32 %v2487, %v2505
    %v2512 = vadd.f32 %v2488, %v2501
    %v2513 = vadd.f32 %v2489, %v2505
    %v2514 = vadd.f32 %v2490, %v2501
    %v2515 = vadd.f32 %v2491, %v2505
    %v2516 = vadd.f32 %v2492, %v2501
    %v2517 = vadd.f32 %v2493, %v2505
    %v2518 = vadd.f32 %v2494, %v2501
    %v2519 = vadd.f32 %v2495, %v2505
    %v2520 = vmax.f32 %v2508, 0.0
    %v2521 = vmax.f32 %v2509, 0.0
    %v2522 = vmax.f32 %v2510, 0.0
    %v2523 = vmax.f32 %v2511, 0.0
    %v2524 = vmax.f32 %v2512, 0.0
    %v2525 = vmax.f32 %v2513, 0.0
    %v2526 = vmax.f32 %v2514, 0.0
    %v2527 = vmax.f32 %v2515, 0.0
    %v2528 = vmax.f32 %v2516, 0.0
    %v2529 = vmax.f32 %v2517, 0.0
    %v2530 = vmax.f32 %v2518, 0.0
    %v2531 = vmax.f32 %v2519, 0.0
    %v2532 = vpack.c.bf16 %v2522, %v2520
    %v2533 = vpack.c.bf16 %v2523, %v2521
    %v2534 = vpack.c.bf16 %v2526, %v2524
    %v2535 = vpack.c.bf16 %v2527, %v2525
    %v2536 = vpack.c.bf16 %v2530, %v2528
    %v2537 = vpack.c.bf16 %v2531, %v2529
    %v2538 = vld [vmem:[#allocation7] sm:$0xff]
    %v2539 = vld [vmem:[#allocation7 + $0x8] sm:$0xff]
    %v2540 = vld [vmem:[#allocation7 + $0x10] sm:$0xff]
    %v2541 = vld [vmem:[#allocation7 + $0x18] sm:$0xff]
    %v2542 = vld [vmem:[#allocation7 + $0x20] sm:$0xff]
    %v2543 = vld [vmem:[#allocation7 + $0x28] sm:$0xff]
    %v2544 = vld [vmem:[#allocation7 + $0x30] sm:$0xff]
    %v2545 = vld [vmem:[#allocation7 + $0x38] sm:$0xff]
    %v2546 = vld [vmem:[#allocation7 + $0x40] sm:$0xff]
    %v2547 = vld [vmem:[#allocation7 + $0x48] sm:$0xff]
    %v2548 = vld [vmem:[#allocation7 + $0x50] sm:$0xff]
    %v2549 = vld [vmem:[#allocation7 + $0x58] sm:$0xff]
    %v2550 = vld [vmem:[#allocation7 + $0x60] sm:$0xff]
    %v2551 = vld [vmem:[#allocation7 + $0x68] sm:$0xff]
    %v2552 = vld [vmem:[#allocation7 + $0x70] sm:$0xff]
    %v2553 = vld [vmem:[#allocation7 + $0x78] sm:$0xff]
    %s2554 = scalar_lea.vmem [#allocation7], 128
    %v2555 = vld [vmem:[%s2554] sm:$0xff]
    %v2556 = vld [vmem:[%s2554 + $0x8] sm:$0xff]
    %v2557 = vld [vmem:[%s2554 + $0x10] sm:$0xff]
    %v2558 = vld [vmem:[%s2554 + $0x18] sm:$0xff]
    %v2559 = vld [vmem:[%s2554 + $0x20] sm:$0xff]
    %v2560 = vld [vmem:[%s2554 + $0x28] sm:$0xff]
    %v2561 = vld [vmem:[%s2554 + $0x30] sm:$0xff]
    %v2562 = vld [vmem:[%s2554 + $0x38] sm:$0xff]
    %v2563 = vld [vmem:[%s2554 + $0x40] sm:$0xff]
    %v2564 = vld [vmem:[%s2554 + $0x48] sm:$0xff]
    %v2565 = vld [vmem:[%s2554 + $0x50] sm:$0xff]
    %v2566 = vld [vmem:[%s2554 + $0x58] sm:$0xff]
    %v2567 = vld [vmem:[%s2554 + $0x60] sm:$0xff]
    %v2568 = vld [vmem:[%s2554 + $0x68] sm:$0xff]
    %v2569 = vld [vmem:[%s2554 + $0x70] sm:$0xff]
    %v2570 = vld [vmem:[%s2554 + $0x78] sm:$0xff]
    %2575 = vrot.lane.b32.xlu0 %v2532, 96
    %v2576 = vpop.permute.xlu0 %2575
    %2577 = vrot.lane.b32.xlu0 %v2533, 96
    %v2578 = vpop.permute.xlu0 %2577
    %2579 = vrot.lane.b32.xlu0 %v2534, 96
    %v2580 = vpop.permute.xlu0 %2579
    %2581 = vrot.lane.b32.xlu0 %v2535, 96
    %v2582 = vpop.permute.xlu0 %2581
    %vm2583 = vcmask 785408
    %v2584 = vsel %vm2583, %v2576, %v2578
    %v2585 = vsel %vm2583, %v2580, %v2582
    %v2604 = vunpack.c.l.b16 %v2555
    %v2605 = vunpack.c.h.b16 %v2555
    %v2606 = vunpack.c.l.b16 %v2556
    %v2607 = vunpack.c.h.b16 %v2556
    %v2608 = vunpack.c.l.b16 %v2557
    %v2609 = vunpack.c.h.b16 %v2557
    %v2610 = vunpack.c.l.b16 %v2558
    %v2611 = vunpack.c.h.b16 %v2558
    %v2612 = vunpack.c.l.b16 %v2559
    %v2613 = vunpack.c.h.b16 %v2559
    %v2614 = vunpack.c.l.b16 %v2560
    %v2615 = vunpack.c.h.b16 %v2560
    %v2616 = vunpack.c.l.b16 %v2561
    %v2617 = vunpack.c.h.b16 %v2561
    %v2618 = vunpack.c.l.b16 %v2562
    %v2619 = vunpack.c.h.b16 %v2562
    %v2620 = vunpack.c.l.b16 %v2563
    %v2621 = vunpack.c.h.b16 %v2563
    %v2622 = vunpack.c.l.b16 %v2564
    %v2623 = vunpack.c.h.b16 %v2564
    %v2624 = vunpack.c.l.b16 %v2565
    %v2625 = vunpack.c.h.b16 %v2565
    %v2626 = vunpack.c.l.b16 %v2566
    %v2627 = vunpack.c.h.b16 %v2566
    %v2628 = vunpack.c.l.b16 %v2567
    %v2629 = vunpack.c.h.b16 %v2567
    %v2630 = vunpack.c.l.b16 %v2568
    %v2631 = vunpack.c.h.b16 %v2568
    %v2632 = vunpack.c.l.b16 %v2569
    %v2633 = vunpack.c.h.b16 %v2569
    %v2634 = vunpack.c.l.b16 %v2570
    %v2635 = vunpack.c.h.b16 %v2570
    %v2636 = vpack.c.b16 %v2606, %v2604
    %v2637 = vpack.c.b16 %v2607, %v2605
    %v2638 = vpack.c.b16 %v2610, %v2608
    %v2639 = vpack.c.b16 %v2611, %v2609
    %v2640 = vpack.c.b16 %v2614, %v2612
    %v2641 = vpack.c.b16 %v2615, %v2613
    %v2642 = vpack.c.b16 %v2618, %v2616
    %v2643 = vpack.c.b16 %v2619, %v2617
    %v2644 = vpack.c.b16 %v2622, %v2620
    %v2645 = vpack.c.b16 %v2623, %v2621
    %v2646 = vpack.c.b16 %v2626, %v2624
    %v2647 = vpack.c.b16 %v2627, %v2625
    %v2648 = vpack.c.b16 %v2630, %v2628
    %v2649 = vpack.c.b16 %v2631, %v2629
    %v2650 = vpack.c.b16 %v2634, %v2632
    %v2651 = vpack.c.b16 %v2635, %v2633
    %2668 = vmatprep.subr.bf16.mxu0 %v2637
    %2669 = vmatpush1.bf16.msra.mxu0 %v2636
    %2670 = vmatprep.subr.bf16.mxu0 %v2639
    %2671 = vmatpush1.bf16.msra.mxu0 %v2638
    %2672 = vmatprep.subr.bf16.mxu0 %v2641
    %2673 = vmatpush1.bf16.msra.mxu0 %v2640
    %2674 = vmatprep.subr.bf16.mxu0 %v2643
    %2675 = vmatpush1.bf16.msra.mxu0 %v2642
    %2676 = vmatprep.subr.bf16.mxu0 %v2645
    %2677 = vmatpush1.bf16.msra.mxu0 %v2644
    %2678 = vmatprep.subr.bf16.mxu0 %v2647
    %2679 = vmatpush1.bf16.msra.mxu0 %v2646
    %2680 = vmatprep.subr.bf16.mxu0 %v2649
    %2681 = vmatpush1.bf16.msra.mxu0 %v2648
    %2682 = vmatprep.subr.bf16.mxu0 %v2651
    %2683 = vmatpush1.bf16.msra.mxu0 %v2650
    %2684 = vmatprep.subr.bf16.mxu0 0
    %2685 = vmatpush1.bf16.msra.mxu0 0
    %2686 = vmatprep.subr.bf16.mxu0 0
    %2687 = vmatpush1.bf16.msra.mxu0 0
    %2688 = vmatprep.subr.bf16.mxu0 0
    %2689 = vmatpush1.bf16.msra.mxu0 0
    %2690 = vmatprep.subr.bf16.mxu0 0
    %2691 = vmatpush1.bf16.msra.mxu0 0
    %2692 = vmatprep.subr.bf16.mxu0 0
    %2693 = vmatpush1.bf16.msra.mxu0 0
    %2694 = vmatprep.subr.bf16.mxu0 0
    %2695 = vmatpush1.bf16.msra.mxu0 0
    %2696 = vmatprep.subr.bf16.mxu0 0
    %2697 = vmatpush1.bf16.msra.mxu0 0
    %2698 = vmatprep.subr.bf16.mxu0 0
    %2699 = vmatpush1.bf16.msra.mxu0 0
    %2700 = vmatprep.mubr.bf16.mxu0 0
    %2701 = vmatmul.mubr.bf16.gmra.mrb[0].mxu0 %v2584
    %v2702 = vpop.f32.mrb[0].mxu0
    %v2703 = vadd.f32 0.0, %v2702
    %v2704 = vpop.f32.mrb[0].mxu0
    %v2705 = vadd.f32 0.0, %v2704
    %v2706 = vpop.f32.mrb[0].mxu0
    %v2707 = vadd.f32 0.0, %v2706
    %v2708 = vpop.f32.mrb[0].mxu0
    %v2709 = vadd.f32 0.0, %v2708
    %2710 = vmatprep.mubr.bf16.mxu0 0
    %2711 = vmatmul.mubr.bf16.gmra.mrb[0].mxu0 %v2585
    %v2712 = vpop.f32.mrb[0].mxu0
    %v2713 = vadd.f32 0.0, %v2712
    %v2714 = vpop.f32.mrb[0].mxu0
    %v2715 = vadd.f32 0.0, %v2714
    %v2716 = vpop.f32.mrb[0].mxu0
    %v2717 = vadd.f32 0.0, %v2716
    %v2718 = vpop.f32.mrb[0].mxu0
    %v2719 = vadd.f32 0.0, %v2718
    %2720 = vdwg.mxu0
    %v2737 = vunpack.c.l.b16 %v2538
    %v2738 = vunpack.c.h.b16 %v2538
    %v2739 = vunpack.c.l.b16 %v2539
    %v2740 = vunpack.c.h.b16 %v2539
    %v2741 = vunpack.c.l.b16 %v2540
    %v2742 = vunpack.c.h.b16 %v2540
    %v2743 = vunpack.c.l.b16 %v2541
    %v2744 = vunpack.c.h.b16 %v2541
    %v2745 = vunpack.c.l.b16 %v2542
    %v2746 = vunpack.c.h.b16 %v2542
    %v2747 = vunpack.c.l.b16 %v2543
    %v2748 = vunpack.c.h.b16 %v2543
    %v2749 = vunpack.c.l.b16 %v2544
    %v2750 = vunpack.c.h.b16 %v2544
    %v2751 = vunpack.c.l.b16 %v2545
    %v2752 = vunpack.c.h.b16 %v2545
    %v2753 = vunpack.c.l.b16 %v2546
    %v2754 = vunpack.c.h.b16 %v2546
    %v2755 = vunpack.c.l.b16 %v2547
    %v2756 = vunpack.c.h.b16 %v2547
    %v2757 = vunpack.c.l.b16 %v2548
    %v2758 = vunpack.c.h.b16 %v2548
    %v2759 = vunpack.c.l.b16 %v2549
    %v2760 = vunpack.c.h.b16 %v2549
    %v2761 = vunpack.c.l.b16 %v2550
    %v2762 = vunpack.c.h.b16 %v2550
    %v2763 = vunpack.c.l.b16 %v2551
    %v2764 = vunpack.c.h.b16 %v2551
    %v2765 = vunpack.c.l.b16 %v2552
    %v2766 = vunpack.c.h.b16 %v2552
    %v2767 = vunpack.c.l.b16 %v2553
    %v2768 = vunpack.c.h.b16 %v2553
    %v2769 = vpack.c.b16 %v2739, %v2737
    %v2770 = vpack.c.b16 %v2740, %v2738
    %v2771 = vpack.c.b16 %v2743, %v2741
    %v2772 = vpack.c.b16 %v2744, %v2742
    %v2773 = vpack.c.b16 %v2747, %v2745
    %v2774 = vpack.c.b16 %v2748, %v2746
    %v2775 = vpack.c.b16 %v2751, %v2749
    %v2776 = vpack.c.b16 %v2752, %v2750
    %v2777 = vpack.c.b16 %v2755, %v2753
    %v2778 = vpack.c.b16 %v2756, %v2754
    %v2779 = vpack.c.b16 %v2759, %v2757
    %v2780 = vpack.c.b16 %v2760, %v2758
    %v2781 = vpack.c.b16 %v2763, %v2761
    %v2782 = vpack.c.b16 %v2764, %v2762
    %v2783 = vpack.c.b16 %v2767, %v2765
    %v2784 = vpack.c.b16 %v2768, %v2766
    %2801 = vmatprep.subr.bf16.mxu0 %v2770
    %2802 = vmatpush1.bf16.msra.mxu0 %v2769
    %2803 = vmatprep.subr.bf16.mxu0 %v2772
    %2804 = vmatpush1.bf16.msra.mxu0 %v2771
    %2805 = vmatprep.subr.bf16.mxu0 %v2774
    %2806 = vmatpush1.bf16.msra.mxu0 %v2773
    %2807 = vmatprep.subr.bf16.mxu0 %v2776
    %2808 = vmatpush1.bf16.msra.mxu0 %v2775
    %2809 = vmatprep.subr.bf16.mxu0 %v2778
    %2810 = vmatpush1.bf16.msra.mxu0 %v2777
    %2811 = vmatprep.subr.bf16.mxu0 %v2780
    %2812 = vmatpush1.bf16.msra.mxu0 %v2779
    %2813 = vmatprep.subr.bf16.mxu0 %v2782
    %2814 = vmatpush1.bf16.msra.mxu0 %v2781
    %2815 = vmatprep.subr.bf16.mxu0 %v2784
    %2816 = vmatpush1.bf16.msra.mxu0 %v2783
    %2817 = vmatprep.subr.bf16.mxu0 0
    %2818 = vmatpush1.bf16.msra.mxu0 0
    %2819 = vmatprep.subr.bf16.mxu0 0
    %2820 = vmatpush1.bf16.msra.mxu0 0
    %2821 = vmatprep.subr.bf16.mxu0 0
    %2822 = vmatpush1.bf16.msra.mxu0 0
    %2823 = vmatprep.subr.bf16.mxu0 0
    %2824 = vmatpush1.bf16.msra.mxu0 0
    %2825 = vmatprep.subr.bf16.mxu0 0
    %2826 = vmatpush1.bf16.msra.mxu0 0
    %2827 = vmatprep.subr.bf16.mxu0 0
    %2828 = vmatpush1.bf16.msra.mxu0 0
    %2829 = vmatprep.subr.bf16.mxu0 0
    %2830 = vmatpush1.bf16.msra.mxu0 0
    %2831 = vmatprep.subr.bf16.mxu0 0
    %2832 = vmatpush1.bf16.msra.mxu0 0
    %2833 = vmatprep.mubr.bf16.mxu0 0
    %2834 = vmatmul.mubr.bf16.gmra.mrb[0].mxu0 %v2532
    %v2835 = vpop.f32.mrb[0].mxu0
    %v2836 = vadd.f32 %v2703, %v2835
    %v2837 = vpop.f32.mrb[0].mxu0
    %v2838 = vadd.f32 %v2705, %v2837
    %v2839 = vpop.f32.mrb[0].mxu0
    %v2840 = vadd.f32 %v2707, %v2839
    %v2841 = vpop.f32.mrb[0].mxu0
    %v2842 = vadd.f32 %v2709, %v2841
    %2843 = vmatprep.mubr.bf16.mxu0 0
    %2844 = vmatmul.mubr.bf16.gmra.mrb[0].mxu0 %v2534
    %v2845 = vpop.f32.mrb[0].mxu0
    %v2846 = vadd.f32 %v2713, %v2845
    %v2847 = vpop.f32.mrb[0].mxu0
    %v2848 = vadd.f32 %v2715, %v2847
    %v2849 = vpop.f32.mrb[0].mxu0
    %v2850 = vadd.f32 %v2717, %v2849
    %v2851 = vpop.f32.mrb[0].mxu0
    %v2852 = vadd.f32 %v2719, %v2851
    %2853 = vdwg.mxu0
    %s2854 = scalar_lea.vmem [#allocation7], 256
    %v2855 = vld [vmem:[%s2854] sm:$0xff]
    %v2856 = vld [vmem:[%s2854 + $0x8] sm:$0xff]
    %v2857 = vld [vmem:[%s2854 + $0x10] sm:$0xff]
    %v2858 = vld [vmem:[%s2854 + $0x18] sm:$0xff]
    %v2859 = vld [vmem:[%s2854 + $0x20] sm:$0xff]
    %v2860 = vld [vmem:[%s2854 + $0x28] sm:$0xff]
    %v2861 = vld [vmem:[%s2854 + $0x30] sm:$0xff]
    %v2862 = vld [vmem:[%s2854 + $0x38] sm:$0xff]
    %v2863 = vld [vmem:[%s2854 + $0x40] sm:$0xff]
    %v2864 = vld [vmem:[%s2854 + $0x48] sm:$0xff]
    %v2865 = vld [vmem:[%s2854 + $0x50] sm:$0xff]
    %v2866 = vld [vmem:[%s2854 + $0x58] sm:$0xff]
    %v2867 = vld [vmem:[%s2854 + $0x60] sm:$0xff]
    %v2868 = vld [vmem:[%s2854 + $0x68] sm:$0xff]
    %v2869 = vld [vmem:[%s2854 + $0x70] sm:$0xff]
    %v2870 = vld [vmem:[%s2854 + $0x78] sm:$0xff]
    %2871 = vrot.lane.b32.xlu0 %v2532, 64
    %v2872 = vpop.permute.xlu0 %2871
    %2873 = vrot.lane.b32.xlu0 %v2533, 64
    %v2874 = vpop.permute.xlu0 %2873
    %2875 = vrot.lane.b32.xlu0 %v2534, 64
    %v2876 = vpop.permute.xlu0 %2875
    %2877 = vrot.lane.b32.xlu0 %v2535, 64
    %v2878 = vpop.permute.xlu0 %2877
    %vm2879 = vcmask 523264
    %v2880 = vsel %vm2879, %v2872, %v2874
    %v2881 = vsel %vm2879, %v2876, %v2878
    %v2900 = vunpack.c.l.b16 %v2855
    %v2901 = vunpack.c.h.b16 %v2855
    %v2902 = vunpack.c.l.b16 %v2856
    %v2903 = vunpack.c.h.b16 %v2856
    %v2904 = vunpack.c.l.b16 %v2857
    %v2905 = vunpack.c.h.b16 %v2857
    %v2906 = vunpack.c.l.b16 %v2858
    %v2907 = vunpack.c.h.b16 %v2858
    %v2908 = vunpack.c.l.b16 %v2859
    %v2909 = vunpack.c.h.b16 %v2859
    %v2910 = vunpack.c.l.b16 %v2860
    %v2911 = vunpack.c.h.b16 %v2860
    %v2912 = vunpack.c.l.b16 %v2861
    %v2913 = vunpack.c.h.b16 %v2861
    %v2914 = vunpack.c.l.b16 %v2862
    %v2915 = vunpack.c.h.b16 %v2862
    %v2916 = vunpack.c.l.b16 %v2863
    %v2917 = vunpack.c.h.b16 %v2863
    %v2918 = vunpack.c.l.b16 %v2864
    %v2919 = vunpack.c.h.b16 %v2864
    %v2920 = vunpack.c.l.b16 %v2865
    %v2921 = vunpack.c.h.b16 %v2865
    %v2922 = vunpack.c.l.b16 %v2866
    %v2923 = vunpack.c.h.b16 %v2866
    %v2924 = vunpack.c.l.b16 %v2867
    %v2925 = vunpack.c.h.b16 %v2867
    %v2926 = vunpack.c.l.b16 %v2868
    %v2927 = vunpack.c.h.b16 %v2868
    %v2928 = vunpack.c.l.b16 %v2869
    %v2929 = vunpack.c.h.b16 %v2869
    %v2930 = vunpack.c.l.b16 %v2870
    %v2931 = vunpack.c.h.b16 %v2870
    %v2932 = vpack.c.b16 %v2902, %v2900
    %v2933 = vpack.c.b16 %v2903, %v2901
    %v2934 = vpack.c.b16 %v2906, %v2904
    %v2935 = vpack.c.b16 %v2907, %v2905
    %v2936 = vpack.c.b16 %v2910, %v2908
    %v2937 = vpack.c.b16 %v2911, %v2909
    %v2938 = vpack.c.b16 %v2914, %v2912
    %v2939 = vpack.c.b16 %v2915, %v2913
    %v2940 = vpack.c.b16 %v2918, %v2916
    %v2941 = vpack.c.b16 %v2919, %v2917
    %v2942 = vpack.c.b16 %v2922, %v2920
    %v2943 = vpack.c.b16 %v2923, %v2921
    %v2944 = vpack.c.b16 %v2926, %v2924
    %v2945 = vpack.c.b16 %v2927, %v2925
    %v2946 = vpack.c.b16 %v2930, %v2928
    %v2947 = vpack.c.b16 %v2931, %v2929
    %2964 = vmatprep.subr.bf16.mxu0 %v2933
    %2965 = vmatpush1.bf16.msra.mxu0 %v2932
    %2966 = vmatprep.subr.bf16.mxu0 %v2935
    %2967 = vmatpush1.bf16.msra.mxu0 %v2934
    %2968 = vmatprep.subr.bf16.mxu0 %v2937
    %2969 = vmatpush1.bf16.msra.mxu0 %v2936
    %2970 = vmatprep.subr.bf16.mxu0 %v2939
    %2971 = vmatpush1.bf16.msra.mxu0 %v2938
    %2972 = vmatprep.subr.bf16.mxu0 %v2941
    %2973 = vmatpush1.bf16.msra.mxu0 %v2940
    %2974 = vmatprep.subr.bf16.mxu0 %v2943
    %2975 = vmatpush1.bf16.msra.mxu0 %v2942
    %2976 = vmatprep.subr.bf16.mxu0 %v2945
    %2977 = vmatpush1.bf16.msra.mxu0 %v2944
    %2978 = vmatprep.subr.bf16.mxu0 %v2947
    %2979 = vmatpush1.bf16.msra.mxu0 %v2946
    %2980 = vmatprep.subr.bf16.mxu0 0
    %2981 = vmatpush1.bf16.msra.mxu0 0
    %2982 = vmatprep.subr.bf16.mxu0 0
    %2983 = vmatpush1.bf16.msra.mxu0 0
    %2984 = vmatprep.subr.bf16.mxu0 0
    %2985 = vmatpush1.bf16.msra.mxu0 0
    %2986 = vmatprep.subr.bf16.mxu0 0
    %2987 = vmatpush1.bf16.msra.mxu0 0
    %2988 = vmatprep.subr.bf16.mxu0 0
    %2989 = vmatpush1.bf16.msra.mxu0 0
    %2990 = vmatprep.subr.bf16.mxu0 0
    %2991 = vmatpush1.bf16.msra.mxu0 0
    %2992 = vmatprep.subr.bf16.mxu0 0
    %2993 = vmatpush1.bf16.msra.mxu0 0
    %2994 = vmatprep.subr.bf16.mxu0 0
    %2995 = vmatpush1.bf16.msra.mxu0 0
    %2996 = vmatprep.mubr.bf16.mxu0 0
    %2997 = vmatmul.mubr.bf16.gmra.mrb[0].mxu0 %v2880
    %v2998 = vpop.f32.mrb[0].mxu0
    %v2999 = vadd.f32 0.0, %v2998
    %v3000 = vpop.f32.mrb[0].mxu0
    %v3001 = vadd.f32 0.0, %v3000
    %v3002 = vpop.f32.mrb[0].mxu0
    %v3003 = vadd.f32 0.0, %v3002
    %v3004 = vpop.f32.mrb[0].mxu0
    %v3005 = vadd.f32 0.0, %v3004
    %3006 = vmatprep.mubr.bf16.mxu0 0
    %3007 = vmatmul.mubr.bf16.gmra.mrb[0].mxu0 %v2881
    %v3008 = vpop.f32.mrb[0].mxu0
    %v3009 = vadd.f32 0.0, %v3008
    %v3010 = vpop.f32.mrb[0].mxu0
    %v3011 = vadd.f32 0.0, %v3010
    %v3012 = vpop.f32.mrb[0].mxu0
    %v3013 = vadd.f32 0.0, %v3012
    %v3014 = vpop.f32.mrb[0].mxu0
    %v3015 = vadd.f32 0.0, %v3014
    %3016 = vdwg.mxu0
    %v3017 = vadd.f32 %v2836, %v2999
    %v3018 = vadd.f32 %v2838, %v3001
    %v3019 = vadd.f32 %v2840, %v3003
    %v3020 = vadd.f32 %v2842, %v3005
    %v3021 = vadd.f32 %v2846, %v3009
    %v3022 = vadd.f32 %v2848, %v3011
    %v3023 = vadd.f32 %v2850, %v3013
    %v3024 = vadd.f32 %v2852, %v3015
    %s3025 = scalar_lea.vmem [#allocation7], 384
    %v3026 = vld [vmem:[%s3025] sm:$0xff]
    %v3027 = vld [vmem:[%s3025 + $0x8] sm:$0xff]
    %v3028 = vld [vmem:[%s3025 + $0x10] sm:$0xff]
    %v3029 = vld [vmem:[%s3025 + $0x18] sm:$0xff]
    %v3030 = vld [vmem:[%s3025 + $0x20] sm:$0xff]
    %v3031 = vld [vmem:[%s3025 + $0x28] sm:$0xff]
    %v3032 = vld [vmem:[%s3025 + $0x30] sm:$0xff]
    %v3033 = vld [vmem:[%s3025 + $0x38] sm:$0xff]
    %v3034 = vld [vmem:[%s3025 + $0x40] sm:$0xff]
    %v3035 = vld [vmem:[%s3025 + $0x48] sm:$0xff]
    %v3036 = vld [vmem:[%s3025 + $0x50] sm:$0xff]
    %v3037 = vld [vmem:[%s3025 + $0x58] sm:$0xff]
    %v3038 = vld [vmem:[%s3025 + $0x60] sm:$0xff]
    %v3039 = vld [vmem:[%s3025 + $0x68] sm:$0xff]
    %v3040 = vld [vmem:[%s3025 + $0x70] sm:$0xff]
    %v3041 = vld [vmem:[%s3025 + $0x78] sm:$0xff]
    %v3043 = vrot.slane %v2532, 4
    %v3044 = vrot.slane %v2534, 4
    %v3045 = vsel %vm1561, %v3043, %v3044
    %v3046 = vrot.slane %v2536, 4
    %v3047 = vsel %vm1561, %v3044, %v3046
    %v3066 = vunpack.c.l.b16 %v3026
    %v3067 = vunpack.c.h.b16 %v3026
    %v3068 = vunpack.c.l.b16 %v3027
    %v3069 = vunpack.c.h.b16 %v3027
    %v3070 = vunpack.c.l.b16 %v3028
    %v3071 = vunpack.c.h.b16 %v3028
    %v3072 = vunpack.c.l.b16 %v3029
    %v3073 = vunpack.c.h.b16 %v3029
    %v3074 = vunpack.c.l.b16 %v3030
    %v3075 = vunpack.c.h.b16 %v3030
    %v3076 = vunpack.c.l.b16 %v3031
    %v3077 = vunpack.c.h.b16 %v3031
    %v3078 = vunpack.c.l.b16 %v3032
    %v3079 = vunpack.c.h.b16 %v3032
    %v3080 = vunpack.c.l.b16 %v3033
    %v3081 = vunpack.c.h.b16 %v3033
    %v3082 = vunpack.c.l.b16 %v3034
    %v3083 = vunpack.c.h.b16 %v3034
    %v3084 = vunpack.c.l.b16 %v3035
    %v3085 = vunpack.c.h.b16 %v3035
    %v3086 = vunpack.c.l.b16 %v3036
    %v3087 = vunpack.c.h.b16 %v3036
    %v3088 = vunpack.c.l.b16 %v3037
    %v3089 = vunpack.c.h.b16 %v3037
    %v3090 = vunpack.c.l.b16 %v3038
    %v3091 = vunpack.c.h.b16 %v3038
    %v3092 = vunpack.c.l.b16 %v3039
    %v3093 = vunpack.c.h.b16 %v3039
    %v3094 = vunpack.c.l.b16 %v3040
    %v3095 = vunpack.c.h.b16 %v3040
    %v3096 = vunpack.c.l.b16 %v3041
    %v3097 = vunpack.c.h.b16 %v3041
    %v3098 = vpack.c.b16 %v3068, %v3066
    %v3099 = vpack.c.b16 %v3069, %v3067
    %v3100 = vpack.c.b16 %v3072, %v3070
    %v3101 = vpack.c.b16 %v3073, %v3071
    %v3102 = vpack.c.b16 %v3076, %v3074
    %v3103 = vpack.c.b16 %v3077, %v3075
    %v3104 = vpack.c.b16 %v3080, %v3078
    %v3105 = vpack.c.b16 %v3081, %v3079
    %v3106 = vpack.c.b16 %v3084, %v3082
    %v3107 = vpack.c.b16 %v3085, %v3083
    %v3108 = vpack.c.b16 %v3088, %v3086
    %v3109 = vpack.c.b16 %v3089, %v3087
    %v3110 = vpack.c.b16 %v3092, %v3090
    %v3111 = vpack.c.b16 %v3093, %v3091
    %v3112 = vpack.c.b16 %v3096, %v3094
    %v3113 = vpack.c.b16 %v3097, %v3095
    %3130 = vmatprep.subr.bf16.mxu0 %v3099
    %3131 = vmatpush1.bf16.msra.mxu0 %v3098
    %3132 = vmatprep.subr.bf16.mxu0 %v3101
    %3133 = vmatpush1.bf16.msra.mxu0 %v3100
    %3134 = vmatprep.subr.bf16.mxu0 %v3103
    %3135 = vmatpush1.bf16.msra.mxu0 %v3102
    %3136 = vmatprep.subr.bf16.mxu0 %v3105
    %3137 = vmatpush1.bf16.msra.mxu0 %v3104
    %3138 = vmatprep.subr.bf16.mxu0 %v3107
    %3139 = vmatpush1.bf16.msra.mxu0 %v3106
    %3140 = vmatprep.subr.bf16.mxu0 %v3109
    %3141 = vmatpush1.bf16.msra.mxu0 %v3108
    %3142 = vmatprep.subr.bf16.mxu0 %v3111
    %3143 = vmatpush1.bf16.msra.mxu0 %v3110
    %3144 = vmatprep.subr.bf16.mxu0 %v3113
    %3145 = vmatpush1.bf16.msra.mxu0 %v3112
    %3146 = vmatprep.subr.bf16.mxu0 0
    %3147 = vmatpush1.bf16.msra.mxu0 0
    %3148 = vmatprep.subr.bf16.mxu0 0
    %3149 = vmatpush1.bf16.msra.mxu0 0
    %3150 = vmatprep.subr.bf16.mxu0 0
    %3151 = vmatpush1.bf16.msra.mxu0 0
    %3152 = vmatprep.subr.bf16.mxu0 0
    %3153 = vmatpush1.bf16.msra.mxu0 0
    %3154 = vmatprep.subr.bf16.mxu0 0
    %3155 = vmatpush1.bf16.msra.mxu0 0
    %3156 = vmatprep.subr.bf16.mxu0 0
    %3157 = vmatpush1.bf16.msra.mxu0 0
    %3158 = vmatprep.subr.bf16.mxu0 0
    %3159 = vmatpush1.bf16.msra.mxu0 0
    %3160 = vmatprep.subr.bf16.mxu0 0
    %3161 = vmatpush1.bf16.msra.mxu0 0
    %3162 = vmatprep.mubr.bf16.mxu0 0
    %3163 = vmatmul.mubr.bf16.gmra.mrb[0].mxu0 %v3045
    %v3164 = vpop.f32.mrb[0].mxu0
    %v3165 = vadd.f32 0.0, %v3164
    %v3166 = vpop.f32.mrb[0].mxu0
    %v3167 = vadd.f32 0.0, %v3166
    %v3168 = vpop.f32.mrb[0].mxu0
    %v3169 = vadd.f32 0.0, %v3168
    %v3170 = vpop.f32.mrb[0].mxu0
    %v3171 = vadd.f32 0.0, %v3170
    %3172 = vmatprep.mubr.bf16.mxu0 0
    %3173 = vmatmul.mubr.bf16.gmra.mrb[0].mxu0 %v3047
    %v3174 = vpop.f32.mrb[0].mxu0
    %v3175 = vadd.f32 0.0, %v3174
    %v3176 = vpop.f32.mrb[0].mxu0
    %v3177 = vadd.f32 0.0, %v3176
    %v3178 = vpop.f32.mrb[0].mxu0
    %v3179 = vadd.f32 0.0, %v3178
    %v3180 = vpop.f32.mrb[0].mxu0
    %v3181 = vadd.f32 0.0, %v3180
    %3182 = vdwg.mxu0
    %v3183 = vadd.f32 %v3017, %v3165
    %v3184 = vadd.f32 %v3018, %v3167
    %v3185 = vadd.f32 %v3019, %v3169
    %v3186 = vadd.f32 %v3020, %v3171
    %v3187 = vadd.f32 %v3021, %v3175
    %v3188 = vadd.f32 %v3022, %v3177
    %v3189 = vadd.f32 %v3023, %v3179
    %v3190 = vadd.f32 %v3024, %v3181
    %s3191 = scalar_lea.vmem [#allocation7], 512
    %v3192 = vld [vmem:[%s3191] sm:$0xff]
    %v3193 = vld [vmem:[%s3191 + $0x8] sm:$0xff]
    %v3194 = vld [vmem:[%s3191 + $0x10] sm:$0xff]
    %v3195 = vld [vmem:[%s3191 + $0x18] sm:$0xff]
    %v3196 = vld [vmem:[%s3191 + $0x20] sm:$0xff]
    %v3197 = vld [vmem:[%s3191 + $0x28] sm:$0xff]
    %v3198 = vld [vmem:[%s3191 + $0x30] sm:$0xff]
    %v3199 = vld [vmem:[%s3191 + $0x38] sm:$0xff]
    %v3200 = vld [vmem:[%s3191 + $0x40] sm:$0xff]
    %v3201 = vld [vmem:[%s3191 + $0x48] sm:$0xff]
    %v3202 = vld [vmem:[%s3191 + $0x50] sm:$0xff]
    %v3203 = vld [vmem:[%s3191 + $0x58] sm:$0xff]
    %v3204 = vld [vmem:[%s3191 + $0x60] sm:$0xff]
    %v3205 = vld [vmem:[%s3191 + $0x68] sm:$0xff]
    %v3206 = vld [vmem:[%s3191 + $0x70] sm:$0xff]
    %v3207 = vld [vmem:[%s3191 + $0x78] sm:$0xff]
    %v3209 = vrot.slane %v2533, 4
    %v3210 = vrot.slane %v2535, 4
    %v3211 = vsel %vm1561, %v3209, %v3210
    %v3212 = vrot.slane %v2537, 4
    %v3213 = vsel %vm1561, %v3210, %v3212
    %3214 = vrot.lane.b32.xlu0 %v3045, 96
    %v3215 = vpop.permute.xlu0 %3214
    %3216 = vrot.lane.b32.xlu0 %v3211, 96
    %v3217 = vpop.permute.xlu0 %3216
    %3218 = vrot.lane.b32.xlu0 %v3047, 96
    %v3219 = vpop.permute.xlu0 %3218
    %3220 = vrot.lane.b32.xlu0 %v3213, 96
    %v3221 = vpop.permute.xlu0 %3220
    %v3222 = vsel %vm2583, %v3215, %v3217
    %v3223 = vsel %vm2583, %v3219, %v3221
    %v3242 = vunpack.c.l.b16 %v3192
    %v3243 = vunpack.c.h.b16 %v3192
    %v3244 = vunpack.c.l.b16 %v3193
    %v3245 = vunpack.c.h.b16 %v3193
    %v3246 = vunpack.c.l.b16 %v3194
    %v3247 = vunpack.c.h.b16 %v3194
    %v3248 = vunpack.c.l.b16 %v3195
    %v3249 = vunpack.c.h.b16 %v3195
    %v3250 = vunpack.c.l.b16 %v3196
    %v3251 = vunpack.c.h.b16 %v3196
    %v3252 = vunpack.c.l.b16 %v3197
    %v3253 = vunpack.c.h.b16 %v3197
    %v3254 = vunpack.c.l.b16 %v3198
    %v3255 = vunpack.c.h.b16 %v3198
    %v3256 = vunpack.c.l.b16 %v3199
    %v3257 = vunpack.c.h.b16 %v3199
    %v3258 = vunpack.c.l.b16 %v3200
    %v3259 = vunpack.c.h.b16 %v3200
    %v3260 = vunpack.c.l.b16 %v3201
    %v3261 = vunpack.c.h.b16 %v3201
    %v3262 = vunpack.c.l.b16 %v3202
    %v3263 = vunpack.c.h.b16 %v3202
    %v3264 = vunpack.c.l.b16 %v3203
    %v3265 = vunpack.c.h.b16 %v3203
    %v3266 = vunpack.c.l.b16 %v3204
    %v3267 = vunpack.c.h.b16 %v3204
    %v3268 = vunpack.c.l.b16 %v3205
    %v3269 = vunpack.c.h.b16 %v3205
    %v3270 = vunpack.c.l.b16 %v3206
    %v3271 = vunpack.c.h.b16 %v3206
    %v3272 = vunpack.c.l.b16 %v3207
    %v3273 = vunpack.c.h.b16 %v3207
    %v3274 = vpack.c.b16 %v3244, %v3242
    %v3275 = vpack.c.b16 %v3245, %v3243
    %v3276 = vpack.c.b16 %v3248, %v3246
    %v3277 = vpack.c.b16 %v3249, %v3247
    %v3278 = vpack.c.b16 %v3252, %v3250
    %v3279 = vpack.c.b16 %v3253, %v3251
    %v3280 = vpack.c.b16 %v3256, %v3254
    %v3281 = vpack.c.b16 %v3257, %v3255
    %v3282 = vpack.c.b16 %v3260, %v3258
    %v3283 = vpack.c.b16 %v3261, %v3259
    %v3284 = vpack.c.b16 %v3264, %v3262
    %v3285 = vpack.c.b16 %v3265, %v3263
    %v3286 = vpack.c.b16 %v3268, %v3266
    %v3287 = vpack.c.b16 %v3269, %v3267
    %v3288 = vpack.c.b16 %v3272, %v3270
    %v3289 = vpack.c.b16 %v3273, %v3271
    %3306 = vmatprep.subr.bf16.mxu0 %v3275
    %3307 = vmatpush1.bf16.msra.mxu0 %v3274
    %3308 = vmatprep.subr.bf16.mxu0 %v3277
    %3309 = vmatpush1.bf16.msra.mxu0 %v3276
    %3310 = vmatprep.subr.bf16.mxu0 %v3279
    %3311 = vmatpush1.bf16.msra.mxu0 %v3278
    %3312 = vmatprep.subr.bf16.mxu0 %v3281
    %3313 = vmatpush1.bf16.msra.mxu0 %v3280
    %3314 = vmatprep.subr.bf16.mxu0 %v3283
    %3315 = vmatpush1.bf16.msra.mxu0 %v3282
    %3316 = vmatprep.subr.bf16.mxu0 %v3285
    %3317 = vmatpush1.bf16.msra.mxu0 %v3284
    %3318 = vmatprep.subr.bf16.mxu0 %v3287
    %3319 = vmatpush1.bf16.msra.mxu0 %v3286
    %3320 = vmatprep.subr.bf16.mxu0 %v3289
    %3321 = vmatpush1.bf16.msra.mxu0 %v3288
    %3322 = vmatprep.subr.bf16.mxu0 0
    %3323 = vmatpush1.bf16.msra.mxu0 0
    %3324 = vmatprep.subr.bf16.mxu0 0
    %3325 = vmatpush1.bf16.msra.mxu0 0
    %3326 = vmatprep.subr.bf16.mxu0 0
    %3327 = vmatpush1.bf16.msra.mxu0 0
    %3328 = vmatprep.subr.bf16.mxu0 0
    %3329 = vmatpush1.bf16.msra.mxu0 0
    %3330 = vmatprep.subr.bf16.mxu0 0
    %3331 = vmatpush1.bf16.msra.mxu0 0
    %3332 = vmatprep.subr.bf16.mxu0 0
    %3333 = vmatpush1.bf16.msra.mxu0 0
    %3334 = vmatprep.subr.bf16.mxu0 0
    %3335 = vmatpush1.bf16.msra.mxu0 0
    %3336 = vmatprep.subr.bf16.mxu0 0
    %3337 = vmatpush1.bf16.msra.mxu0 0
    %3338 = vmatprep.mubr.bf16.mxu0 0
    %3339 = vmatmul.mubr.bf16.gmra.mrb[0].mxu0 %v3222
    %v3340 = vpop.f32.mrb[0].mxu0
    %v3341 = vadd.f32 0.0, %v3340
    %v3342 = vpop.f32.mrb[0].mxu0
    %v3343 = vadd.f32 0.0, %v3342
    %v3344 = vpop.f32.mrb[0].mxu0
    %v3345 = vadd.f32 0.0, %v3344
    %v3346 = vpop.f32.mrb[0].mxu0
    %v3347 = vadd.f32 0.0, %v3346
    %3348 = vmatprep.mubr.bf16.mxu0 0
    %3349 = vmatmul.mubr.bf16.gmra.mrb[0].mxu0 %v3223
    %v3350 = vpop.f32.mrb[0].mxu0
    %v3351 = vadd.f32 0.0, %v3350
    %v3352 = vpop.f32.mrb[0].mxu0
    %v3353 = vadd.f32 0.0, %v3352
    %v3354 = vpop.f32.mrb[0].mxu0
    %v3355 = vadd.f32 0.0, %v3354
    %v3356 = vpop.f32.mrb[0].mxu0
    %v3357 = vadd.f32 0.0, %v3356
    %3358 = vdwg.mxu0
    %v3359 = vadd.f32 %v3183, %v3341
    %v3360 = vadd.f32 %v3184, %v3343
    %v3361 = vadd.f32 %v3185, %v3345
    %v3362 = vadd.f32 %v3186, %v3347
    %v3363 = vadd.f32 %v3187, %v3351
    %v3364 = vadd.f32 %v3188, %v3353
    %v3365 = vadd.f32 %v3189, %v3355
    %v3366 = vadd.f32 %v3190, %v3357
    %s3367 = scalar_lea.vmem [#allocation7], 640
    %v3368 = vld [vmem:[%s3367] sm:$0xff]
    %v3369 = vld [vmem:[%s3367 + $0x8] sm:$0xff]
    %v3370 = vld [vmem:[%s3367 + $0x10] sm:$0xff]
    %v3371 = vld [vmem:[%s3367 + $0x18] sm:$0xff]
    %v3372 = vld [vmem:[%s3367 + $0x20] sm:$0xff]
    %v3373 = vld [vmem:[%s3367 + $0x28] sm:$0xff]
    %v3374 = vld [vmem:[%s3367 + $0x30] sm:$0xff]
    %v3375 = vld [vmem:[%s3367 + $0x38] sm:$0xff]
    %v3376 = vld [vmem:[%s3367 + $0x40] sm:$0xff]
    %v3377 = vld [vmem:[%s3367 + $0x48] sm:$0xff]
    %v3378 = vld [vmem:[%s3367 + $0x50] sm:$0xff]
    %v3379 = vld [vmem:[%s3367 + $0x58] sm:$0xff]
    %v3380 = vld [vmem:[%s3367 + $0x60] sm:$0xff]
    %v3381 = vld [vmem:[%s3367 + $0x68] sm:$0xff]
    %v3382 = vld [vmem:[%s3367 + $0x70] sm:$0xff]
    %v3383 = vld [vmem:[%s3367 + $0x78] sm:$0xff]
    %3384 = vrot.lane.b32.xlu0 %v3045, 64
    %v3385 = vpop.permute.xlu0 %3384
    %3386 = vrot.lane.b32.xlu0 %v3211, 64
    %v3387 = vpop.permute.xlu0 %3386
    %3388 = vrot.lane.b32.xlu0 %v3047, 64
    %v3389 = vpop.permute.xlu0 %3388
    %3390 = vrot.lane.b32.xlu0 %v3213, 64
    %v3391 = vpop.permute.xlu0 %3390
    %v3392 = vsel %vm2879, %v3385, %v3387
    %v3393 = vsel %vm2879, %v3389, %v3391
    %v3412 = vunpack.c.l.b16 %v3368
    %v3413 = vunpack.c.h.b16 %v3368
    %v3414 = vunpack.c.l.b16 %v3369
    %v3415 = vunpack.c.h.b16 %v3369
    %v3416 = vunpack.c.l.b16 %v3370
    %v3417 = vunpack.c.h.b16 %v3370
    %v3418 = vunpack.c.l.b16 %v3371
    %v3419 = vunpack.c.h.b16 %v3371
    %v3420 = vunpack.c.l.b16 %v3372
    %v3421 = vunpack.c.h.b16 %v3372
    %v3422 = vunpack.c.l.b16 %v3373
    %v3423 = vunpack.c.h.b16 %v3373
    %v3424 = vunpack.c.l.b16 %v3374
    %v3425 = vunpack.c.h.b16 %v3374
    %v3426 = vunpack.c.l.b16 %v3375
    %v3427 = vunpack.c.h.b16 %v3375
    %v3428 = vunpack.c.l.b16 %v3376
    %v3429 = vunpack.c.h.b16 %v3376
    %v3430 = vunpack.c.l.b16 %v3377
    %v3431 = vunpack.c.h.b16 %v3377
    %v3432 = vunpack.c.l.b16 %v3378
    %v3433 = vunpack.c.h.b16 %v3378
    %v3434 = vunpack.c.l.b16 %v3379
    %v3435 = vunpack.c.h.b16 %v3379
    %v3436 = vunpack.c.l.b16 %v3380
    %v3437 = vunpack.c.h.b16 %v3380
    %v3438 = vunpack.c.l.b16 %v3381
    %v3439 = vunpack.c.h.b16 %v3381
    %v3440 = vunpack.c.l.b16 %v3382
    %v3441 = vunpack.c.h.b16 %v3382
    %v3442 = vunpack.c.l.b16 %v3383
    %v3443 = vunpack.c.h.b16 %v3383
    %v3444 = vpack.c.b16 %v3414, %v3412
    %v3445 = vpack.c.b16 %v3415, %v3413
    %v3446 = vpack.c.b16 %v3418, %v3416
    %v3447 = vpack.c.b16 %v3419, %v3417
    %v3448 = vpack.c.b16 %v3422, %v3420
    %v3449 = vpack.c.b16 %v3423, %v3421
    %v3450 = vpack.c.b16 %v3426, %v3424
    %v3451 = vpack.c.b16 %v3427, %v3425
    %v3452 = vpack.c.b16 %v3430, %v3428
    %v3453 = vpack.c.b16 %v3431, %v3429
    %v3454 = vpack.c.b16 %v3434, %v3432
    %v3455 = vpack.c.b16 %v3435, %v3433
    %v3456 = vpack.c.b16 %v3438, %v3436
    %v3457 = vpack.c.b16 %v3439, %v3437
    %v3458 = vpack.c.b16 %v3442, %v3440
    %v3459 = vpack.c.b16 %v3443, %v3441
    %3476 = vmatprep.subr.bf16.mxu0 %v3445
    %3477 = vmatpush1.bf16.msra.mxu0 %v3444
    %3478 = vmatprep.subr.bf16.mxu0 %v3447
    %3479 = vmatpush1.bf16.msra.mxu0 %v3446
    %3480 = vmatprep.subr.bf16.mxu0 %v3449
    %3481 = vmatpush1.bf16.msra.mxu0 %v3448
    %3482 = vmatprep.subr.bf16.mxu0 %v3451
    %3483 = vmatpush1.bf16.msra.mxu0 %v3450
    %3484 = vmatprep.subr.bf16.mxu0 %v3453
    %3485 = vmatpush1.bf16.msra.mxu0 %v3452
    %3486 = vmatprep.subr.bf16.mxu0 %v3455
    %3487 = vmatpush1.bf16.msra.mxu0 %v3454
    %3488 = vmatprep.subr.bf16.mxu0 %v3457
    %3489 = vmatpush1.bf16.msra.mxu0 %v3456
    %3490 = vmatprep.subr.bf16.mxu0 %v3459
    %3491 = vmatpush1.bf16.msra.mxu0 %v3458
    %3492 = vmatprep.subr.bf16.mxu0 0
    %3493 = vmatpush1.bf16.msra.mxu0 0
    %3494 = vmatprep.subr.bf16.mxu0 0
    %3495 = vmatpush1.bf16.msra.mxu0 0
    %3496 = vmatprep.subr.bf16.mxu0 0
    %3497 = vmatpush1.bf16.msra.mxu0 0
    %3498 = vmatprep.subr.bf16.mxu0 0
    %3499 = vmatpush1.bf16.msra.mxu0 0
    %3500 = vmatprep.subr.bf16.mxu0 0
    %3501 = vmatpush1.bf16.msra.mxu0 0
    %3502 = vmatprep.subr.bf16.mxu0 0
    %3503 = vmatpush1.bf16.msra.mxu0 0
    %3504 = vmatprep.subr.bf16.mxu0 0
    %3505 = vmatpush1.bf16.msra.mxu0 0
    %3506 = vmatprep.subr.bf16.mxu0 0
    %3507 = vmatpush1.bf16.msra.mxu0 0
    %3508 = vmatprep.mubr.bf16.mxu0 0
    %3509 = vmatmul.mubr.bf16.gmra.mrb[0].mxu0 %v3392
    %v3510 = vpop.f32.mrb[0].mxu0
    %v3511 = vadd.f32 0.0, %v3510
    %v3512 = vpop.f32.mrb[0].mxu0
    %v3513 = vadd.f32 0.0, %v3512
    %v3514 = vpop.f32.mrb[0].mxu0
    %v3515 = vadd.f32 0.0, %v3514
    %v3516 = vpop.f32.mrb[0].mxu0
    %v3517 = vadd.f32 0.0, %v3516
    %3518 = vmatprep.mubr.bf16.mxu0 0
    %3519 = vmatmul.mubr.bf16.gmra.mrb[0].mxu0 %v3393
    %v3520 = vpop.f32.mrb[0].mxu0
    %v3521 = vadd.f32 0.0, %v3520
    %v3522 = vpop.f32.mrb[0].mxu0
    %v3523 = vadd.f32 0.0, %v3522
    %v3524 = vpop.f32.mrb[0].mxu0
    %v3525 = vadd.f32 0.0, %v3524
    %v3526 = vpop.f32.mrb[0].mxu0
    %v3527 = vadd.f32 0.0, %v3526
    %3528 = vdwg.mxu0
    %v3529 = vadd.f32 %v3359, %v3511
    %v3530 = vadd.f32 %v3360, %v3513
    %v3531 = vadd.f32 %v3361, %v3515
    %v3532 = vadd.f32 %v3362, %v3517
    %v3533 = vadd.f32 %v3363, %v3521
    %v3534 = vadd.f32 %v3364, %v3523
    %v3535 = vadd.f32 %v3365, %v3525
    %v3536 = vadd.f32 %v3366, %v3527
    %s3537 = scalar_lea.vmem [#allocation7], 768
    %v3538 = vld [vmem:[%s3537] sm:$0xff]
    %v3539 = vld [vmem:[%s3537 + $0x8] sm:$0xff]
    %v3540 = vld [vmem:[%s3537 + $0x10] sm:$0xff]
    %v3541 = vld [vmem:[%s3537 + $0x18] sm:$0xff]
    %v3542 = vld [vmem:[%s3537 + $0x20] sm:$0xff]
    %v3543 = vld [vmem:[%s3537 + $0x28] sm:$0xff]
    %v3544 = vld [vmem:[%s3537 + $0x30] sm:$0xff]
    %v3545 = vld [vmem:[%s3537 + $0x38] sm:$0xff]
    %v3546 = vld [vmem:[%s3537 + $0x40] sm:$0xff]
    %v3547 = vld [vmem:[%s3537 + $0x48] sm:$0xff]
    %v3548 = vld [vmem:[%s3537 + $0x50] sm:$0xff]
    %v3549 = vld [vmem:[%s3537 + $0x58] sm:$0xff]
    %v3550 = vld [vmem:[%s3537 + $0x60] sm:$0xff]
    %v3551 = vld [vmem:[%s3537 + $0x68] sm:$0xff]
    %v3552 = vld [vmem:[%s3537 + $0x70] sm:$0xff]
    %v3553 = vld [vmem:[%s3537 + $0x78] sm:$0xff]
    %v3570 = vunpack.c.l.b16 %v3538
    %v3571 = vunpack.c.h.b16 %v3538
    %v3572 = vunpack.c.l.b16 %v3539
    %v3573 = vunpack.c.h.b16 %v3539
    %v3574 = vunpack.c.l.b16 %v3540
    %v3575 = vunpack.c.h.b16 %v3540
    %v3576 = vunpack.c.l.b16 %v3541
    %v3577 = vunpack.c.h.b16 %v3541
    %v3578 = vunpack.c.l.b16 %v3542
    %v3579 = vunpack.c.h.b16 %v3542
    %v3580 = vunpack.c.l.b16 %v3543
    %v3581 = vunpack.c.h.b16 %v3543
    %v3582 = vunpack.c.l.b16 %v3544
    %v3583 = vunpack.c.h.b16 %v3544
    %v3584 = vunpack.c.l.b16 %v3545
    %v3585 = vunpack.c.h.b16 %v3545
    %v3586 = vunpack.c.l.b16 %v3546
    %v3587 = vunpack.c.h.b16 %v3546
    %v3588 = vunpack.c.l.b16 %v3547
    %v3589 = vunpack.c.h.b16 %v3547
    %v3590 = vunpack.c.l.b16 %v3548
    %v3591 = vunpack.c.h.b16 %v3548
    %v3592 = vunpack.c.l.b16 %v3549
    %v3593 = vunpack.c.h.b16 %v3549
    %v3594 = vunpack.c.l.b16 %v3550
    %v3595 = vunpack.c.h.b16 %v3550
    %v3596 = vunpack.c.l.b16 %v3551
    %v3597 = vunpack.c.h.b16 %v3551
    %v3598 = vunpack.c.l.b16 %v3552
    %v3599 = vunpack.c.h.b16 %v3552
    %v3600 = vunpack.c.l.b16 %v3553
    %v3601 = vunpack.c.h.b16 %v3553
    %v3602 = vpack.c.b16 %v3572, %v3570
    %v3603 = vpack.c.b16 %v3573, %v3571
    %v3604 = vpack.c.b16 %v3576, %v3574
    %v3605 = vpack.c.b16 %v3577, %v3575
    %v3606 = vpack.c.b16 %v3580, %v3578
    %v3607 = vpack.c.b16 %v3581, %v3579
    %v3608 = vpack.c.b16 %v3584, %v3582
    %v3609 = vpack.c.b16 %v3585, %v3583
    %v3610 = vpack.c.b16 %v3588, %v3586
    %v3611 = vpack.c.b16 %v3589, %v3587
    %v3612 = vpack.c.b16 %v3592, %v3590
    %v3613 = vpack.c.b16 %v3593, %v3591
    %v3614 = vpack.c.b16 %v3596, %v3594
    %v3615 = vpack.c.b16 %v3597, %v3595
    %v3616 = vpack.c.b16 %v3600, %v3598
    %v3617 = vpack.c.b16 %v3601, %v3599
    %3634 = vmatprep.subr.bf16.mxu0 %v3603
    %3635 = vmatpush1.bf16.msra.mxu0 %v3602
    %3636 = vmatprep.subr.bf16.mxu0 %v3605
    %3637 = vmatpush1.bf16.msra.mxu0 %v3604
    %3638 = vmatprep.subr.bf16.mxu0 %v3607
    %3639 = vmatpush1.bf16.msra.mxu0 %v3606
    %3640 = vmatprep.subr.bf16.mxu0 %v3609
    %3641 = vmatpush1.bf16.msra.mxu0 %v3608
    %3642 = vmatprep.subr.bf16.mxu0 %v3611
    %3643 = vmatpush1.bf16.msra.mxu0 %v3610
    %3644 = vmatprep.subr.bf16.mxu0 %v3613
    %3645 = vmatpush1.bf16.msra.mxu0 %v3612
    %3646 = vmatprep.subr.bf16.mxu0 %v3615
    %3647 = vmatpush1.bf16.msra.mxu0 %v3614
    %3648 = vmatprep.subr.bf16.mxu0 %v3617
    %3649 = vmatpush1.bf16.msra.mxu0 %v3616
    %3650 = vmatprep.subr.bf16.mxu0 0
    %3651 = vmatpush1.bf16.msra.mxu0 0
    %3652 = vmatprep.subr.bf16.mxu0 0
    %3653 = vmatpush1.bf16.msra.mxu0 0
    %3654 = vmatprep.subr.bf16.mxu0 0
    %3655 = vmatpush1.bf16.msra.mxu0 0
    %3656 = vmatprep.subr.bf16.mxu0 0
    %3657 = vmatpush1.bf16.msra.mxu0 0
    %3658 = vmatprep.subr.bf16.mxu0 0
    %3659 = vmatpush1.bf16.msra.mxu0 0
    %3660 = vmatprep.subr.bf16.mxu0 0
    %3661 = vmatpush1.bf16.msra.mxu0 0
    %3662 = vmatprep.subr.bf16.mxu0 0
    %3663 = vmatpush1.bf16.msra.mxu0 0
    %3664 = vmatprep.subr.bf16.mxu0 0
    %3665 = vmatpush1.bf16.msra.mxu0 0
    %3666 = vmatprep.mubr.bf16.mxu0 0
    %3667 = vmatmul.mubr.bf16.gmra.mrb[0].mxu0 %v2534
    %v3668 = vpop.f32.mrb[0].mxu0
    %v3669 = vadd.f32 0.0, %v3668
    %v3670 = vpop.f32.mrb[0].mxu0
    %v3671 = vadd.f32 0.0, %v3670
    %v3672 = vpop.f32.mrb[0].mxu0
    %v3673 = vadd.f32 0.0, %v3672
    %v3674 = vpop.f32.mrb[0].mxu0
    %v3675 = vadd.f32 0.0, %v3674
    %3676 = vmatprep.mubr.bf16.mxu0 0
    %3677 = vmatmul.mubr.bf16.gmra.mrb[0].mxu0 %v2536
    %v3678 = vpop.f32.mrb[0].mxu0
    %v3679 = vadd.f32 0.0, %v3678
    %v3680 = vpop.f32.mrb[0].mxu0
    %v3681 = vadd.f32 0.0, %v3680
    %v3682 = vpop.f32.mrb[0].mxu0
    %v3683 = vadd.f32 0.0, %v3682
    %v3684 = vpop.f32.mrb[0].mxu0
    %v3685 = vadd.f32 0.0, %v3684
    %3686 = vdwg.mxu0
    %v3687 = vadd.f32 %v3529, %v3669
    %v3688 = vadd.f32 %v3530, %v3671
    %v3689 = vadd.f32 %v3531, %v3673
    %v3690 = vadd.f32 %v3532, %v3675
    %v3691 = vadd.f32 %v3533, %v3679
    %v3692 = vadd.f32 %v3534, %v3681
    %v3693 = vadd.f32 %v3535, %v3683
    %v3694 = vadd.f32 %v3536, %v3685
    %s3695 = scalar_lea.vmem [#allocation7], 896
    %v3696 = vld [vmem:[%s3695] sm:$0xff]
    %v3697 = vld [vmem:[%s3695 + $0x8] sm:$0xff]
    %v3698 = vld [vmem:[%s3695 + $0x10] sm:$0xff]
    %v3699 = vld [vmem:[%s3695 + $0x18] sm:$0xff]
    %v3700 = vld [vmem:[%s3695 + $0x20] sm:$0xff]
    %v3701 = vld [vmem:[%s3695 + $0x28] sm:$0xff]
    %v3702 = vld [vmem:[%s3695 + $0x30] sm:$0xff]
    %v3703 = vld [vmem:[%s3695 + $0x38] sm:$0xff]
    %v3704 = vld [vmem:[%s3695 + $0x40] sm:$0xff]
    %v3705 = vld [vmem:[%s3695 + $0x48] sm:$0xff]
    %v3706 = vld [vmem:[%s3695 + $0x50] sm:$0xff]
    %v3707 = vld [vmem:[%s3695 + $0x58] sm:$0xff]
    %v3708 = vld [vmem:[%s3695 + $0x60] sm:$0xff]
    %v3709 = vld [vmem:[%s3695 + $0x68] sm:$0xff]
    %v3710 = vld [vmem:[%s3695 + $0x70] sm:$0xff]
    %v3711 = vld [vmem:[%s3695 + $0x78] sm:$0xff]
    %3712 = vrot.lane.b32.xlu0 %v2536, 96
    %v3713 = vpop.permute.xlu0 %3712
    %3714 = vrot.lane.b32.xlu0 %v2537, 96
    %v3715 = vpop.permute.xlu0 %3714
    %v3716 = vsel %vm2583, %v3713, %v3715
    %v3734 = vunpack.c.l.b16 %v3696
    %v3735 = vunpack.c.h.b16 %v3696
    %v3736 = vunpack.c.l.b16 %v3697
    %v3737 = vunpack.c.h.b16 %v3697
    %v3738 = vunpack.c.l.b16 %v3698
    %v3739 = vunpack.c.h.b16 %v3698
    %v3740 = vunpack.c.l.b16 %v3699
    %v3741 = vunpack.c.h.b16 %v3699
    %v3742 = vunpack.c.l.b16 %v3700
    %v3743 = vunpack.c.h.b16 %v3700
    %v3744 = vunpack.c.l.b16 %v3701
    %v3745 = vunpack.c.h.b16 %v3701
    %v3746 = vunpack.c.l.b16 %v3702
    %v3747 = vunpack.c.h.b16 %v3702
    %v3748 = vunpack.c.l.b16 %v3703
    %v3749 = vunpack.c.h.b16 %v3703
    %v3750 = vunpack.c.l.b16 %v3704
    %v3751 = vunpack.c.h.b16 %v3704
    %v3752 = vunpack.c.l.b16 %v3705
    %v3753 = vunpack.c.h.b16 %v3705
    %v3754 = vunpack.c.l.b16 %v3706
    %v3755 = vunpack.c.h.b16 %v3706
    %v3756 = vunpack.c.l.b16 %v3707
    %v3757 = vunpack.c.h.b16 %v3707
    %v3758 = vunpack.c.l.b16 %v3708
    %v3759 = vunpack.c.h.b16 %v3708
    %v3760 = vunpack.c.l.b16 %v3709
    %v3761 = vunpack.c.h.b16 %v3709
    %v3762 = vunpack.c.l.b16 %v3710
    %v3763 = vunpack.c.h.b16 %v3710
    %v3764 = vunpack.c.l.b16 %v3711
    %v3765 = vunpack.c.h.b16 %v3711
    %v3766 = vpack.c.b16 %v3736, %v3734
    %v3767 = vpack.c.b16 %v3737, %v3735
    %v3768 = vpack.c.b16 %v3740, %v3738
    %v3769 = vpack.c.b16 %v3741, %v3739
    %v3770 = vpack.c.b16 %v3744, %v3742
    %v3771 = vpack.c.b16 %v3745, %v3743
    %v3772 = vpack.c.b16 %v3748, %v3746
    %v3773 = vpack.c.b16 %v3749, %v3747
    %v3774 = vpack.c.b16 %v3752, %v3750
    %v3775 = vpack.c.b16 %v3753, %v3751
    %v3776 = vpack.c.b16 %v3756, %v3754
    %v3777 = vpack.c.b16 %v3757, %v3755
    %v3778 = vpack.c.b16 %v3760, %v3758
    %v3779 = vpack.c.b16 %v3761, %v3759
    %v3780 = vpack.c.b16 %v3764, %v3762
    %v3781 = vpack.c.b16 %v3765, %v3763
    %3798 = vmatprep.subr.bf16.mxu0 %v3767
    %3799 = vmatpush1.bf16.msra.mxu0 %v3766
    %3800 = vmatprep.subr.bf16.mxu0 %v3769
    %3801 = vmatpush1.bf16.msra.mxu0 %v3768
    %3802 = vmatprep.subr.bf16.mxu0 %v3771
    %3803 = vmatpush1.bf16.msra.mxu0 %v3770
    %3804 = vmatprep.subr.bf16.mxu0 %v3773
    %3805 = vmatpush1.bf16.msra.mxu0 %v3772
    %3806 = vmatprep.subr.bf16.mxu0 %v3775
    %3807 = vmatpush1.bf16.msra.mxu0 %v3774
    %3808 = vmatprep.subr.bf16.mxu0 %v3777
    %3809 = vmatpush1.bf16.msra.mxu0 %v3776
    %3810 = vmatprep.subr.bf16.mxu0 %v3779
    %3811 = vmatpush1.bf16.msra.mxu0 %v3778
    %3812 = vmatprep.subr.bf16.mxu0 %v3781
    %3813 = vmatpush1.bf16.msra.mxu0 %v3780
    %3814 = vmatprep.subr.bf16.mxu0 0
    %3815 = vmatpush1.bf16.msra.mxu0 0
    %3816 = vmatprep.subr.bf16.mxu0 0
    %3817 = vmatpush1.bf16.msra.mxu0 0
    %3818 = vmatprep.subr.bf16.mxu0 0
    %3819 = vmatpush1.bf16.msra.mxu0 0
    %3820 = vmatprep.subr.bf16.mxu0 0
    %3821 = vmatpush1.bf16.msra.mxu0 0
    %3822 = vmatprep.subr.bf16.mxu0 0
    %3823 = vmatpush1.bf16.msra.mxu0 0
    %3824 = vmatprep.subr.bf16.mxu0 0
    %3825 = vmatpush1.bf16.msra.mxu0 0
    %3826 = vmatprep.subr.bf16.mxu0 0
    %3827 = vmatpush1.bf16.msra.mxu0 0
    %3828 = vmatprep.subr.bf16.mxu0 0
    %3829 = vmatpush1.bf16.msra.mxu0 0
    %3830 = vmatprep.mubr.bf16.mxu0 0
    %3831 = vmatmul.mubr.bf16.gmra.mrb[0].mxu0 %v2585
    %v3832 = vpop.f32.mrb[0].mxu0
    %v3833 = vadd.f32 0.0, %v3832
    %v3834 = vpop.f32.mrb[0].mxu0
    %v3835 = vadd.f32 0.0, %v3834
    %v3836 = vpop.f32.mrb[0].mxu0
    %v3837 = vadd.f32 0.0, %v3836
    %v3838 = vpop.f32.mrb[0].mxu0
    %v3839 = vadd.f32 0.0, %v3838
    %3840 = vmatprep.mubr.bf16.mxu0 0
    %3841 = vmatmul.mubr.bf16.gmra.mrb[0].mxu0 %v3716
    %v3842 = vpop.f32.mrb[0].mxu0
    %v3843 = vadd.f32 0.0, %v3842
    %v3844 = vpop.f32.mrb[0].mxu0
    %v3845 = vadd.f32 0.0, %v3844
    %v3846 = vpop.f32.mrb[0].mxu0
    %v3847 = vadd.f32 0.0, %v3846
    %v3848 = vpop.f32.mrb[0].mxu0
    %v3849 = vadd.f32 0.0, %v3848
    %3850 = vdwg.mxu0
    %v3851 = vadd.f32 %v3687, %v3833
    %v3852 = vadd.f32 %v3688, %v3835
    %v3853 = vadd.f32 %v3689, %v3837
    %v3854 = vadd.f32 %v3690, %v3839
    %v3855 = vadd.f32 %v3691, %v3843
    %v3856 = vadd.f32 %v3692, %v3845
    %v3857 = vadd.f32 %v3693, %v3847
    %v3858 = vadd.f32 %v3694, %v3849
    %s3859 = scalar_lea.vmem [#allocation7], 1024
    %v3860 = vld [vmem:[%s3859] sm:$0xff]
    %v3861 = vld [vmem:[%s3859 + $0x8] sm:$0xff]
    %v3862 = vld [vmem:[%s3859 + $0x10] sm:$0xff]
    %v3863 = vld [vmem:[%s3859 + $0x18] sm:$0xff]
    %v3864 = vld [vmem:[%s3859 + $0x20] sm:$0xff]
    %v3865 = vld [vmem:[%s3859 + $0x28] sm:$0xff]
    %v3866 = vld [vmem:[%s3859 + $0x30] sm:$0xff]
    %v3867 = vld [vmem:[%s3859 + $0x38] sm:$0xff]
    %v3868 = vld [vmem:[%s3859 + $0x40] sm:$0xff]
    %v3869 = vld [vmem:[%s3859 + $0x48] sm:$0xff]
    %v3870 = vld [vmem:[%s3859 + $0x50] sm:$0xff]
    %v3871 = vld [vmem:[%s3859 + $0x58] sm:$0xff]
    %v3872 = vld [vmem:[%s3859 + $0x60] sm:$0xff]
    %v3873 = vld [vmem:[%s3859 + $0x68] sm:$0xff]
    %v3874 = vld [vmem:[%s3859 + $0x70] sm:$0xff]
    %v3875 = vld [vmem:[%s3859 + $0x78] sm:$0xff]
    %3876 = vrot.lane.b32.xlu0 %v2536, 64
    %v3877 = vpop.permute.xlu0 %3876
    %3878 = vrot.lane.b32.xlu0 %v2537, 64
    %v3879 = vpop.permute.xlu0 %3878
    %v3880 = vsel %vm2879, %v3877, %v3879
    %v3898 = vunpack.c.l.b16 %v3860
    %v3899 = vunpack.c.h.b16 %v3860
    %v3900 = vunpack.c.l.b16 %v3861
    %v3901 = vunpack.c.h.b16 %v3861
    %v3902 = vunpack.c.l.b16 %v3862
    %v3903 = vunpack.c.h.b16 %v3862
    %v3904 = vunpack.c.l.b16 %v3863
    %v3905 = vunpack.c.h.b16 %v3863
    %v3906 = vunpack.c.l.b16 %v3864
    %v3907 = vunpack.c.h.b16 %v3864
    %v3908 = vunpack.c.l.b16 %v3865
    %v3909 = vunpack.c.h.b16 %v3865
    %v3910 = vunpack.c.l.b16 %v3866
    %v3911 = vunpack.c.h.b16 %v3866
    %v3912 = vunpack.c.l.b16 %v3867
    %v3913 = vunpack.c.h.b16 %v3867
    %v3914 = vunpack.c.l.b16 %v3868
    %v3915 = vunpack.c.h.b16 %v3868
    %v3916 = vunpack.c.l.b16 %v3869
    %v3917 = vunpack.c.h.b16 %v3869
    %v3918 = vunpack.c.l.b16 %v3870
    %v3919 = vunpack.c.h.b16 %v3870
    %v3920 = vunpack.c.l.b16 %v3871
    %v3921 = vunpack.c.h.b16 %v3871
    %v3922 = vunpack.c.l.b16 %v3872
    %v3923 = vunpack.c.h.b16 %v3872
    %v3924 = vunpack.c.l.b16 %v3873
    %v3925 = vunpack.c.h.b16 %v3873
    %v3926 = vunpack.c.l.b16 %v3874
    %v3927 = vunpack.c.h.b16 %v3874
    %v3928 = vunpack.c.l.b16 %v3875
    %v3929 = vunpack.c.h.b16 %v3875
    %v3930 = vpack.c.b16 %v3900, %v3898
    %v3931 = vpack.c.b16 %v3901, %v3899
    %v3932 = vpack.c.b16 %v3904, %v3902
    %v3933 = vpack.c.b16 %v3905, %v3903
    %v3934 = vpack.c.b16 %v3908, %v3906
    %v3935 = vpack.c.b16 %v3909, %v3907
    %v3936 = vpack.c.b16 %v3912, %v3910
    %v3937 = vpack.c.b16 %v3913, %v3911
    %v3938 = vpack.c.b16 %v3916, %v3914
    %v3939 = vpack.c.b16 %v3917, %v3915
    %v3940 = vpack.c.b16 %v3920, %v3918
    %v3941 = vpack.c.b16 %v3921, %v3919
    %v3942 = vpack.c.b16 %v3924, %v3922
    %v3943 = vpack.c.b16 %v3925, %v3923
    %v3944 = vpack.c.b16 %v3928, %v3926
    %v3945 = vpack.c.b16 %v3929, %v3927
    %3962 = vmatprep.subr.bf16.mxu0 %v3931
    %3963 = vmatpush1.bf16.msra.mxu0 %v3930
    %3964 = vmatprep.subr.bf16.mxu0 %v3933
    %3965 = vmatpush1.bf16.msra.mxu0 %v3932
    %3966 = vmatprep.subr.bf16.mxu0 %v3935
    %3967 = vmatpush1.bf16.msra.mxu0 %v3934
    %3968 = vmatprep.subr.bf16.mxu0 %v3937
    %3969 = vmatpush1.bf16.msra.mxu0 %v3936
    %3970 = vmatprep.subr.bf16.mxu0 %v3939
    %3971 = vmatpush1.bf16.msra.mxu0 %v3938
    %3972 = vmatprep.subr.bf16.mxu0 %v3941
    %3973 = vmatpush1.bf16.msra.mxu0 %v3940
    %3974 = vmatprep.subr.bf16.mxu0 %v3943
    %3975 = vmatpush1.bf16.msra.mxu0 %v3942
    %3976 = vmatprep.subr.bf16.mxu0 %v3945
    %3977 = vmatpush1.bf16.msra.mxu0 %v3944
    %3978 = vmatprep.subr.bf16.mxu0 0
    %3979 = vmatpush1.bf16.msra.mxu0 0
    %3980 = vmatprep.subr.bf16.mxu0 0
    %3981 = vmatpush1.bf16.msra.mxu0 0
    %3982 = vmatprep.subr.bf16.mxu0 0
    %3983 = vmatpush1.bf16.msra.mxu0 0
    %3984 = vmatprep.subr.bf16.mxu0 0
    %3985 = vmatpush1.bf16.msra.mxu0 0
    %3986 = vmatprep.subr.bf16.mxu0 0
    %3987 = vmatpush1.bf16.msra.mxu0 0
    %3988 = vmatprep.subr.bf16.mxu0 0
    %3989 = vmatpush1.bf16.msra.mxu0 0
    %3990 = vmatprep.subr.bf16.mxu0 0
    %3991 = vmatpush1.bf16.msra.mxu0 0
    %3992 = vmatprep.subr.bf16.mxu0 0
    %3993 = vmatpush1.bf16.msra.mxu0 0
    %3994 = vmatprep.mubr.bf16.mxu0 0
    %3995 = vmatmul.mubr.bf16.gmra.mrb[0].mxu0 %v2881
    %v3996 = vpop.f32.mrb[0].mxu0
    %v3997 = vadd.f32 0.0, %v3996
    %v3998 = vpop.f32.mrb[0].mxu0
    %v3999 = vadd.f32 0.0, %v3998
    %v4000 = vpop.f32.mrb[0].mxu0
    %v4001 = vadd.f32 0.0, %v4000
    %v4002 = vpop.f32.mrb[0].mxu0
    %v4003 = vadd.f32 0.0, %v4002
    %4004 = vmatprep.mubr.bf16.mxu0 0
    %4005 = vmatmul.mubr.bf16.gmra.mrb[0].mxu0 %v3880
    %v4006 = vpop.f32.mrb[0].mxu0
    %v4007 = vadd.f32 0.0, %v4006
    %v4008 = vpop.f32.mrb[0].mxu0
    %v4009 = vadd.f32 0.0, %v4008
    %v4010 = vpop.f32.mrb[0].mxu0
    %v4011 = vadd.f32 0.0, %v4010
    %v4012 = vpop.f32.mrb[0].mxu0
    %v4013 = vadd.f32 0.0, %v4012
    %4014 = vdwg.mxu0
    %v4015 = vadd.f32 %v3851, %v3997
    %v4016 = vadd.f32 %v3852, %v3999
    %v4017 = vadd.f32 %v3853, %v4001
    %v4018 = vadd.f32 %v3854, %v4003
    %v4019 = vadd.f32 %v3855, %v4007
    %v4020 = vadd.f32 %v3856, %v4009
    %v4021 = vadd.f32 %v3857, %v4011
    %v4022 = vadd.f32 %v3858, %v4013
    %v4023 = vld [vmem:[%s6] sm:$0x3]
    %v4025 = vlaneseq
    %v4026 = vshrl.u32 %v4025, 7
    %v4027 = vsub.s32 0, %v4026
    %v4028 = vrot.slane %v4023, %v4027
    %v4029 = vlaneseq
    %v4030 = vshrl.u32 %v4029, 7
    %v4031 = vsub.s32 1, %v4030
    %v4032 = vrot.slane %v4023, %v4031
    %v4035 = vadd.f32 %v4015, %v4028
    %v4036 = vadd.f32 %v4016, %v4032
    %v4037 = vadd.f32 %v4017, %v4028
    %v4038 = vadd.f32 %v4018, %v4032
    %v4039 = vadd.f32 %v4019, %v4028
    %v4040 = vadd.f32 %v4020, %v4032
    %v4041 = vadd.f32 %v4021, %v4028
    %v4042 = vadd.f32 %v4022, %v4032
    %v4043 = vmax.f32 %v4035, 0.0
    %v4044 = vmax.f32 %v4036, 0.0
    %v4045 = vmax.f32 %v4037, 0.0
    %v4046 = vmax.f32 %v4038, 0.0
    %v4047 = vmax.f32 %v4039, 0.0
    %v4048 = vmax.f32 %v4040, 0.0
    %v4049 = vmax.f32 %v4041, 0.0
    %v4050 = vmax.f32 %v4042, 0.0
    %v4051 = vpack.c.bf16 %v4045, %v4043
    %v4052 = vpack.c.bf16 %v4046, %v4044
    %v4053 = vpack.c.bf16 %v4049, %v4047
    %v4054 = vpack.c.bf16 %v4050, %v4048
    %v4055 = vld [vmem:[#allocation8] sm:$0xff]
    %v4056 = vld [vmem:[#allocation8 + $0x8] sm:$0xff]
    %v4057 = vld [vmem:[#allocation8 + $0x10] sm:$0xff]
    %v4058 = vld [vmem:[#allocation8 + $0x18] sm:$0xff]
    %v4059 = vld [vmem:[#allocation8 + $0x20] sm:$0xff]
    %v4060 = vld [vmem:[#allocation8 + $0x28] sm:$0xff]
    %v4061 = vld [vmem:[#allocation8 + $0x30] sm:$0xff]
    %v4062 = vld [vmem:[#allocation8 + $0x38] sm:$0xff]
    %v4063 = vld [vmem:[#allocation8 + $0x40] sm:$0xff]
    %v4064 = vld [vmem:[#allocation8 + $0x48] sm:$0xff]
    %v4065 = vld [vmem:[#allocation8 + $0x50] sm:$0xff]
    %v4066 = vld [vmem:[#allocation8 + $0x58] sm:$0xff]
    %v4067 = vld [vmem:[#allocation8 + $0x60] sm:$0xff]
    %v4068 = vld [vmem:[#allocation8 + $0x68] sm:$0xff]
    %v4069 = vld [vmem:[#allocation8 + $0x70] sm:$0xff]
    %v4070 = vld [vmem:[#allocation8 + $0x78] sm:$0xff]
    %v4071 = vld [vmem:[#allocation8 + $0x80] sm:$0xff]
    %v4072 = vld [vmem:[#allocation8 + $0x88] sm:$0xff]
    %v4073 = vld [vmem:[#allocation8 + $0x90] sm:$0xff]
    %v4074 = vld [vmem:[#allocation8 + $0x98] sm:$0xff]
    %v4075 = vld [vmem:[#allocation8 + $0xa0] sm:$0xff]
    %v4076 = vld [vmem:[#allocation8 + $0xa8] sm:$0xff]
    %v4077 = vld [vmem:[#allocation8 + $0xb0] sm:$0xff]
    %v4078 = vld [vmem:[#allocation8 + $0xb8] sm:$0xff]
    %v4079 = vld [vmem:[#allocation8 + $0xc0] sm:$0xff]
    %v4080 = vld [vmem:[#allocation8 + $0xc8] sm:$0xff]
    %v4081 = vld [vmem:[#allocation8 + $0xd0] sm:$0xff]
    %v4082 = vld [vmem:[#allocation8 + $0xd8] sm:$0xff]
    %v4083 = vld [vmem:[#allocation8 + $0xe0] sm:$0xff]
    %v4084 = vld [vmem:[#allocation8 + $0xe8] sm:$0xff]
    %v4085 = vld [vmem:[#allocation8 + $0xf0] sm:$0xff]
    %v4086 = vld [vmem:[#allocation8 + $0xf8] sm:$0xff]
    %v4087 = vld [vmem:[#allocation8 + $0x100] sm:$0xff]
    %v4088 = vld [vmem:[#allocation8 + $0x108] sm:$0xff]
    %v4089 = vld [vmem:[#allocation8 + $0x110] sm:$0xff]
    %v4090 = vld [vmem:[#allocation8 + $0x118] sm:$0xff]
    %v4091 = vld [vmem:[#allocation8 + $0x120] sm:$0xff]
    %v4092 = vld [vmem:[#allocation8 + $0x128] sm:$0xff]
    %v4093 = vld [vmem:[#allocation8 + $0x130] sm:$0xff]
    %v4094 = vld [vmem:[#allocation8 + $0x138] sm:$0xff]
    %v4095 = vld [vmem:[#allocation8 + $0x140] sm:$0xff]
    %v4096 = vld [vmem:[#allocation8 + $0x148] sm:$0xff]
    %v4097 = vld [vmem:[#allocation8 + $0x150] sm:$0xff]
    %v4098 = vld [vmem:[#allocation8 + $0x158] sm:$0xff]
    %v4099 = vld [vmem:[#allocation8 + $0x160] sm:$0xff]
    %v4100 = vld [vmem:[#allocation8 + $0x168] sm:$0xff]
    %v4101 = vld [vmem:[#allocation8 + $0x170] sm:$0xff]
    %v4102 = vld [vmem:[#allocation8 + $0x178] sm:$0xff]
    %v4103 = vld [vmem:[#allocation8 + $0x180] sm:$0xff]
    %v4104 = vld [vmem:[#allocation8 + $0x188] sm:$0xff]
    %v4105 = vld [vmem:[#allocation8 + $0x190] sm:$0xff]
    %v4106 = vld [vmem:[#allocation8 + $0x198] sm:$0xff]
    %v4107 = vld [vmem:[#allocation8 + $0x1a0] sm:$0xff]
    %v4108 = vld [vmem:[#allocation8 + $0x1a8] sm:$0xff]
    %v4109 = vld [vmem:[#allocation8 + $0x1b0] sm:$0xff]
    %v4110 = vld [vmem:[#allocation8 + $0x1b8] sm:$0xff]
    %v4111 = vld [vmem:[#allocation8 + $0x1c0] sm:$0xff]
    %v4112 = vld [vmem:[#allocation8 + $0x1c8] sm:$0xff]
    %v4113 = vld [vmem:[#allocation8 + $0x1d0] sm:$0xff]
    %v4114 = vld [vmem:[#allocation8 + $0x1d8] sm:$0xff]
    %v4115 = vld [vmem:[#allocation8 + $0x1e0] sm:$0xff]
    %v4116 = vld [vmem:[#allocation8 + $0x1e8] sm:$0xff]
    %v4117 = vld [vmem:[#allocation8 + $0x1f0] sm:$0xff]
    %v4118 = vld [vmem:[#allocation8 + $0x1f8] sm:$0xff]
    %s4119 = scalar_lea.vmem [#allocation8], 512
    %v4120 = vld [vmem:[%s4119] sm:$0xff]
    %v4121 = vld [vmem:[%s4119 + $0x8] sm:$0xff]
    %v4122 = vld [vmem:[%s4119 + $0x10] sm:$0xff]
    %v4123 = vld [vmem:[%s4119 + $0x18] sm:$0xff]
    %v4124 = vld [vmem:[%s4119 + $0x20] sm:$0xff]
    %v4125 = vld [vmem:[%s4119 + $0x28] sm:$0xff]
    %v4126 = vld [vmem:[%s4119 + $0x30] sm:$0xff]
    %v4127 = vld [vmem:[%s4119 + $0x38] sm:$0xff]
    %v4128 = vld [vmem:[%s4119 + $0x40] sm:$0xff]
    %v4129 = vld [vmem:[%s4119 + $0x48] sm:$0xff]
    %v4130 = vld [vmem:[%s4119 + $0x50] sm:$0xff]
    %v4131 = vld [vmem:[%s4119 + $0x58] sm:$0xff]
    %v4132 = vld [vmem:[%s4119 + $0x60] sm:$0xff]
    %v4133 = vld [vmem:[%s4119 + $0x68] sm:$0xff]
    %v4134 = vld [vmem:[%s4119 + $0x70] sm:$0xff]
    %v4135 = vld [vmem:[%s4119 + $0x78] sm:$0xff]
    %v4136 = vld [vmem:[%s4119 + $0x80] sm:$0xff]
    %v4137 = vld [vmem:[%s4119 + $0x88] sm:$0xff]
    %v4138 = vld [vmem:[%s4119 + $0x90] sm:$0xff]
    %v4139 = vld [vmem:[%s4119 + $0x98] sm:$0xff]
    %v4140 = vld [vmem:[%s4119 + $0xa0] sm:$0xff]
    %v4141 = vld [vmem:[%s4119 + $0xa8] sm:$0xff]
    %v4142 = vld [vmem:[%s4119 + $0xb0] sm:$0xff]
    %v4143 = vld [vmem:[%s4119 + $0xb8] sm:$0xff]
    %v4144 = vld [vmem:[%s4119 + $0xc0] sm:$0xff]
    %v4145 = vld [vmem:[%s4119 + $0xc8] sm:$0xff]
    %v4146 = vld [vmem:[%s4119 + $0xd0] sm:$0xff]
    %v4147 = vld [vmem:[%s4119 + $0xd8] sm:$0xff]
    %v4148 = vld [vmem:[%s4119 + $0xe0] sm:$0xff]
    %v4149 = vld [vmem:[%s4119 + $0xe8] sm:$0xff]
    %v4150 = vld [vmem:[%s4119 + $0xf0] sm:$0xff]
    %v4151 = vld [vmem:[%s4119 + $0xf8] sm:$0xff]
    %v4152 = vld [vmem:[%s4119 + $0x100] sm:$0xff]
    %v4153 = vld [vmem:[%s4119 + $0x108] sm:$0xff]
    %v4154 = vld [vmem:[%s4119 + $0x110] sm:$0xff]
    %v4155 = vld [vmem:[%s4119 + $0x118] sm:$0xff]
    %v4156 = vld [vmem:[%s4119 + $0x120] sm:$0xff]
    %v4157 = vld [vmem:[%s4119 + $0x128] sm:$0xff]
    %v4158 = vld [vmem:[%s4119 + $0x130] sm:$0xff]
    %v4159 = vld [vmem:[%s4119 + $0x138] sm:$0xff]
    %v4160 = vld [vmem:[%s4119 + $0x140] sm:$0xff]
    %v4161 = vld [vmem:[%s4119 + $0x148] sm:$0xff]
    %v4162 = vld [vmem:[%s4119 + $0x150] sm:$0xff]
    %v4163 = vld [vmem:[%s4119 + $0x158] sm:$0xff]
    %v4164 = vld [vmem:[%s4119 + $0x160] sm:$0xff]
    %v4165 = vld [vmem:[%s4119 + $0x168] sm:$0xff]
    %v4166 = vld [vmem:[%s4119 + $0x170] sm:$0xff]
    %v4167 = vld [vmem:[%s4119 + $0x178] sm:$0xff]
    %v4168 = vld [vmem:[%s4119 + $0x180] sm:$0xff]
    %v4169 = vld [vmem:[%s4119 + $0x188] sm:$0xff]
    %v4170 = vld [vmem:[%s4119 + $0x190] sm:$0xff]
    %v4171 = vld [vmem:[%s4119 + $0x198] sm:$0xff]
    %v4172 = vld [vmem:[%s4119 + $0x1a0] sm:$0xff]
    %v4173 = vld [vmem:[%s4119 + $0x1a8] sm:$0xff]
    %v4174 = vld [vmem:[%s4119 + $0x1b0] sm:$0xff]
    %v4175 = vld [vmem:[%s4119 + $0x1b8] sm:$0xff]
    %v4176 = vld [vmem:[%s4119 + $0x1c0] sm:$0xff]
    %v4177 = vld [vmem:[%s4119 + $0x1c8] sm:$0xff]
    %v4178 = vld [vmem:[%s4119 + $0x1d0] sm:$0xff]
    %v4179 = vld [vmem:[%s4119 + $0x1d8] sm:$0xff]
    %v4180 = vld [vmem:[%s4119 + $0x1e0] sm:$0xff]
    %v4181 = vld [vmem:[%s4119 + $0x1e8] sm:$0xff]
    %v4182 = vld [vmem:[%s4119 + $0x1f0] sm:$0xff]
    %v4183 = vld [vmem:[%s4119 + $0x1f8] sm:$0xff]
    %v4186 = vrot.slane %v4051, 4
    %v4187 = vrot.slane %v4052, 4
    %v4254 = vunpack.c.l.b16 %v4120
    %v4255 = vunpack.c.h.b16 %v4120
    %v4256 = vunpack.c.l.b16 %v4121
    %v4257 = vunpack.c.h.b16 %v4121
    %v4258 = vunpack.c.l.b16 %v4122
    %v4259 = vunpack.c.h.b16 %v4122
    %v4260 = vunpack.c.l.b16 %v4123
    %v4261 = vunpack.c.h.b16 %v4123
    %v4262 = vunpack.c.l.b16 %v4124
    %v4263 = vunpack.c.h.b16 %v4124
    %v4264 = vunpack.c.l.b16 %v4125
    %v4265 = vunpack.c.h.b16 %v4125
    %v4266 = vunpack.c.l.b16 %v4126
    %v4267 = vunpack.c.h.b16 %v4126
    %v4268 = vunpack.c.l.b16 %v4127
    %v4269 = vunpack.c.h.b16 %v4127
    %v4270 = vunpack.c.l.b16 %v4128
    %v4271 = vunpack.c.h.b16 %v4128
    %v4272 = vunpack.c.l.b16 %v4129
    %v4273 = vunpack.c.h.b16 %v4129
    %v4274 = vunpack.c.l.b16 %v4130
    %v4275 = vunpack.c.h.b16 %v4130
    %v4276 = vunpack.c.l.b16 %v4131
    %v4277 = vunpack.c.h.b16 %v4131
    %v4278 = vunpack.c.l.b16 %v4132
    %v4279 = vunpack.c.h.b16 %v4132
    %v4280 = vunpack.c.l.b16 %v4133
    %v4281 = vunpack.c.h.b16 %v4133
    %v4282 = vunpack.c.l.b16 %v4134
    %v4283 = vunpack.c.h.b16 %v4134
    %v4284 = vunpack.c.l.b16 %v4135
    %v4285 = vunpack.c.h.b16 %v4135
    %v4286 = vunpack.c.l.b16 %v4136
    %v4287 = vunpack.c.h.b16 %v4136
    %v4288 = vunpack.c.l.b16 %v4137
    %v4289 = vunpack.c.h.b16 %v4137
    %v4290 = vunpack.c.l.b16 %v4138
    %v4291 = vunpack.c.h.b16 %v4138
    %v4292 = vunpack.c.l.b16 %v4139
    %v4293 = vunpack.c.h.b16 %v4139
    %v4294 = vunpack.c.l.b16 %v4140
    %v4295 = vunpack.c.h.b16 %v4140
    %v4296 = vunpack.c.l.b16 %v4141
    %v4297 = vunpack.c.h.b16 %v4141
    %v4298 = vunpack.c.l.b16 %v4142
    %v4299 = vunpack.c.h.b16 %v4142
    %v4300 = vunpack.c.l.b16 %v4143
    %v4301 = vunpack.c.h.b16 %v4143
    %v4302 = vunpack.c.l.b16 %v4144
    %v4303 = vunpack.c.h.b16 %v4144
    %v4304 = vunpack.c.l.b16 %v4145
    %v4305 = vunpack.c.h.b16 %v4145
    %v4306 = vunpack.c.l.b16 %v4146
    %v4307 = vunpack.c.h.b16 %v4146
    %v4308 = vunpack.c.l.b16 %v4147
    %v4309 = vunpack.c.h.b16 %v4147
    %v4310 = vunpack.c.l.b16 %v4148
    %v4311 = vunpack.c.h.b16 %v4148
    %v4312 = vunpack.c.l.b16 %v4149
    %v4313 = vunpack.c.h.b16 %v4149
    %v4314 = vunpack.c.l.b16 %v4150
    %v4315 = vunpack.c.h.b16 %v4150
    %v4316 = vunpack.c.l.b16 %v4151
    %v4317 = vunpack.c.h.b16 %v4151
    %v4318 = vunpack.c.l.b16 %v4152
    %v4319 = vunpack.c.h.b16 %v4152
    %v4320 = vunpack.c.l.b16 %v4153
    %v4321 = vunpack.c.h.b16 %v4153
    %v4322 = vunpack.c.l.b16 %v4154
    %v4323 = vunpack.c.h.b16 %v4154
    %v4324 = vunpack.c.l.b16 %v4155
    %v4325 = vunpack.c.h.b16 %v4155
    %v4326 = vunpack.c.l.b16 %v4156
    %v4327 = vunpack.c.h.b16 %v4156
    %v4328 = vunpack.c.l.b16 %v4157
    %v4329 = vunpack.c.h.b16 %v4157
    %v4330 = vunpack.c.l.b16 %v4158
    %v4331 = vunpack.c.h.b16 %v4158
    %v4332 = vunpack.c.l.b16 %v4159
    %v4333 = vunpack.c.h.b16 %v4159
    %v4334 = vunpack.c.l.b16 %v4160
    %v4335 = vunpack.c.h.b16 %v4160
    %v4336 = vunpack.c.l.b16 %v4161
    %v4337 = vunpack.c.h.b16 %v4161
    %v4338 = vunpack.c.l.b16 %v4162
    %v4339 = vunpack.c.h.b16 %v4162
    %v4340 = vunpack.c.l.b16 %v4163
    %v4341 = vunpack.c.h.b16 %v4163
    %v4342 = vunpack.c.l.b16 %v4164
    %v4343 = vunpack.c.h.b16 %v4164
    %v4344 = vunpack.c.l.b16 %v4165
    %v4345 = vunpack.c.h.b16 %v4165
    %v4346 = vunpack.c.l.b16 %v4166
    %v4347 = vunpack.c.h.b16 %v4166
    %v4348 = vunpack.c.l.b16 %v4167
    %v4349 = vunpack.c.h.b16 %v4167
    %v4350 = vunpack.c.l.b16 %v4168
    %v4351 = vunpack.c.h.b16 %v4168
    %v4352 = vunpack.c.l.b16 %v4169
    %v4353 = vunpack.c.h.b16 %v4169
    %v4354 = vunpack.c.l.b16 %v4170
    %v4355 = vunpack.c.h.b16 %v4170
    %v4356 = vunpack.c.l.b16 %v4171
    %v4357 = vunpack.c.h.b16 %v4171
    %v4358 = vunpack.c.l.b16 %v4172
    %v4359 = vunpack.c.h.b16 %v4172
    %v4360 = vunpack.c.l.b16 %v4173
    %v4361 = vunpack.c.h.b16 %v4173
    %v4362 = vunpack.c.l.b16 %v4174
    %v4363 = vunpack.c.h.b16 %v4174
    %v4364 = vunpack.c.l.b16 %v4175
    %v4365 = vunpack.c.h.b16 %v4175
    %v4366 = vunpack.c.l.b16 %v4176
    %v4367 = vunpack.c.h.b16 %v4176
    %v4368 = vunpack.c.l.b16 %v4177
    %v4369 = vunpack.c.h.b16 %v4177
    %v4370 = vunpack.c.l.b16 %v4178
    %v4371 = vunpack.c.h.b16 %v4178
    %v4372 = vunpack.c.l.b16 %v4179
    %v4373 = vunpack.c.h.b16 %v4179
    %v4374 = vunpack.c.l.b16 %v4180
    %v4375 = vunpack.c.h.b16 %v4180
    %v4376 = vunpack.c.l.b16 %v4181
    %v4377 = vunpack.c.h.b16 %v4181
    %v4378 = vunpack.c.l.b16 %v4182
    %v4379 = vunpack.c.h.b16 %v4182
    %v4380 = vunpack.c.l.b16 %v4183
    %v4381 = vunpack.c.h.b16 %v4183
    %v4382 = vpack.c.b16 %v4258, %v4254
    %v4383 = vpack.c.b16 %v4259, %v4255
    %v4384 = vpack.c.b16 %v4260, %v4256
    %v4385 = vpack.c.b16 %v4261, %v4257
    %v4386 = vpack.c.b16 %v4266, %v4262
    %v4387 = vpack.c.b16 %v4267, %v4263
    %v4388 = vpack.c.b16 %v4268, %v4264
    %v4389 = vpack.c.b16 %v4269, %v4265
    %v4390 = vpack.c.b16 %v4274, %v4270
    %v4391 = vpack.c.b16 %v4275, %v4271
    %v4392 = vpack.c.b16 %v4276, %v4272
    %v4393 = vpack.c.b16 %v4277, %v4273
    %v4394 = vpack.c.b16 %v4282, %v4278
    %v4395 = vpack.c.b16 %v4283, %v4279
    %v4396 = vpack.c.b16 %v4284, %v4280
    %v4397 = vpack.c.b16 %v4285, %v4281
    %v4398 = vpack.c.b16 %v4290, %v4286
    %v4399 = vpack.c.b16 %v4291, %v4287
    %v4400 = vpack.c.b16 %v4292, %v4288
    %v4401 = vpack.c.b16 %v4293, %v4289
    %v4402 = vpack.c.b16 %v4298, %v4294
    %v4403 = vpack.c.b16 %v4299, %v4295
    %v4404 = vpack.c.b16 %v4300, %v4296
    %v4405 = vpack.c.b16 %v4301, %v4297
    %v4406 = vpack.c.b16 %v4306, %v4302
    %v4407 = vpack.c.b16 %v4307, %v4303
    %v4408 = vpack.c.b16 %v4308, %v4304
    %v4409 = vpack.c.b16 %v4309, %v4305
    %v4410 = vpack.c.b16 %v4314, %v4310
    %v4411 = vpack.c.b16 %v4315, %v4311
    %v4412 = vpack.c.b16 %v4316, %v4312
    %v4413 = vpack.c.b16 %v4317, %v4313
    %v4414 = vpack.c.b16 %v4322, %v4318
    %v4415 = vpack.c.b16 %v4323, %v4319
    %v4416 = vpack.c.b16 %v4324, %v4320
    %v4417 = vpack.c.b16 %v4325, %v4321
    %v4418 = vpack.c.b16 %v4330, %v4326
    %v4419 = vpack.c.b16 %v4331, %v4327
    %v4420 = vpack.c.b16 %v4332, %v4328
    %v4421 = vpack.c.b16 %v4333, %v4329
    %v4422 = vpack.c.b16 %v4338, %v4334
    %v4423 = vpack.c.b16 %v4339, %v4335
    %v4424 = vpack.c.b16 %v4340, %v4336
    %v4425 = vpack.c.b16 %v4341, %v4337
    %v4426 = vpack.c.b16 %v4346, %v4342
    %v4427 = vpack.c.b16 %v4347, %v4343
    %v4428 = vpack.c.b16 %v4348, %v4344
    %v4429 = vpack.c.b16 %v4349, %v4345
    %v4430 = vpack.c.b16 %v4354, %v4350
    %v4431 = vpack.c.b16 %v4355, %v4351
    %v4432 = vpack.c.b16 %v4356, %v4352
    %v4433 = vpack.c.b16 %v4357, %v4353
    %v4434 = vpack.c.b16 %v4362, %v4358
    %v4435 = vpack.c.b16 %v4363, %v4359
    %v4436 = vpack.c.b16 %v4364, %v4360
    %v4437 = vpack.c.b16 %v4365, %v4361
    %v4438 = vpack.c.b16 %v4370, %v4366
    %v4439 = vpack.c.b16 %v4371, %v4367
    %v4440 = vpack.c.b16 %v4372, %v4368
    %v4441 = vpack.c.b16 %v4373, %v4369
    %v4442 = vpack.c.b16 %v4378, %v4374
    %v4443 = vpack.c.b16 %v4379, %v4375
    %v4444 = vpack.c.b16 %v4380, %v4376
    %v4445 = vpack.c.b16 %v4381, %v4377
    %4510 = vmatprep.subr.bf16.mxu0 %v4383
    %4511 = vmatpush1.bf16.msra.mxu0 %v4382
    %4512 = vmatprep.subr.bf16.mxu0 %v4387
    %4513 = vmatpush1.bf16.msra.mxu0 %v4386
    %4514 = vmatprep.subr.bf16.mxu0 %v4391
    %4515 = vmatpush1.bf16.msra.mxu0 %v4390
    %4516 = vmatprep.subr.bf16.mxu0 %v4395
    %4517 = vmatpush1.bf16.msra.mxu0 %v4394
    %4518 = vmatprep.subr.bf16.mxu0 %v4399
    %4519 = vmatpush1.bf16.msra.mxu0 %v4398
    %4520 = vmatprep.subr.bf16.mxu0 %v4403
    %4521 = vmatpush1.bf16.msra.mxu0 %v4402
    %4522 = vmatprep.subr.bf16.mxu0 %v4407
    %4523 = vmatpush1.bf16.msra.mxu0 %v4406
    %4524 = vmatprep.subr.bf16.mxu0 %v4411
    %4525 = vmatpush1.bf16.msra.mxu0 %v4410
    %4526 = vmatprep.subr.bf16.mxu0 %v4415
    %4527 = vmatpush1.bf16.msra.mxu0 %v4414
    %4528 = vmatprep.subr.bf16.mxu0 %v4419
    %4529 = vmatpush1.bf16.msra.mxu0 %v4418
    %4530 = vmatprep.subr.bf16.mxu0 %v4423
    %4531 = vmatpush1.bf16.msra.mxu0 %v4422
    %4532 = vmatprep.subr.bf16.mxu0 %v4427
    %4533 = vmatpush1.bf16.msra.mxu0 %v4426
    %4534 = vmatprep.subr.bf16.mxu0 %v4431
    %4535 = vmatpush1.bf16.msra.mxu0 %v4430
    %4536 = vmatprep.subr.bf16.mxu0 %v4435
    %4537 = vmatpush1.bf16.msra.mxu0 %v4434
    %4538 = vmatprep.subr.bf16.mxu0 %v4439
    %4539 = vmatpush1.bf16.msra.mxu0 %v4438
    %4540 = vmatprep.subr.bf16.mxu0 %v4443
    %4541 = vmatpush1.bf16.msra.mxu0 %v4442
    %4542 = vmatprep.mubr.bf16.mxu0 %v4187
    %4543 = vmatmul.mubr.bf16.gmra.mrb[0].mxu0 %v4186
    %v4544 = vpop.f32.mrb[0].mxu0
    %v4545 = vadd.f32 0.0, %v4544
    %v4546 = vpop.f32.mrb[0].mxu0
    %v4547 = vadd.f32 0.0, %v4546
    %v4548 = vpop.f32.mrb[0].mxu0
    %v4549 = vpop.f32.mrb[0].mxu0
    %4550 = vdwg.mxu0
    %4551 = vmatprep.subr.bf16.mxu0 %v4385
    %4552 = vmatpush1.bf16.msra.mxu0 %v4384
    %4553 = vmatprep.subr.bf16.mxu0 %v4389
    %4554 = vmatpush1.bf16.msra.mxu0 %v4388
    %4555 = vmatprep.subr.bf16.mxu0 %v4393
    %4556 = vmatpush1.bf16.msra.mxu0 %v4392
    %4557 = vmatprep.subr.bf16.mxu0 %v4397
    %4558 = vmatpush1.bf16.msra.mxu0 %v4396
    %4559 = vmatprep.subr.bf16.mxu0 %v4401
    %4560 = vmatpush1.bf16.msra.mxu0 %v4400
    %4561 = vmatprep.subr.bf16.mxu0 %v4405
    %4562 = vmatpush1.bf16.msra.mxu0 %v4404
    %4563 = vmatprep.subr.bf16.mxu0 %v4409
    %4564 = vmatpush1.bf16.msra.mxu0 %v4408
    %4565 = vmatprep.subr.bf16.mxu0 %v4413
    %4566 = vmatpush1.bf16.msra.mxu0 %v4412
    %4567 = vmatprep.subr.bf16.mxu0 %v4417
    %4568 = vmatpush1.bf16.msra.mxu0 %v4416
    %4569 = vmatprep.subr.bf16.mxu0 %v4421
    %4570 = vmatpush1.bf16.msra.mxu0 %v4420
    %4571 = vmatprep.subr.bf16.mxu0 %v4425
    %4572 = vmatpush1.bf16.msra.mxu0 %v4424
    %4573 = vmatprep.subr.bf16.mxu0 %v4429
    %4574 = vmatpush1.bf16.msra.mxu0 %v4428
    %4575 = vmatprep.subr.bf16.mxu0 %v4433
    %4576 = vmatpush1.bf16.msra.mxu0 %v4432
    %4577 = vmatprep.subr.bf16.mxu0 %v4437
    %4578 = vmatpush1.bf16.msra.mxu0 %v4436
    %4579 = vmatprep.subr.bf16.mxu0 %v4441
    %4580 = vmatpush1.bf16.msra.mxu0 %v4440
    %4581 = vmatprep.subr.bf16.mxu0 %v4445
    %4582 = vmatpush1.bf16.msra.mxu0 %v4444
    %4583 = vmatprep.mubr.bf16.mxu0 %v4187
    %4584 = vmatmul.mubr.bf16.gmra.mrb[0].mxu0 %v4186
    %v4585 = vpop.f32.mrb[0].mxu0
    %v4586 = vadd.f32 0.0, %v4585
    %v4587 = vpop.f32.mrb[0].mxu0
    %v4588 = vadd.f32 0.0, %v4587
    %v4589 = vpop.f32.mrb[0].mxu0
    %v4590 = vpop.f32.mrb[0].mxu0
    %4591 = vdwg.mxu0
    %v4656 = vunpack.c.l.b16 %v4055
    %v4657 = vunpack.c.h.b16 %v4055
    %v4658 = vunpack.c.l.b16 %v4056
    %v4659 = vunpack.c.h.b16 %v4056
    %v4660 = vunpack.c.l.b16 %v4057
    %v4661 = vunpack.c.h.b16 %v4057
    %v4662 = vunpack.c.l.b16 %v4058
    %v4663 = vunpack.c.h.b16 %v4058
    %v4664 = vunpack.c.l.b16 %v4059
    %v4665 = vunpack.c.h.b16 %v4059
    %v4666 = vunpack.c.l.b16 %v4060
    %v4667 = vunpack.c.h.b16 %v4060
    %v4668 = vunpack.c.l.b16 %v4061
    %v4669 = vunpack.c.h.b16 %v4061
    %v4670 = vunpack.c.l.b16 %v4062
    %v4671 = vunpack.c.h.b16 %v4062
    %v4672 = vunpack.c.l.b16 %v4063
    %v4673 = vunpack.c.h.b16 %v4063
    %v4674 = vunpack.c.l.b16 %v4064
    %v4675 = vunpack.c.h.b16 %v4064
    %v4676 = vunpack.c.l.b16 %v4065
    %v4677 = vunpack.c.h.b16 %v4065
    %v4678 = vunpack.c.l.b16 %v4066
    %v4679 = vunpack.c.h.b16 %v4066
    %v4680 = vunpack.c.l.b16 %v4067
    %v4681 = vunpack.c.h.b16 %v4067
    %v4682 = vunpack.c.l.b16 %v4068
    %v4683 = vunpack.c.h.b16 %v4068
    %v4684 = vunpack.c.l.b16 %v4069
    %v4685 = vunpack.c.h.b16 %v4069
    %v4686 = vunpack.c.l.b16 %v4070
    %v4687 = vunpack.c.h.b16 %v4070
    %v4688 = vunpack.c.l.b16 %v4071
    %v4689 = vunpack.c.h.b16 %v4071
    %v4690 = vunpack.c.l.b16 %v4072
    %v4691 = vunpack.c.h.b16 %v4072
    %v4692 = vunpack.c.l.b16 %v4073
    %v4693 = vunpack.c.h.b16 %v4073
    %v4694 = vunpack.c.l.b16 %v4074
    %v4695 = vunpack.c.h.b16 %v4074
    %v4696 = vunpack.c.l.b16 %v4075
    %v4697 = vunpack.c.h.b16 %v4075
    %v4698 = vunpack.c.l.b16 %v4076
    %v4699 = vunpack.c.h.b16 %v4076
    %v4700 = vunpack.c.l.b16 %v4077
    %v4701 = vunpack.c.h.b16 %v4077
    %v4702 = vunpack.c.l.b16 %v4078
    %v4703 = vunpack.c.h.b16 %v4078
    %v4704 = vunpack.c.l.b16 %v4079
    %v4705 = vunpack.c.h.b16 %v4079
    %v4706 = vunpack.c.l.b16 %v4080
    %v4707 = vunpack.c.h.b16 %v4080
    %v4708 = vunpack.c.l.b16 %v4081
    %v4709 = vunpack.c.h.b16 %v4081
    %v4710 = vunpack.c.l.b16 %v4082
    %v4711 = vunpack.c.h.b16 %v4082
    %v4712 = vunpack.c.l.b16 %v4083
    %v4713 = vunpack.c.h.b16 %v4083
    %v4714 = vunpack.c.l.b16 %v4084
    %v4715 = vunpack.c.h.b16 %v4084
    %v4716 = vunpack.c.l.b16 %v4085
    %v4717 = vunpack.c.h.b16 %v4085
    %v4718 = vunpack.c.l.b16 %v4086
    %v4719 = vunpack.c.h.b16 %v4086
    %v4720 = vunpack.c.l.b16 %v4087
    %v4721 = vunpack.c.h.b16 %v4087
    %v4722 = vunpack.c.l.b16 %v4088
    %v4723 = vunpack.c.h.b16 %v4088
    %v4724 = vunpack.c.l.b16 %v4089
    %v4725 = vunpack.c.h.b16 %v4089
    %v4726 = vunpack.c.l.b16 %v4090
    %v4727 = vunpack.c.h.b16 %v4090
    %v4728 = vunpack.c.l.b16 %v4091
    %v4729 = vunpack.c.h.b16 %v4091
    %v4730 = vunpack.c.l.b16 %v4092
    %v4731 = vunpack.c.h.b16 %v4092
    %v4732 = vunpack.c.l.b16 %v4093
    %v4733 = vunpack.c.h.b16 %v4093
    %v4734 = vunpack.c.l.b16 %v4094
    %v4735 = vunpack.c.h.b16 %v4094
    %v4736 = vunpack.c.l.b16 %v4095
    %v4737 = vunpack.c.h.b16 %v4095
    %v4738 = vunpack.c.l.b16 %v4096
    %v4739 = vunpack.c.h.b16 %v4096
    %v4740 = vunpack.c.l.b16 %v4097
    %v4741 = vunpack.c.h.b16 %v4097
    %v4742 = vunpack.c.l.b16 %v4098
    %v4743 = vunpack.c.h.b16 %v4098
    %v4744 = vunpack.c.l.b16 %v4099
    %v4745 = vunpack.c.h.b16 %v4099
    %v4746 = vunpack.c.l.b16 %v4100
    %v4747 = vunpack.c.h.b16 %v4100
    %v4748 = vunpack.c.l.b16 %v4101
    %v4749 = vunpack.c.h.b16 %v4101
    %v4750 = vunpack.c.l.b16 %v4102
    %v4751 = vunpack.c.h.b16 %v4102
    %v4752 = vunpack.c.l.b16 %v4103
    %v4753 = vunpack.c.h.b16 %v4103
    %v4754 = vunpack.c.l.b16 %v4104
    %v4755 = vunpack.c.h.b16 %v4104
    %v4756 = vunpack.c.l.b16 %v4105
    %v4757 = vunpack.c.h.b16 %v4105
    %v4758 = vunpack.c.l.b16 %v4106
    %v4759 = vunpack.c.h.b16 %v4106
    %v4760 = vunpack.c.l.b16 %v4107
    %v4761 = vunpack.c.h.b16 %v4107
    %v4762 = vunpack.c.l.b16 %v4108
    %v4763 = vunpack.c.h.b16 %v4108
    %v4764 = vunpack.c.l.b16 %v4109
    %v4765 = vunpack.c.h.b16 %v4109
    %v4766 = vunpack.c.l.b16 %v4110
    %v4767 = vunpack.c.h.b16 %v4110
    %v4768 = vunpack.c.l.b16 %v4111
    %v4769 = vunpack.c.h.b16 %v4111
    %v4770 = vunpack.c.l.b16 %v4112
    %v4771 = vunpack.c.h.b16 %v4112
    %v4772 = vunpack.c.l.b16 %v4113
    %v4773 = vunpack.c.h.b16 %v4113
    %v4774 = vunpack.c.l.b16 %v4114
    %v4775 = vunpack.c.h.b16 %v4114
    %v4776 = vunpack.c.l.b16 %v4115
    %v4777 = vunpack.c.h.b16 %v4115
    %v4778 = vunpack.c.l.b16 %v4116
    %v4779 = vunpack.c.h.b16 %v4116
    %v4780 = vunpack.c.l.b16 %v4117
    %v4781 = vunpack.c.h.b16 %v4117
    %v4782 = vunpack.c.l.b16 %v4118
    %v4783 = vunpack.c.h.b16 %v4118
    %v4784 = vpack.c.b16 %v4660, %v4656
    %v4785 = vpack.c.b16 %v4661, %v4657
    %v4786 = vpack.c.b16 %v4662, %v4658
    %v4787 = vpack.c.b16 %v4663, %v4659
    %v4788 = vpack.c.b16 %v4668, %v4664
    %v4789 = vpack.c.b16 %v4669, %v4665
    %v4790 = vpack.c.b16 %v4670, %v4666
    %v4791 = vpack.c.b16 %v4671, %v4667
    %v4792 = vpack.c.b16 %v4676, %v4672
    %v4793 = vpack.c.b16 %v4677, %v4673
    %v4794 = vpack.c.b16 %v4678, %v4674
    %v4795 = vpack.c.b16 %v4679, %v4675
    %v4796 = vpack.c.b16 %v4684, %v4680
    %v4797 = vpack.c.b16 %v4685, %v4681
    %v4798 = vpack.c.b16 %v4686, %v4682
    %v4799 = vpack.c.b16 %v4687, %v4683
    %v4800 = vpack.c.b16 %v4692, %v4688
    %v4801 = vpack.c.b16 %v4693, %v4689
    %v4802 = vpack.c.b16 %v4694, %v4690
    %v4803 = vpack.c.b16 %v4695, %v4691
    %v4804 = vpack.c.b16 %v4700, %v4696
    %v4805 = vpack.c.b16 %v4701, %v4697
    %v4806 = vpack.c.b16 %v4702, %v4698
    %v4807 = vpack.c.b16 %v4703, %v4699
    %v4808 = vpack.c.b16 %v4708, %v4704
    %v4809 = vpack.c.b16 %v4709, %v4705
    %v4810 = vpack.c.b16 %v4710, %v4706
    %v4811 = vpack.c.b16 %v4711, %v4707
    %v4812 = vpack.c.b16 %v4716, %v4712
    %v4813 = vpack.c.b16 %v4717, %v4713
    %v4814 = vpack.c.b16 %v4718, %v4714
    %v4815 = vpack.c.b16 %v4719, %v4715
    %v4816 = vpack.c.b16 %v4724, %v4720
    %v4817 = vpack.c.b16 %v4725, %v4721
    %v4818 = vpack.c.b16 %v4726, %v4722
    %v4819 = vpack.c.b16 %v4727, %v4723
    %v4820 = vpack.c.b16 %v4732, %v4728
    %v4821 = vpack.c.b16 %v4733, %v4729
    %v4822 = vpack.c.b16 %v4734, %v4730
    %v4823 = vpack.c.b16 %v4735, %v4731
    %v4824 = vpack.c.b16 %v4740, %v4736
    %v4825 = vpack.c.b16 %v4741, %v4737
    %v4826 = vpack.c.b16 %v4742, %v4738
    %v4827 = vpack.c.b16 %v4743, %v4739
    %v4828 = vpack.c.b16 %v4748, %v4744
    %v4829 = vpack.c.b16 %v4749, %v4745
    %v4830 = vpack.c.b16 %v4750, %v4746
    %v4831 = vpack.c.b16 %v4751, %v4747
    %v4832 = vpack.c.b16 %v4756, %v4752
    %v4833 = vpack.c.b16 %v4757, %v4753
    %v4834 = vpack.c.b16 %v4758, %v4754
    %v4835 = vpack.c.b16 %v4759, %v4755
    %v4836 = vpack.c.b16 %v4764, %v4760
    %v4837 = vpack.c.b16 %v4765, %v4761
    %v4838 = vpack.c.b16 %v4766, %v4762
    %v4839 = vpack.c.b16 %v4767, %v4763
    %v4840 = vpack.c.b16 %v4772, %v4768
    %v4841 = vpack.c.b16 %v4773, %v4769
    %v4842 = vpack.c.b16 %v4774, %v4770
    %v4843 = vpack.c.b16 %v4775, %v4771
    %v4844 = vpack.c.b16 %v4780, %v4776
    %v4845 = vpack.c.b16 %v4781, %v4777
    %v4846 = vpack.c.b16 %v4782, %v4778
    %v4847 = vpack.c.b16 %v4783, %v4779
    %4912 = vmatprep.subr.bf16.mxu0 %v4785
    %4913 = vmatpush1.bf16.msra.mxu0 %v4784
    %4914 = vmatprep.subr.bf16.mxu0 %v4789
    %4915 = vmatpush1.bf16.msra.mxu0 %v4788
    %4916 = vmatprep.subr.bf16.mxu0 %v4793
    %4917 = vmatpush1.bf16.msra.mxu0 %v4792
    %4918 = vmatprep.subr.bf16.mxu0 %v4797
    %4919 = vmatpush1.bf16.msra.mxu0 %v4796
    %4920 = vmatprep.subr.bf16.mxu0 %v4801
    %4921 = vmatpush1.bf16.msra.mxu0 %v4800
    %4922 = vmatprep.subr.bf16.mxu0 %v4805
    %4923 = vmatpush1.bf16.msra.mxu0 %v4804
    %4924 = vmatprep.subr.bf16.mxu0 %v4809
    %4925 = vmatpush1.bf16.msra.mxu0 %v4808
    %4926 = vmatprep.subr.bf16.mxu0 %v4813
    %4927 = vmatpush1.bf16.msra.mxu0 %v4812
    %4928 = vmatprep.subr.bf16.mxu0 %v4817
    %4929 = vmatpush1.bf16.msra.mxu0 %v4816
    %4930 = vmatprep.subr.bf16.mxu0 %v4821
    %4931 = vmatpush1.bf16.msra.mxu0 %v4820
    %4932 = vmatprep.subr.bf16.mxu0 %v4825
    %4933 = vmatpush1.bf16.msra.mxu0 %v4824
    %4934 = vmatprep.subr.bf16.mxu0 %v4829
    %4935 = vmatpush1.bf16.msra.mxu0 %v4828
    %4936 = vmatprep.subr.bf16.mxu0 %v4833
    %4937 = vmatpush1.bf16.msra.mxu0 %v4832
    %4938 = vmatprep.subr.bf16.mxu0 %v4837
    %4939 = vmatpush1.bf16.msra.mxu0 %v4836
    %4940 = vmatprep.subr.bf16.mxu0 %v4841
    %4941 = vmatpush1.bf16.msra.mxu0 %v4840
    %4942 = vmatprep.subr.bf16.mxu0 %v4845
    %4943 = vmatpush1.bf16.msra.mxu0 %v4844
    %4944 = vmatprep.mubr.bf16.mxu0 %v4052
    %4945 = vmatmul.mubr.bf16.gmra.mrb[0].mxu0 %v4051
    %v4946 = vpop.f32.mrb[0].mxu0
    %v4947 = vadd.f32 %v4545, %v4946
    %v4948 = vpop.f32.mrb[0].mxu0
    %v4949 = vadd.f32 %v4547, %v4948
    %v4950 = vpop.f32.mrb[0].mxu0
    %v4951 = vpop.f32.mrb[0].mxu0
    %4952 = vdwg.mxu0
    %4953 = vmatprep.subr.bf16.mxu0 %v4787
    %4954 = vmatpush1.bf16.msra.mxu0 %v4786
    %4955 = vmatprep.subr.bf16.mxu0 %v4791
    %4956 = vmatpush1.bf16.msra.mxu0 %v4790
    %4957 = vmatprep.subr.bf16.mxu0 %v4795
    %4958 = vmatpush1.bf16.msra.mxu0 %v4794
    %4959 = vmatprep.subr.bf16.mxu0 %v4799
    %4960 = vmatpush1.bf16.msra.mxu0 %v4798
    %4961 = vmatprep.subr.bf16.mxu0 %v4803
    %4962 = vmatpush1.bf16.msra.mxu0 %v4802
    %4963 = vmatprep.subr.bf16.mxu0 %v4807
    %4964 = vmatpush1.bf16.msra.mxu0 %v4806
    %4965 = vmatprep.subr.bf16.mxu0 %v4811
    %4966 = vmatpush1.bf16.msra.mxu0 %v4810
    %4967 = vmatprep.subr.bf16.mxu0 %v4815
    %4968 = vmatpush1.bf16.msra.mxu0 %v4814
    %4969 = vmatprep.subr.bf16.mxu0 %v4819
    %4970 = vmatpush1.bf16.msra.mxu0 %v4818
    %4971 = vmatprep.subr.bf16.mxu0 %v4823
    %4972 = vmatpush1.bf16.msra.mxu0 %v4822
    %4973 = vmatprep.subr.bf16.mxu0 %v4827
    %4974 = vmatpush1.bf16.msra.mxu0 %v4826
    %4975 = vmatprep.subr.bf16.mxu0 %v4831
    %4976 = vmatpush1.bf16.msra.mxu0 %v4830
    %4977 = vmatprep.subr.bf16.mxu0 %v4835
    %4978 = vmatpush1.bf16.msra.mxu0 %v4834
    %4979 = vmatprep.subr.bf16.mxu0 %v4839
    %4980 = vmatpush1.bf16.msra.mxu0 %v4838
    %4981 = vmatprep.subr.bf16.mxu0 %v4843
    %4982 = vmatpush1.bf16.msra.mxu0 %v4842
    %4983 = vmatprep.subr.bf16.mxu0 %v4847
    %4984 = vmatpush1.bf16.msra.mxu0 %v4846
    %4985 = vmatprep.mubr.bf16.mxu0 %v4052
    %4986 = vmatmul.mubr.bf16.gmra.mrb[0].mxu0 %v4051
    %v4987 = vpop.f32.mrb[0].mxu0
    %v4988 = vadd.f32 %v4586, %v4987
    %v4989 = vpop.f32.mrb[0].mxu0
    %v4990 = vadd.f32 %v4588, %v4989
    %v4991 = vpop.f32.mrb[0].mxu0
    %v4992 = vpop.f32.mrb[0].mxu0
    %4993 = vdwg.mxu0
    %s4994 = scalar_lea.vmem [#allocation8], 1024
    %v4995 = vld [vmem:[%s4994] sm:$0xff]
    %v4996 = vld [vmem:[%s4994 + $0x8] sm:$0xff]
    %v4997 = vld [vmem:[%s4994 + $0x10] sm:$0xff]
    %v4998 = vld [vmem:[%s4994 + $0x18] sm:$0xff]
    %v4999 = vld [vmem:[%s4994 + $0x20] sm:$0xff]
    %v5000 = vld [vmem:[%s4994 + $0x28] sm:$0xff]
    %v5001 = vld [vmem:[%s4994 + $0x30] sm:$0xff]
    %v5002 = vld [vmem:[%s4994 + $0x38] sm:$0xff]
    %v5003 = vld [vmem:[%s4994 + $0x40] sm:$0xff]
    %v5004 = vld [vmem:[%s4994 + $0x48] sm:$0xff]
    %v5005 = vld [vmem:[%s4994 + $0x50] sm:$0xff]
    %v5006 = vld [vmem:[%s4994 + $0x58] sm:$0xff]
    %v5007 = vld [vmem:[%s4994 + $0x60] sm:$0xff]
    %v5008 = vld [vmem:[%s4994 + $0x68] sm:$0xff]
    %v5009 = vld [vmem:[%s4994 + $0x70] sm:$0xff]
    %v5010 = vld [vmem:[%s4994 + $0x78] sm:$0xff]
    %v5011 = vld [vmem:[%s4994 + $0x80] sm:$0xff]
    %v5012 = vld [vmem:[%s4994 + $0x88] sm:$0xff]
    %v5013 = vld [vmem:[%s4994 + $0x90] sm:$0xff]
    %v5014 = vld [vmem:[%s4994 + $0x98] sm:$0xff]
    %v5015 = vld [vmem:[%s4994 + $0xa0] sm:$0xff]
    %v5016 = vld [vmem:[%s4994 + $0xa8] sm:$0xff]
    %v5017 = vld [vmem:[%s4994 + $0xb0] sm:$0xff]
    %v5018 = vld [vmem:[%s4994 + $0xb8] sm:$0xff]
    %v5019 = vld [vmem:[%s4994 + $0xc0] sm:$0xff]
    %v5020 = vld [vmem:[%s4994 + $0xc8] sm:$0xff]
    %v5021 = vld [vmem:[%s4994 + $0xd0] sm:$0xff]
    %v5022 = vld [vmem:[%s4994 + $0xd8] sm:$0xff]
    %v5023 = vld [vmem:[%s4994 + $0xe0] sm:$0xff]
    %v5024 = vld [vmem:[%s4994 + $0xe8] sm:$0xff]
    %v5025 = vld [vmem:[%s4994 + $0xf0] sm:$0xff]
    %v5026 = vld [vmem:[%s4994 + $0xf8] sm:$0xff]
    %v5027 = vld [vmem:[%s4994 + $0x100] sm:$0xff]
    %v5028 = vld [vmem:[%s4994 + $0x108] sm:$0xff]
    %v5029 = vld [vmem:[%s4994 + $0x110] sm:$0xff]
    %v5030 = vld [vmem:[%s4994 + $0x118] sm:$0xff]
    %v5031 = vld [vmem:[%s4994 + $0x120] sm:$0xff]
    %v5032 = vld [vmem:[%s4994 + $0x128] sm:$0xff]
    %v5033 = vld [vmem:[%s4994 + $0x130] sm:$0xff]
    %v5034 = vld [vmem:[%s4994 + $0x138] sm:$0xff]
    %v5035 = vld [vmem:[%s4994 + $0x140] sm:$0xff]
    %v5036 = vld [vmem:[%s4994 + $0x148] sm:$0xff]
    %v5037 = vld [vmem:[%s4994 + $0x150] sm:$0xff]
    %v5038 = vld [vmem:[%s4994 + $0x158] sm:$0xff]
    %v5039 = vld [vmem:[%s4994 + $0x160] sm:$0xff]
    %v5040 = vld [vmem:[%s4994 + $0x168] sm:$0xff]
    %v5041 = vld [vmem:[%s4994 + $0x170] sm:$0xff]
    %v5042 = vld [vmem:[%s4994 + $0x178] sm:$0xff]
    %v5043 = vld [vmem:[%s4994 + $0x180] sm:$0xff]
    %v5044 = vld [vmem:[%s4994 + $0x188] sm:$0xff]
    %v5045 = vld [vmem:[%s4994 + $0x190] sm:$0xff]
    %v5046 = vld [vmem:[%s4994 + $0x198] sm:$0xff]
    %v5047 = vld [vmem:[%s4994 + $0x1a0] sm:$0xff]
    %v5048 = vld [vmem:[%s4994 + $0x1a8] sm:$0xff]
    %v5049 = vld [vmem:[%s4994 + $0x1b0] sm:$0xff]
    %v5050 = vld [vmem:[%s4994 + $0x1b8] sm:$0xff]
    %v5051 = vld [vmem:[%s4994 + $0x1c0] sm:$0xff]
    %v5052 = vld [vmem:[%s4994 + $0x1c8] sm:$0xff]
    %v5053 = vld [vmem:[%s4994 + $0x1d0] sm:$0xff]
    %v5054 = vld [vmem:[%s4994 + $0x1d8] sm:$0xff]
    %v5055 = vld [vmem:[%s4994 + $0x1e0] sm:$0xff]
    %v5056 = vld [vmem:[%s4994 + $0x1e8] sm:$0xff]
    %v5057 = vld [vmem:[%s4994 + $0x1f0] sm:$0xff]
    %v5058 = vld [vmem:[%s4994 + $0x1f8] sm:$0xff]
    %v5123 = vunpack.c.l.b16 %v4995
    %v5124 = vunpack.c.h.b16 %v4995
    %v5125 = vunpack.c.l.b16 %v4996
    %v5126 = vunpack.c.h.b16 %v4996
    %v5127 = vunpack.c.l.b16 %v4997
    %v5128 = vunpack.c.h.b16 %v4997
    %v5129 = vunpack.c.l.b16 %v4998
    %v5130 = vunpack.c.h.b16 %v4998
    %v5131 = vunpack.c.l.b16 %v4999
    %v5132 = vunpack.c.h.b16 %v4999
    %v5133 = vunpack.c.l.b16 %v5000
    %v5134 = vunpack.c.h.b16 %v5000
    %v5135 = vunpack.c.l.b16 %v5001
    %v5136 = vunpack.c.h.b16 %v5001
    %v5137 = vunpack.c.l.b16 %v5002
    %v5138 = vunpack.c.h.b16 %v5002
    %v5139 = vunpack.c.l.b16 %v5003
    %v5140 = vunpack.c.h.b16 %v5003
    %v5141 = vunpack.c.l.b16 %v5004
    %v5142 = vunpack.c.h.b16 %v5004
    %v5143 = vunpack.c.l.b16 %v5005
    %v5144 = vunpack.c.h.b16 %v5005
    %v5145 = vunpack.c.l.b16 %v5006
    %v5146 = vunpack.c.h.b16 %v5006
    %v5147 = vunpack.c.l.b16 %v5007
    %v5148 = vunpack.c.h.b16 %v5007
    %v5149 = vunpack.c.l.b16 %v5008
    %v5150 = vunpack.c.h.b16 %v5008
    %v5151 = vunpack.c.l.b16 %v5009
    %v5152 = vunpack.c.h.b16 %v5009
    %v5153 = vunpack.c.l.b16 %v5010
    %v5154 = vunpack.c.h.b16 %v5010
    %v5155 = vunpack.c.l.b16 %v5011
    %v5156 = vunpack.c.h.b16 %v5011
    %v5157 = vunpack.c.l.b16 %v5012
    %v5158 = vunpack.c.h.b16 %v5012
    %v5159 = vunpack.c.l.b16 %v5013
    %v5160 = vunpack.c.h.b16 %v5013
    %v5161 = vunpack.c.l.b16 %v5014
    %v5162 = vunpack.c.h.b16 %v5014
    %v5163 = vunpack.c.l.b16 %v5015
    %v5164 = vunpack.c.h.b16 %v5015
    %v5165 = vunpack.c.l.b16 %v5016
    %v5166 = vunpack.c.h.b16 %v5016
    %v5167 = vunpack.c.l.b16 %v5017
    %v5168 = vunpack.c.h.b16 %v5017
    %v5169 = vunpack.c.l.b16 %v5018
    %v5170 = vunpack.c.h.b16 %v5018
    %v5171 = vunpack.c.l.b16 %v5019
    %v5172 = vunpack.c.h.b16 %v5019
    %v5173 = vunpack.c.l.b16 %v5020
    %v5174 = vunpack.c.h.b16 %v5020
    %v5175 = vunpack.c.l.b16 %v5021
    %v5176 = vunpack.c.h.b16 %v5021
    %v5177 = vunpack.c.l.b16 %v5022
    %v5178 = vunpack.c.h.b16 %v5022
    %v5179 = vunpack.c.l.b16 %v5023
    %v5180 = vunpack.c.h.b16 %v5023
    %v5181 = vunpack.c.l.b16 %v5024
    %v5182 = vunpack.c.h.b16 %v5024
    %v5183 = vunpack.c.l.b16 %v5025
    %v5184 = vunpack.c.h.b16 %v5025
    %v5185 = vunpack.c.l.b16 %v5026
    %v5186 = vunpack.c.h.b16 %v5026
    %v5187 = vunpack.c.l.b16 %v5027
    %v5188 = vunpack.c.h.b16 %v5027
    %v5189 = vunpack.c.l.b16 %v5028
    %v5190 = vunpack.c.h.b16 %v5028
    %v5191 = vunpack.c.l.b16 %v5029
    %v5192 = vunpack.c.h.b16 %v5029
    %v5193 = vunpack.c.l.b16 %v5030
    %v5194 = vunpack.c.h.b16 %v5030
    %v5195 = vunpack.c.l.b16 %v5031
    %v5196 = vunpack.c.h.b16 %v5031
    %v5197 = vunpack.c.l.b16 %v5032
    %v5198 = vunpack.c.h.b16 %v5032
    %v5199 = vunpack.c.l.b16 %v5033
    %v5200 = vunpack.c.h.b16 %v5033
    %v5201 = vunpack.c.l.b16 %v5034
    %v5202 = vunpack.c.h.b16 %v5034
    %v5203 = vunpack.c.l.b16 %v5035
    %v5204 = vunpack.c.h.b16 %v5035
    %v5205 = vunpack.c.l.b16 %v5036
    %v5206 = vunpack.c.h.b16 %v5036
    %v5207 = vunpack.c.l.b16 %v5037
    %v5208 = vunpack.c.h.b16 %v5037
    %v5209 = vunpack.c.l.b16 %v5038
    %v5210 = vunpack.c.h.b16 %v5038
    %v5211 = vunpack.c.l.b16 %v5039
    %v5212 = vunpack.c.h.b16 %v5039
    %v5213 = vunpack.c.l.b16 %v5040
    %v5214 = vunpack.c.h.b16 %v5040
    %v5215 = vunpack.c.l.b16 %v5041
    %v5216 = vunpack.c.h.b16 %v5041
    %v5217 = vunpack.c.l.b16 %v5042
    %v5218 = vunpack.c.h.b16 %v5042
    %v5219 = vunpack.c.l.b16 %v5043
    %v5220 = vunpack.c.h.b16 %v5043
    %v5221 = vunpack.c.l.b16 %v5044
    %v5222 = vunpack.c.h.b16 %v5044
    %v5223 = vunpack.c.l.b16 %v5045
    %v5224 = vunpack.c.h.b16 %v5045
    %v5225 = vunpack.c.l.b16 %v5046
    %v5226 = vunpack.c.h.b16 %v5046
    %v5227 = vunpack.c.l.b16 %v5047
    %v5228 = vunpack.c.h.b16 %v5047
    %v5229 = vunpack.c.l.b16 %v5048
    %v5230 = vunpack.c.h.b16 %v5048
    %v5231 = vunpack.c.l.b16 %v5049
    %v5232 = vunpack.c.h.b16 %v5049
    %v5233 = vunpack.c.l.b16 %v5050
    %v5234 = vunpack.c.h.b16 %v5050
    %v5235 = vunpack.c.l.b16 %v5051
    %v5236 = vunpack.c.h.b16 %v5051
    %v5237 = vunpack.c.l.b16 %v5052
    %v5238 = vunpack.c.h.b16 %v5052
    %v5239 = vunpack.c.l.b16 %v5053
    %v5240 = vunpack.c.h.b16 %v5053
    %v5241 = vunpack.c.l.b16 %v5054
    %v5242 = vunpack.c.h.b16 %v5054
    %v5243 = vunpack.c.l.b16 %v5055
    %v5244 = vunpack.c.h.b16 %v5055
    %v5245 = vunpack.c.l.b16 %v5056
    %v5246 = vunpack.c.h.b16 %v5056
    %v5247 = vunpack.c.l.b16 %v5057
    %v5248 = vunpack.c.h.b16 %v5057
    %v5249 = vunpack.c.l.b16 %v5058
    %v5250 = vunpack.c.h.b16 %v5058
    %v5251 = vpack.c.b16 %v5127, %v5123
    %v5252 = vpack.c.b16 %v5128, %v5124
    %v5253 = vpack.c.b16 %v5129, %v5125
    %v5254 = vpack.c.b16 %v5130, %v5126
    %v5255 = vpack.c.b16 %v5135, %v5131
    %v5256 = vpack.c.b16 %v5136, %v5132
    %v5257 = vpack.c.b16 %v5137, %v5133
    %v5258 = vpack.c.b16 %v5138, %v5134
    %v5259 = vpack.c.b16 %v5143, %v5139
    %v5260 = vpack.c.b16 %v5144, %v5140
    %v5261 = vpack.c.b16 %v5145, %v5141
    %v5262 = vpack.c.b16 %v5146, %v5142
    %v5263 = vpack.c.b16 %v5151, %v5147
    %v5264 = vpack.c.b16 %v5152, %v5148
    %v5265 = vpack.c.b16 %v5153, %v5149
    %v5266 = vpack.c.b16 %v5154, %v5150
    %v5267 = vpack.c.b16 %v5159, %v5155
    %v5268 = vpack.c.b16 %v5160, %v5156
    %v5269 = vpack.c.b16 %v5161, %v5157
    %v5270 = vpack.c.b16 %v5162, %v5158
    %v5271 = vpack.c.b16 %v5167, %v5163
    %v5272 = vpack.c.b16 %v5168, %v5164
    %v5273 = vpack.c.b16 %v5169, %v5165
    %v5274 = vpack.c.b16 %v5170, %v5166
    %v5275 = vpack.c.b16 %v5175, %v5171
    %v5276 = vpack.c.b16 %v5176, %v5172
    %v5277 = vpack.c.b16 %v5177, %v5173
    %v5278 = vpack.c.b16 %v5178, %v5174
    %v5279 = vpack.c.b16 %v5183, %v5179
    %v5280 = vpack.c.b16 %v5184, %v5180
    %v5281 = vpack.c.b16 %v5185, %v5181
    %v5282 = vpack.c.b16 %v5186, %v5182
    %v5283 = vpack.c.b16 %v5191, %v5187
    %v5284 = vpack.c.b16 %v5192, %v5188
    %v5285 = vpack.c.b16 %v5193, %v5189
    %v5286 = vpack.c.b16 %v5194, %v5190
    %v5287 = vpack.c.b16 %v5199, %v5195
    %v5288 = vpack.c.b16 %v5200, %v5196
    %v5289 = vpack.c.b16 %v5201, %v5197
    %v5290 = vpack.c.b16 %v5202, %v5198
    %v5291 = vpack.c.b16 %v5207, %v5203
    %v5292 = vpack.c.b16 %v5208, %v5204
    %v5293 = vpack.c.b16 %v5209, %v5205
    %v5294 = vpack.c.b16 %v5210, %v5206
    %v5295 = vpack.c.b16 %v5215, %v5211
    %v5296 = vpack.c.b16 %v5216, %v5212
    %v5297 = vpack.c.b16 %v5217, %v5213
    %v5298 = vpack.c.b16 %v5218, %v5214
    %v5299 = vpack.c.b16 %v5223, %v5219
    %v5300 = vpack.c.b16 %v5224, %v5220
    %v5301 = vpack.c.b16 %v5225, %v5221
    %v5302 = vpack.c.b16 %v5226, %v5222
    %v5303 = vpack.c.b16 %v5231, %v5227
    %v5304 = vpack.c.b16 %v5232, %v5228
    %v5305 = vpack.c.b16 %v5233, %v5229
    %v5306 = vpack.c.b16 %v5234, %v5230
    %v5307 = vpack.c.b16 %v5239, %v5235
    %v5308 = vpack.c.b16 %v5240, %v5236
    %v5309 = vpack.c.b16 %v5241, %v5237
    %v5310 = vpack.c.b16 %v5242, %v5238
    %v5311 = vpack.c.b16 %v5247, %v5243
    %v5312 = vpack.c.b16 %v5248, %v5244
    %v5313 = vpack.c.b16 %v5249, %v5245
    %v5314 = vpack.c.b16 %v5250, %v5246
    %5379 = vmatprep.subr.bf16.mxu0 %v5252
    %5380 = vmatpush1.bf16.msra.mxu0 %v5251
    %5381 = vmatprep.subr.bf16.mxu0 %v5256
    %5382 = vmatpush1.bf16.msra.mxu0 %v5255
    %5383 = vmatprep.subr.bf16.mxu0 %v5260
    %5384 = vmatpush1.bf16.msra.mxu0 %v5259
    %5385 = vmatprep.subr.bf16.mxu0 %v5264
    %5386 = vmatpush1.bf16.msra.mxu0 %v5263
    %5387 = vmatprep.subr.bf16.mxu0 %v5268
    %5388 = vmatpush1.bf16.msra.mxu0 %v5267
    %5389 = vmatprep.subr.bf16.mxu0 %v5272
    %5390 = vmatpush1.bf16.msra.mxu0 %v5271
    %5391 = vmatprep.subr.bf16.mxu0 %v5276
    %5392 = vmatpush1.bf16.msra.mxu0 %v5275
    %5393 = vmatprep.subr.bf16.mxu0 %v5280
    %5394 = vmatpush1.bf16.msra.mxu0 %v5279
    %5395 = vmatprep.subr.bf16.mxu0 %v5284
    %5396 = vmatpush1.bf16.msra.mxu0 %v5283
    %5397 = vmatprep.subr.bf16.mxu0 %v5288
    %5398 = vmatpush1.bf16.msra.mxu0 %v5287
    %5399 = vmatprep.subr.bf16.mxu0 %v5292
    %5400 = vmatpush1.bf16.msra.mxu0 %v5291
    %5401 = vmatprep.subr.bf16.mxu0 %v5296
    %5402 = vmatpush1.bf16.msra.mxu0 %v5295
    %5403 = vmatprep.subr.bf16.mxu0 %v5300
    %5404 = vmatpush1.bf16.msra.mxu0 %v5299
    %5405 = vmatprep.subr.bf16.mxu0 %v5304
    %5406 = vmatpush1.bf16.msra.mxu0 %v5303
    %5407 = vmatprep.subr.bf16.mxu0 %v5308
    %5408 = vmatpush1.bf16.msra.mxu0 %v5307
    %5409 = vmatprep.subr.bf16.mxu0 %v5312
    %5410 = vmatpush1.bf16.msra.mxu0 %v5311
    %5411 = vmatprep.mubr.bf16.mxu0 %v4054
    %5412 = vmatmul.mubr.bf16.gmra.mrb[0].mxu0 %v4053
    %v5413 = vpop.f32.mrb[0].mxu0
    %v5414 = vadd.f32 0.0, %v5413
    %v5415 = vpop.f32.mrb[0].mxu0
    %v5416 = vadd.f32 0.0, %v5415
    %v5417 = vpop.f32.mrb[0].mxu0
    %v5418 = vpop.f32.mrb[0].mxu0
    %5419 = vdwg.mxu0
    %5420 = vmatprep.subr.bf16.mxu0 %v5254
    %5421 = vmatpush1.bf16.msra.mxu0 %v5253
    %5422 = vmatprep.subr.bf16.mxu0 %v5258
    %5423 = vmatpush1.bf16.msra.mxu0 %v5257
    %5424 = vmatprep.subr.bf16.mxu0 %v5262
    %5425 = vmatpush1.bf16.msra.mxu0 %v5261
    %5426 = vmatprep.subr.bf16.mxu0 %v5266
    %5427 = vmatpush1.bf16.msra.mxu0 %v5265
    %5428 = vmatprep.subr.bf16.mxu0 %v5270
    %5429 = vmatpush1.bf16.msra.mxu0 %v5269
    %5430 = vmatprep.subr.bf16.mxu0 %v5274
    %5431 = vmatpush1.bf16.msra.mxu0 %v5273
    %5432 = vmatprep.subr.bf16.mxu0 %v5278
    %5433 = vmatpush1.bf16.msra.mxu0 %v5277
    %5434 = vmatprep.subr.bf16.mxu0 %v5282
    %5435 = vmatpush1.bf16.msra.mxu0 %v5281
    %5436 = vmatprep.subr.bf16.mxu0 %v5286
    %5437 = vmatpush1.bf16.msra.mxu0 %v5285
    %5438 = vmatprep.subr.bf16.mxu0 %v5290
    %5439 = vmatpush1.bf16.msra.mxu0 %v5289
    %5440 = vmatprep.subr.bf16.mxu0 %v5294
    %5441 = vmatpush1.bf16.msra.mxu0 %v5293
    %5442 = vmatprep.subr.bf16.mxu0 %v5298
    %5443 = vmatpush1.bf16.msra.mxu0 %v5297
    %5444 = vmatprep.subr.bf16.mxu0 %v5302
    %5445 = vmatpush1.bf16.msra.mxu0 %v5301
    %5446 = vmatprep.subr.bf16.mxu0 %v5306
    %5447 = vmatpush1.bf16.msra.mxu0 %v5305
    %5448 = vmatprep.subr.bf16.mxu0 %v5310
    %5449 = vmatpush1.bf16.msra.mxu0 %v5309
    %5450 = vmatprep.subr.bf16.mxu0 %v5314
    %5451 = vmatpush1.bf16.msra.mxu0 %v5313
    %5452 = vmatprep.mubr.bf16.mxu0 %v4054
    %5453 = vmatmul.mubr.bf16.gmra.mrb[0].mxu0 %v4053
    %v5454 = vpop.f32.mrb[0].mxu0
    %v5455 = vadd.f32 0.0, %v5454
    %v5456 = vpop.f32.mrb[0].mxu0
    %v5457 = vadd.f32 0.0, %v5456
    %v5458 = vpop.f32.mrb[0].mxu0
    %v5459 = vpop.f32.mrb[0].mxu0
    %5460 = vdwg.mxu0
    %v5461 = vadd.f32 %v4947, %v5414
    %v5462 = vadd.f32 %v4949, %v5416
    %v5463 = vadd.f32 %v4988, %v5455
    %v5464 = vadd.f32 %v4990, %v5457
    %s5465 = scalar_lea.vmem [#allocation8], 1536
    %v5466 = vld [vmem:[%s5465] sm:$0xff]
    %v5467 = vld [vmem:[%s5465 + $0x8] sm:$0xff]
    %v5468 = vld [vmem:[%s5465 + $0x10] sm:$0xff]
    %v5469 = vld [vmem:[%s5465 + $0x18] sm:$0xff]
    %v5470 = vld [vmem:[%s5465 + $0x20] sm:$0xff]
    %v5471 = vld [vmem:[%s5465 + $0x28] sm:$0xff]
    %v5472 = vld [vmem:[%s5465 + $0x30] sm:$0xff]
    %v5473 = vld [vmem:[%s5465 + $0x38] sm:$0xff]
    %v5474 = vld [vmem:[%s5465 + $0x40] sm:$0xff]
    %v5475 = vld [vmem:[%s5465 + $0x48] sm:$0xff]
    %v5476 = vld [vmem:[%s5465 + $0x50] sm:$0xff]
    %v5477 = vld [vmem:[%s5465 + $0x58] sm:$0xff]
    %v5478 = vld [vmem:[%s5465 + $0x60] sm:$0xff]
    %v5479 = vld [vmem:[%s5465 + $0x68] sm:$0xff]
    %v5480 = vld [vmem:[%s5465 + $0x70] sm:$0xff]
    %v5481 = vld [vmem:[%s5465 + $0x78] sm:$0xff]
    %v5482 = vld [vmem:[%s5465 + $0x80] sm:$0xff]
    %v5483 = vld [vmem:[%s5465 + $0x88] sm:$0xff]
    %v5484 = vld [vmem:[%s5465 + $0x90] sm:$0xff]
    %v5485 = vld [vmem:[%s5465 + $0x98] sm:$0xff]
    %v5486 = vld [vmem:[%s5465 + $0xa0] sm:$0xff]
    %v5487 = vld [vmem:[%s5465 + $0xa8] sm:$0xff]
    %v5488 = vld [vmem:[%s5465 + $0xb0] sm:$0xff]
    %v5489 = vld [vmem:[%s5465 + $0xb8] sm:$0xff]
    %v5490 = vld [vmem:[%s5465 + $0xc0] sm:$0xff]
    %v5491 = vld [vmem:[%s5465 + $0xc8] sm:$0xff]
    %v5492 = vld [vmem:[%s5465 + $0xd0] sm:$0xff]
    %v5493 = vld [vmem:[%s5465 + $0xd8] sm:$0xff]
    %v5494 = vld [vmem:[%s5465 + $0xe0] sm:$0xff]
    %v5495 = vld [vmem:[%s5465 + $0xe8] sm:$0xff]
    %v5496 = vld [vmem:[%s5465 + $0xf0] sm:$0xff]
    %v5497 = vld [vmem:[%s5465 + $0xf8] sm:$0xff]
    %v5498 = vld [vmem:[%s5465 + $0x100] sm:$0xff]
    %v5499 = vld [vmem:[%s5465 + $0x108] sm:$0xff]
    %v5500 = vld [vmem:[%s5465 + $0x110] sm:$0xff]
    %v5501 = vld [vmem:[%s5465 + $0x118] sm:$0xff]
    %v5502 = vld [vmem:[%s5465 + $0x120] sm:$0xff]
    %v5503 = vld [vmem:[%s5465 + $0x128] sm:$0xff]
    %v5504 = vld [vmem:[%s5465 + $0x130] sm:$0xff]
    %v5505 = vld [vmem:[%s5465 + $0x138] sm:$0xff]
    %v5506 = vld [vmem:[%s5465 + $0x140] sm:$0xff]
    %v5507 = vld [vmem:[%s5465 + $0x148] sm:$0xff]
    %v5508 = vld [vmem:[%s5465 + $0x150] sm:$0xff]
    %v5509 = vld [vmem:[%s5465 + $0x158] sm:$0xff]
    %v5510 = vld [vmem:[%s5465 + $0x160] sm:$0xff]
    %v5511 = vld [vmem:[%s5465 + $0x168] sm:$0xff]
    %v5512 = vld [vmem:[%s5465 + $0x170] sm:$0xff]
    %v5513 = vld [vmem:[%s5465 + $0x178] sm:$0xff]
    %v5514 = vld [vmem:[%s5465 + $0x180] sm:$0xff]
    %v5515 = vld [vmem:[%s5465 + $0x188] sm:$0xff]
    %v5516 = vld [vmem:[%s5465 + $0x190] sm:$0xff]
    %v5517 = vld [vmem:[%s5465 + $0x198] sm:$0xff]
    %v5518 = vld [vmem:[%s5465 + $0x1a0] sm:$0xff]
    %v5519 = vld [vmem:[%s5465 + $0x1a8] sm:$0xff]
    %v5520 = vld [vmem:[%s5465 + $0x1b0] sm:$0xff]
    %v5521 = vld [vmem:[%s5465 + $0x1b8] sm:$0xff]
    %v5522 = vld [vmem:[%s5465 + $0x1c0] sm:$0xff]
    %v5523 = vld [vmem:[%s5465 + $0x1c8] sm:$0xff]
    %v5524 = vld [vmem:[%s5465 + $0x1d0] sm:$0xff]
    %v5525 = vld [vmem:[%s5465 + $0x1d8] sm:$0xff]
    %v5526 = vld [vmem:[%s5465 + $0x1e0] sm:$0xff]
    %v5527 = vld [vmem:[%s5465 + $0x1e8] sm:$0xff]
    %v5528 = vld [vmem:[%s5465 + $0x1f0] sm:$0xff]
    %v5529 = vld [vmem:[%s5465 + $0x1f8] sm:$0xff]
    %v5532 = vrot.slane %v4053, 4
    %v5533 = vrot.slane %v4054, 4
    %v5600 = vunpack.c.l.b16 %v5466
    %v5601 = vunpack.c.h.b16 %v5466
    %v5602 = vunpack.c.l.b16 %v5467
    %v5603 = vunpack.c.h.b16 %v5467
    %v5604 = vunpack.c.l.b16 %v5468
    %v5605 = vunpack.c.h.b16 %v5468
    %v5606 = vunpack.c.l.b16 %v5469
    %v5607 = vunpack.c.h.b16 %v5469
    %v5608 = vunpack.c.l.b16 %v5470
    %v5609 = vunpack.c.h.b16 %v5470
    %v5610 = vunpack.c.l.b16 %v5471
    %v5611 = vunpack.c.h.b16 %v5471
    %v5612 = vunpack.c.l.b16 %v5472
    %v5613 = vunpack.c.h.b16 %v5472
    %v5614 = vunpack.c.l.b16 %v5473
    %v5615 = vunpack.c.h.b16 %v5473
    %v5616 = vunpack.c.l.b16 %v5474
    %v5617 = vunpack.c.h.b16 %v5474
    %v5618 = vunpack.c.l.b16 %v5475
    %v5619 = vunpack.c.h.b16 %v5475
    %v5620 = vunpack.c.l.b16 %v5476
    %v5621 = vunpack.c.h.b16 %v5476
    %v5622 = vunpack.c.l.b16 %v5477
    %v5623 = vunpack.c.h.b16 %v5477
    %v5624 = vunpack.c.l.b16 %v5478
    %v5625 = vunpack.c.h.b16 %v5478
    %v5626 = vunpack.c.l.b16 %v5479
    %v5627 = vunpack.c.h.b16 %v5479
    %v5628 = vunpack.c.l.b16 %v5480
    %v5629 = vunpack.c.h.b16 %v5480
    %v5630 = vunpack.c.l.b16 %v5481
    %v5631 = vunpack.c.h.b16 %v5481
    %v5632 = vunpack.c.l.b16 %v5482
    %v5633 = vunpack.c.h.b16 %v5482
    %v5634 = vunpack.c.l.b16 %v5483
    %v5635 = vunpack.c.h.b16 %v5483
    %v5636 = vunpack.c.l.b16 %v5484
    %v5637 = vunpack.c.h.b16 %v5484
    %v5638 = vunpack.c.l.b16 %v5485
    %v5639 = vunpack.c.h.b16 %v5485
    %v5640 = vunpack.c.l.b16 %v5486
    %v5641 = vunpack.c.h.b16 %v5486
    %v5642 = vunpack.c.l.b16 %v5487
    %v5643 = vunpack.c.h.b16 %v5487
    %v5644 = vunpack.c.l.b16 %v5488
    %v5645 = vunpack.c.h.b16 %v5488
    %v5646 = vunpack.c.l.b16 %v5489
    %v5647 = vunpack.c.h.b16 %v5489
    %v5648 = vunpack.c.l.b16 %v5490
    %v5649 = vunpack.c.h.b16 %v5490
    %v5650 = vunpack.c.l.b16 %v5491
    %v5651 = vunpack.c.h.b16 %v5491
    %v5652 = vunpack.c.l.b16 %v5492
    %v5653 = vunpack.c.h.b16 %v5492
    %v5654 = vunpack.c.l.b16 %v5493
    %v5655 = vunpack.c.h.b16 %v5493
    %v5656 = vunpack.c.l.b16 %v5494
    %v5657 = vunpack.c.h.b16 %v5494
    %v5658 = vunpack.c.l.b16 %v5495
    %v5659 = vunpack.c.h.b16 %v5495
    %v5660 = vunpack.c.l.b16 %v5496
    %v5661 = vunpack.c.h.b16 %v5496
    %v5662 = vunpack.c.l.b16 %v5497
    %v5663 = vunpack.c.h.b16 %v5497
    %v5664 = vunpack.c.l.b16 %v5498
    %v5665 = vunpack.c.h.b16 %v5498
    %v5666 = vunpack.c.l.b16 %v5499
    %v5667 = vunpack.c.h.b16 %v5499
    %v5668 = vunpack.c.l.b16 %v5500
    %v5669 = vunpack.c.h.b16 %v5500
    %v5670 = vunpack.c.l.b16 %v5501
    %v5671 = vunpack.c.h.b16 %v5501
    %v5672 = vunpack.c.l.b16 %v5502
    %v5673 = vunpack.c.h.b16 %v5502
    %v5674 = vunpack.c.l.b16 %v5503
    %v5675 = vunpack.c.h.b16 %v5503
    %v5676 = vunpack.c.l.b16 %v5504
    %v5677 = vunpack.c.h.b16 %v5504
    %v5678 = vunpack.c.l.b16 %v5505
    %v5679 = vunpack.c.h.b16 %v5505
    %v5680 = vunpack.c.l.b16 %v5506
    %v5681 = vunpack.c.h.b16 %v5506
    %v5682 = vunpack.c.l.b16 %v5507
    %v5683 = vunpack.c.h.b16 %v5507
    %v5684 = vunpack.c.l.b16 %v5508
    %v5685 = vunpack.c.h.b16 %v5508
    %v5686 = vunpack.c.l.b16 %v5509
    %v5687 = vunpack.c.h.b16 %v5509
    %v5688 = vunpack.c.l.b16 %v5510
    %v5689 = vunpack.c.h.b16 %v5510
    %v5690 = vunpack.c.l.b16 %v5511
    %v5691 = vunpack.c.h.b16 %v5511
    %v5692 = vunpack.c.l.b16 %v5512
    %v5693 = vunpack.c.h.b16 %v5512
    %v5694 = vunpack.c.l.b16 %v5513
    %v5695 = vunpack.c.h.b16 %v5513
    %v5696 = vunpack.c.l.b16 %v5514
    %v5697 = vunpack.c.h.b16 %v5514
    %v5698 = vunpack.c.l.b16 %v5515
    %v5699 = vunpack.c.h.b16 %v5515
    %v5700 = vunpack.c.l.b16 %v5516
    %v5701 = vunpack.c.h.b16 %v5516
    %v5702 = vunpack.c.l.b16 %v5517
    %v5703 = vunpack.c.h.b16 %v5517
    %v5704 = vunpack.c.l.b16 %v5518
    %v5705 = vunpack.c.h.b16 %v5518
    %v5706 = vunpack.c.l.b16 %v5519
    %v5707 = vunpack.c.h.b16 %v5519
    %v5708 = vunpack.c.l.b16 %v5520
    %v5709 = vunpack.c.h.b16 %v5520
    %v5710 = vunpack.c.l.b16 %v5521
    %v5711 = vunpack.c.h.b16 %v5521
    %v5712 = vunpack.c.l.b16 %v5522
    %v5713 = vunpack.c.h.b16 %v5522
    %v5714 = vunpack.c.l.b16 %v5523
    %v5715 = vunpack.c.h.b16 %v5523
    %v5716 = vunpack.c.l.b16 %v5524
    %v5717 = vunpack.c.h.b16 %v5524
    %v5718 = vunpack.c.l.b16 %v5525
    %v5719 = vunpack.c.h.b16 %v5525
    %v5720 = vunpack.c.l.b16 %v5526
    %v5721 = vunpack.c.h.b16 %v5526
    %v5722 = vunpack.c.l.b16 %v5527
    %v5723 = vunpack.c.h.b16 %v5527
    %v5724 = vunpack.c.l.b16 %v5528
    %v5725 = vunpack.c.h.b16 %v5528
    %v5726 = vunpack.c.l.b16 %v5529
    %v5727 = vunpack.c.h.b16 %v5529
    %v5728 = vpack.c.b16 %v5604, %v5600
    %v5729 = vpack.c.b16 %v5605, %v5601
    %v5730 = vpack.c.b16 %v5606, %v5602
    %v5731 = vpack.c.b16 %v5607, %v5603
    %v5732 = vpack.c.b16 %v5612, %v5608
    %v5733 = vpack.c.b16 %v5613, %v5609
    %v5734 = vpack.c.b16 %v5614, %v5610
    %v5735 = vpack.c.b16 %v5615, %v5611
    %v5736 = vpack.c.b16 %v5620, %v5616
    %v5737 = vpack.c.b16 %v5621, %v5617
    %v5738 = vpack.c.b16 %v5622, %v5618
    %v5739 = vpack.c.b16 %v5623, %v5619
    %v5740 = vpack.c.b16 %v5628, %v5624
    %v5741 = vpack.c.b16 %v5629, %v5625
    %v5742 = vpack.c.b16 %v5630, %v5626
    %v5743 = vpack.c.b16 %v5631, %v5627
    %v5744 = vpack.c.b16 %v5636, %v5632
    %v5745 = vpack.c.b16 %v5637, %v5633
    %v5746 = vpack.c.b16 %v5638, %v5634
    %v5747 = vpack.c.b16 %v5639, %v5635
    %v5748 = vpack.c.b16 %v5644, %v5640
    %v5749 = vpack.c.b16 %v5645, %v5641
    %v5750 = vpack.c.b16 %v5646, %v5642
    %v5751 = vpack.c.b16 %v5647, %v5643
    %v5752 = vpack.c.b16 %v5652, %v5648
    %v5753 = vpack.c.b16 %v5653, %v5649
    %v5754 = vpack.c.b16 %v5654, %v5650
    %v5755 = vpack.c.b16 %v5655, %v5651
    %v5756 = vpack.c.b16 %v5660, %v5656
    %v5757 = vpack.c.b16 %v5661, %v5657
    %v5758 = vpack.c.b16 %v5662, %v5658
    %v5759 = vpack.c.b16 %v5663, %v5659
    %v5760 = vpack.c.b16 %v5668, %v5664
    %v5761 = vpack.c.b16 %v5669, %v5665
    %v5762 = vpack.c.b16 %v5670, %v5666
    %v5763 = vpack.c.b16 %v5671, %v5667
    %v5764 = vpack.c.b16 %v5676, %v5672
    %v5765 = vpack.c.b16 %v5677, %v5673
    %v5766 = vpack.c.b16 %v5678, %v5674
    %v5767 = vpack.c.b16 %v5679, %v5675
    %v5768 = vpack.c.b16 %v5684, %v5680
    %v5769 = vpack.c.b16 %v5685, %v5681
    %v5770 = vpack.c.b16 %v5686, %v5682
    %v5771 = vpack.c.b16 %v5687, %v5683
    %v5772 = vpack.c.b16 %v5692, %v5688
    %v5773 = vpack.c.b16 %v5693, %v5689
    %v5774 = vpack.c.b16 %v5694, %v5690
    %v5775 = vpack.c.b16 %v5695, %v5691
    %v5776 = vpack.c.b16 %v5700, %v5696
    %v5777 = vpack.c.b16 %v5701, %v5697
    %v5778 = vpack.c.b16 %v5702, %v5698
    %v5779 = vpack.c.b16 %v5703, %v5699
    %v5780 = vpack.c.b16 %v5708, %v5704
    %v5781 = vpack.c.b16 %v5709, %v5705
    %v5782 = vpack.c.b16 %v5710, %v5706
    %v5783 = vpack.c.b16 %v5711, %v5707
    %v5784 = vpack.c.b16 %v5716, %v5712
    %v5785 = vpack.c.b16 %v5717, %v5713
    %v5786 = vpack.c.b16 %v5718, %v5714
    %v5787 = vpack.c.b16 %v5719, %v5715
    %v5788 = vpack.c.b16 %v5724, %v5720
    %v5789 = vpack.c.b16 %v5725, %v5721
    %v5790 = vpack.c.b16 %v5726, %v5722
    %v5791 = vpack.c.b16 %v5727, %v5723
    %5856 = vmatprep.subr.bf16.mxu0 %v5729
    %5857 = vmatpush1.bf16.msra.mxu0 %v5728
    %5858 = vmatprep.subr.bf16.mxu0 %v5733
    %5859 = vmatpush1.bf16.msra.mxu0 %v5732
    %5860 = vmatprep.subr.bf16.mxu0 %v5737
    %5861 = vmatpush1.bf16.msra.mxu0 %v5736
    %5862 = vmatprep.subr.bf16.mxu0 %v5741
    %5863 = vmatpush1.bf16.msra.mxu0 %v5740
    %5864 = vmatprep.subr.bf16.mxu0 %v5745
    %5865 = vmatpush1.bf16.msra.mxu0 %v5744
    %5866 = vmatprep.subr.bf16.mxu0 %v5749
    %5867 = vmatpush1.bf16.msra.mxu0 %v5748
    %5868 = vmatprep.subr.bf16.mxu0 %v5753
    %5869 = vmatpush1.bf16.msra.mxu0 %v5752
    %5870 = vmatprep.subr.bf16.mxu0 %v5757
    %5871 = vmatpush1.bf16.msra.mxu0 %v5756
    %5872 = vmatprep.subr.bf16.mxu0 %v5761
    %5873 = vmatpush1.bf16.msra.mxu0 %v5760
    %5874 = vmatprep.subr.bf16.mxu0 %v5765
    %5875 = vmatpush1.bf16.msra.mxu0 %v5764
    %5876 = vmatprep.subr.bf16.mxu0 %v5769
    %5877 = vmatpush1.bf16.msra.mxu0 %v5768
    %5878 = vmatprep.subr.bf16.mxu0 %v5773
    %5879 = vmatpush1.bf16.msra.mxu0 %v5772
    %5880 = vmatprep.subr.bf16.mxu0 %v5777
    %5881 = vmatpush1.bf16.msra.mxu0 %v5776
    %5882 = vmatprep.subr.bf16.mxu0 %v5781
    %5883 = vmatpush1.bf16.msra.mxu0 %v5780
    %5884 = vmatprep.subr.bf16.mxu0 %v5785
    %5885 = vmatpush1.bf16.msra.mxu0 %v5784
    %5886 = vmatprep.subr.bf16.mxu0 %v5789
    %5887 = vmatpush1.bf16.msra.mxu0 %v5788
    %5888 = vmatprep.mubr.bf16.mxu0 %v5533
    %5889 = vmatmul.mubr.bf16.gmra.mrb[0].mxu0 %v5532
    %v5890 = vpop.f32.mrb[0].mxu0
    %v5891 = vadd.f32 0.0, %v5890
    %v5892 = vpop.f32.mrb[0].mxu0
    %v5893 = vadd.f32 0.0, %v5892
    %v5894 = vpop.f32.mrb[0].mxu0
    %v5895 = vpop.f32.mrb[0].mxu0
    %5896 = vdwg.mxu0
    %5897 = vmatprep.subr.bf16.mxu0 %v5731
    %5898 = vmatpush1.bf16.msra.mxu0 %v5730
    %5899 = vmatprep.subr.bf16.mxu0 %v5735
    %5900 = vmatpush1.bf16.msra.mxu0 %v5734
    %5901 = vmatprep.subr.bf16.mxu0 %v5739
    %5902 = vmatpush1.bf16.msra.mxu0 %v5738
    %5903 = vmatprep.subr.bf16.mxu0 %v5743
    %5904 = vmatpush1.bf16.msra.mxu0 %v5742
    %5905 = vmatprep.subr.bf16.mxu0 %v5747
    %5906 = vmatpush1.bf16.msra.mxu0 %v5746
    %5907 = vmatprep.subr.bf16.mxu0 %v5751
    %5908 = vmatpush1.bf16.msra.mxu0 %v5750
    %5909 = vmatprep.subr.bf16.mxu0 %v5755
    %5910 = vmatpush1.bf16.msra.mxu0 %v5754
    %5911 = vmatprep.subr.bf16.mxu0 %v5759
    %5912 = vmatpush1.bf16.msra.mxu0 %v5758
    %5913 = vmatprep.subr.bf16.mxu0 %v5763
    %5914 = vmatpush1.bf16.msra.mxu0 %v5762
    %5915 = vmatprep.subr.bf16.mxu0 %v5767
    %5916 = vmatpush1.bf16.msra.mxu0 %v5766
    %5917 = vmatprep.subr.bf16.mxu0 %v5771
    %5918 = vmatpush1.bf16.msra.mxu0 %v5770
    %5919 = vmatprep.subr.bf16.mxu0 %v5775
    %5920 = vmatpush1.bf16.msra.mxu0 %v5774
    %5921 = vmatprep.subr.bf16.mxu0 %v5779
    %5922 = vmatpush1.bf16.msra.mxu0 %v5778
    %5923 = vmatprep.subr.bf16.mxu0 %v5783
    %5924 = vmatpush1.bf16.msra.mxu0 %v5782
    %5925 = vmatprep.subr.bf16.mxu0 %v5787
    %5926 = vmatpush1.bf16.msra.mxu0 %v5786
    %5927 = vmatprep.subr.bf16.mxu0 %v5791
    %5928 = vmatpush1.bf16.msra.mxu0 %v5790
    %5929 = vmatprep.mubr.bf16.mxu0 %v5533
    %5930 = vmatmul.mubr.bf16.gmra.mrb[0].mxu0 %v5532
    %v5931 = vpop.f32.mrb[0].mxu0
    %v5932 = vadd.f32 0.0, %v5931
    %v5933 = vpop.f32.mrb[0].mxu0
    %v5934 = vadd.f32 0.0, %v5933
    %v5935 = vpop.f32.mrb[0].mxu0
    %v5936 = vpop.f32.mrb[0].mxu0
    %5937 = vdwg.mxu0
    %v5938 = vadd.f32 %v5461, %v5891
    %v5939 = vadd.f32 %v5462, %v5893
    %v5940 = vadd.f32 %v5463, %v5932
    %v5941 = vadd.f32 %v5464, %v5934
    %v5942 = vld [vmem:[%s8] sm:$0xf]
    %v5944 = vlaneseq
    %v5945 = vshrl.u32 %v5944, 7
    %v5946 = vsub.s32 0, %v5945
    %v5947 = vrot.slane %v5942, %v5946
    %v5948 = vlaneseq
    %v5949 = vshrl.u32 %v5948, 7
    %v5950 = vsub.s32 1, %v5949
    %v5951 = vrot.slane %v5942, %v5950
    %v5952 = vlaneseq
    %v5953 = vshrl.u32 %v5952, 7
    %v5954 = vsub.s32 2, %v5953
    %v5955 = vrot.slane %v5942, %v5954
    %v5956 = vlaneseq
    %v5957 = vshrl.u32 %v5956, 7
    %v5958 = vsub.s32 3, %v5957
    %v5959 = vrot.slane %v5942, %v5958
    %v5964 = vadd.f32 %v5938, %v5947
    %v5965 = vadd.f32 %v5939, %v5951
    %v5966 = vadd.f32 %v5940, %v5955
    %v5967 = vadd.f32 %v5941, %v5959
    %v5968 = vmax.f32 %v5964, 0.0
    %v5969 = vmax.f32 %v5965, 0.0
    %v5970 = vmax.f32 %v5966, 0.0
    %v5971 = vmax.f32 %v5967, 0.0
    %v5972 = vpack.c.bf16 %v5968, %v5968
    %v5973 = vpack.c.bf16 %v5969, %v5969
    %v5974 = vpack.c.bf16 %v5970, %v5970
    %v5975 = vpack.c.bf16 %v5971, %v5971
    %v5976 = vld [vmem:[#allocation10] sm:$0xf]
    %v5977 = vld [vmem:[#allocation10 + $0x4] sm:$0xf]
    %v5978 = vld [vmem:[#allocation10 + $0x8] sm:$0xf]
    %v5979 = vld [vmem:[#allocation10 + $0xc] sm:$0xf]
    %v5980 = vld [vmem:[#allocation10 + $0x10] sm:$0xf]
    %v5981 = vld [vmem:[#allocation10 + $0x14] sm:$0xf]
    %v5982 = vld [vmem:[#allocation10 + $0x18] sm:$0xf]
    %v5983 = vld [vmem:[#allocation10 + $0x1c] sm:$0xf]
    %v5984 = vld [vmem:[#allocation10 + $0x20] sm:$0xf]
    %v5985 = vld [vmem:[#allocation10 + $0x24] sm:$0xf]
    %v5986 = vld [vmem:[#allocation10 + $0x28] sm:$0xf]
    %v5987 = vld [vmem:[#allocation10 + $0x2c] sm:$0xf]
    %v5988 = vld [vmem:[#allocation10 + $0x30] sm:$0xf]
    %v5989 = vld [vmem:[#allocation10 + $0x34] sm:$0xf]
    %v5990 = vld [vmem:[#allocation10 + $0x38] sm:$0xf]
    %v5991 = vld [vmem:[#allocation10 + $0x3c] sm:$0xf]
    %v5992 = vld [vmem:[#allocation10 + $0x40] sm:$0xf]
    %v5993 = vld [vmem:[#allocation10 + $0x44] sm:$0xf]
    %v5994 = vld [vmem:[#allocation10 + $0x48] sm:$0xf]
    %v5995 = vld [vmem:[#allocation10 + $0x4c] sm:$0xf]
    %v5996 = vld [vmem:[#allocation10 + $0x50] sm:$0xf]
    %v5997 = vld [vmem:[#allocation10 + $0x54] sm:$0xf]
    %v5998 = vld [vmem:[#allocation10 + $0x58] sm:$0xf]
    %v5999 = vld [vmem:[#allocation10 + $0x5c] sm:$0xf]
    %v6000 = vld [vmem:[#allocation10 + $0x60] sm:$0xf]
    %v6001 = vld [vmem:[#allocation10 + $0x64] sm:$0xf]
    %v6002 = vld [vmem:[#allocation10 + $0x68] sm:$0xf]
    %v6003 = vld [vmem:[#allocation10 + $0x6c] sm:$0xf]
    %v6004 = vld [vmem:[#allocation10 + $0x70] sm:$0xf]
    %v6005 = vld [vmem:[#allocation10 + $0x74] sm:$0xf]
    %v6006 = vld [vmem:[#allocation10 + $0x78] sm:$0xf]
    %v6007 = vld [vmem:[#allocation10 + $0x7c] sm:$0xf]
    %v6008 = vld [vmem:[#allocation10 + $0x80] sm:$0xf]
    %v6009 = vld [vmem:[#allocation10 + $0x84] sm:$0xf]
    %v6010 = vld [vmem:[#allocation10 + $0x88] sm:$0xf]
    %v6011 = vld [vmem:[#allocation10 + $0x8c] sm:$0xf]
    %v6012 = vld [vmem:[#allocation10 + $0x90] sm:$0xf]
    %v6013 = vld [vmem:[#allocation10 + $0x94] sm:$0xf]
    %v6014 = vld [vmem:[#allocation10 + $0x98] sm:$0xf]
    %v6015 = vld [vmem:[#allocation10 + $0x9c] sm:$0xf]
    %v6016 = vld [vmem:[#allocation10 + $0xa0] sm:$0xf]
    %v6017 = vld [vmem:[#allocation10 + $0xa4] sm:$0xf]
    %v6018 = vld [vmem:[#allocation10 + $0xa8] sm:$0xf]
    %v6019 = vld [vmem:[#allocation10 + $0xac] sm:$0xf]
    %v6020 = vld [vmem:[#allocation10 + $0xb0] sm:$0xf]
    %v6021 = vld [vmem:[#allocation10 + $0xb4] sm:$0xf]
    %v6022 = vld [vmem:[#allocation10 + $0xb8] sm:$0xf]
    %v6023 = vld [vmem:[#allocation10 + $0xbc] sm:$0xf]
    %v6024 = vld [vmem:[#allocation10 + $0xc0] sm:$0xf]
    %v6025 = vld [vmem:[#allocation10 + $0xc4] sm:$0xf]
    %v6026 = vld [vmem:[#allocation10 + $0xc8] sm:$0xf]
    %v6027 = vld [vmem:[#allocation10 + $0xcc] sm:$0xf]
    %v6028 = vld [vmem:[#allocation10 + $0xd0] sm:$0xf]
    %v6029 = vld [vmem:[#allocation10 + $0xd4] sm:$0xf]
    %v6030 = vld [vmem:[#allocation10 + $0xd8] sm:$0xf]
    %v6031 = vld [vmem:[#allocation10 + $0xdc] sm:$0xf]
    %v6032 = vld [vmem:[#allocation10 + $0xe0] sm:$0xf]
    %v6033 = vld [vmem:[#allocation10 + $0xe4] sm:$0xf]
    %v6034 = vld [vmem:[#allocation10 + $0xe8] sm:$0xf]
    %v6035 = vld [vmem:[#allocation10 + $0xec] sm:$0xf]
    %v6036 = vld [vmem:[#allocation10 + $0xf0] sm:$0xf]
    %v6037 = vld [vmem:[#allocation10 + $0xf4] sm:$0xf]
    %v6038 = vld [vmem:[#allocation10 + $0xf8] sm:$0xf]
    %v6039 = vld [vmem:[#allocation10 + $0xfc] sm:$0xf]
    %v6040 = vld [vmem:[%s10] sm:$0x1]
    %v6042 = vlaneseq
    %v6043 = vshrl.u32 %v6042, 7
    %v6044 = vsub.s32 0, %v6043
    %v6045 = vrot.slane %v6040, %v6044
    %v6111 = vunpack.c.l.b16 %v5976
    %v6112 = vunpack.c.l.b16 %v5977
    %v6113 = vunpack.c.l.b16 %v5978
    %v6114 = vunpack.c.l.b16 %v5979
    %v6115 = vunpack.c.l.b16 %v5980
    %v6116 = vunpack.c.l.b16 %v5981
    %v6117 = vunpack.c.l.b16 %v5982
    %v6118 = vunpack.c.l.b16 %v5983
    %v6119 = vunpack.c.l.b16 %v5984
    %v6120 = vunpack.c.l.b16 %v5985
    %v6121 = vunpack.c.l.b16 %v5986
    %v6122 = vunpack.c.l.b16 %v5987
    %v6123 = vunpack.c.l.b16 %v5988
    %v6124 = vunpack.c.l.b16 %v5989
    %v6125 = vunpack.c.l.b16 %v5990
    %v6126 = vunpack.c.l.b16 %v5991
    %v6127 = vunpack.c.l.b16 %v5992
    %v6128 = vunpack.c.l.b16 %v5993
    %v6129 = vunpack.c.l.b16 %v5994
    %v6130 = vunpack.c.l.b16 %v5995
    %v6131 = vunpack.c.l.b16 %v5996
    %v6132 = vunpack.c.l.b16 %v5997
    %v6133 = vunpack.c.l.b16 %v5998
    %v6134 = vunpack.c.l.b16 %v5999
    %v6135 = vunpack.c.l.b16 %v6000
    %v6136 = vunpack.c.l.b16 %v6001
    %v6137 = vunpack.c.l.b16 %v6002
    %v6138 = vunpack.c.l.b16 %v6003
    %v6139 = vunpack.c.l.b16 %v6004
    %v6140 = vunpack.c.l.b16 %v6005
    %v6141 = vunpack.c.l.b16 %v6006
    %v6142 = vunpack.c.l.b16 %v6007
    %v6143 = vunpack.c.l.b16 %v6008
    %v6144 = vunpack.c.l.b16 %v6009
    %v6145 = vunpack.c.l.b16 %v6010
    %v6146 = vunpack.c.l.b16 %v6011
    %v6147 = vunpack.c.l.b16 %v6012
    %v6148 = vunpack.c.l.b16 %v6013
    %v6149 = vunpack.c.l.b16 %v6014
    %v6150 = vunpack.c.l.b16 %v6015
    %v6151 = vunpack.c.l.b16 %v6016
    %v6152 = vunpack.c.l.b16 %v6017
    %v6153 = vunpack.c.l.b16 %v6018
    %v6154 = vunpack.c.l.b16 %v6019
    %v6155 = vunpack.c.l.b16 %v6020
    %v6156 = vunpack.c.l.b16 %v6021
    %v6157 = vunpack.c.l.b16 %v6022
    %v6158 = vunpack.c.l.b16 %v6023
    %v6159 = vunpack.c.l.b16 %v6024
    %v6160 = vunpack.c.l.b16 %v6025
    %v6161 = vunpack.c.l.b16 %v6026
    %v6162 = vunpack.c.l.b16 %v6027
    %v6163 = vunpack.c.l.b16 %v6028
    %v6164 = vunpack.c.l.b16 %v6029
    %v6165 = vunpack.c.l.b16 %v6030
    %v6166 = vunpack.c.l.b16 %v6031
    %v6167 = vunpack.c.l.b16 %v6032
    %v6168 = vunpack.c.l.b16 %v6033
    %v6169 = vunpack.c.l.b16 %v6034
    %v6170 = vunpack.c.l.b16 %v6035
    %v6171 = vunpack.c.l.b16 %v6036
    %v6172 = vunpack.c.l.b16 %v6037
    %v6173 = vunpack.c.l.b16 %v6038
    %v6174 = vunpack.c.l.b16 %v6039
    %v6175 = vpack.c.b16 %v6112, %v6111
    %v6176 = vpack.c.b16 %v6114, %v6113
    %v6177 = vpack.c.b16 %v6116, %v6115
    %v6178 = vpack.c.b16 %v6118, %v6117
    %v6179 = vpack.c.b16 %v6120, %v6119
    %v6180 = vpack.c.b16 %v6122, %v6121
    %v6181 = vpack.c.b16 %v6124, %v6123
    %v6182 = vpack.c.b16 %v6126, %v6125
    %v6183 = vpack.c.b16 %v6128, %v6127
    %v6184 = vpack.c.b16 %v6130, %v6129
    %v6185 = vpack.c.b16 %v6132, %v6131
    %v6186 = vpack.c.b16 %v6134, %v6133
    %v6187 = vpack.c.b16 %v6136, %v6135
    %v6188 = vpack.c.b16 %v6138, %v6137
    %v6189 = vpack.c.b16 %v6140, %v6139
    %v6190 = vpack.c.b16 %v6142, %v6141
    %v6191 = vpack.c.b16 %v6144, %v6143
    %v6192 = vpack.c.b16 %v6146, %v6145
    %v6193 = vpack.c.b16 %v6148, %v6147
    %v6194 = vpack.c.b16 %v6150, %v6149
    %v6195 = vpack.c.b16 %v6152, %v6151
    %v6196 = vpack.c.b16 %v6154, %v6153
    %v6197 = vpack.c.b16 %v6156, %v6155
    %v6198 = vpack.c.b16 %v6158, %v6157
    %v6199 = vpack.c.b16 %v6160, %v6159
    %v6200 = vpack.c.b16 %v6162, %v6161
    %v6201 = vpack.c.b16 %v6164, %v6163
    %v6202 = vpack.c.b16 %v6166, %v6165
    %v6203 = vpack.c.b16 %v6168, %v6167
    %v6204 = vpack.c.b16 %v6170, %v6169
    %v6205 = vpack.c.b16 %v6172, %v6171
    %v6206 = vpack.c.b16 %v6174, %v6173
    %6239 = vmatprep.subr.bf16.mxu0 0
    %6240 = vmatpush1.bf16.msra.mxu0 %v6175
    %6241 = vmatprep.subr.bf16.mxu0 0
    %6242 = vmatpush1.bf16.msra.mxu0 %v6176
    %6243 = vmatprep.subr.bf16.mxu0 0
    %6244 = vmatpush1.bf16.msra.mxu0 %v6177
    %6245 = vmatprep.subr.bf16.mxu0 0
    %6246 = vmatpush1.bf16.msra.mxu0 %v6178
    %6247 = vmatprep.subr.bf16.mxu0 0
    %6248 = vmatpush1.bf16.msra.mxu0 %v6179
    %6249 = vmatprep.subr.bf16.mxu0 0
    %6250 = vmatpush1.bf16.msra.mxu0 %v6180
    %6251 = vmatprep.subr.bf16.mxu0 0
    %6252 = vmatpush1.bf16.msra.mxu0 %v6181
    %6253 = vmatprep.subr.bf16.mxu0 0
    %6254 = vmatpush1.bf16.msra.mxu0 %v6182
    %6255 = vmatprep.subr.bf16.mxu0 0
    %6256 = vmatpush1.bf16.msra.mxu0 %v6183
    %6257 = vmatprep.subr.bf16.mxu0 0
    %6258 = vmatpush1.bf16.msra.mxu0 %v6184
    %6259 = vmatprep.subr.bf16.mxu0 0
    %6260 = vmatpush1.bf16.msra.mxu0 %v6185
    %6261 = vmatprep.subr.bf16.mxu0 0
    %6262 = vmatpush1.bf16.msra.mxu0 %v6186
    %6263 = vmatprep.subr.bf16.mxu0 0
    %6264 = vmatpush1.bf16.msra.mxu0 %v6187
    %6265 = vmatprep.subr.bf16.mxu0 0
    %6266 = vmatpush1.bf16.msra.mxu0 %v6188
    %6267 = vmatprep.subr.bf16.mxu0 0
    %6268 = vmatpush1.bf16.msra.mxu0 %v6189
    %6269 = vmatprep.subr.bf16.mxu0 0
    %6270 = vmatpush1.bf16.msra.mxu0 %v6190
    %6271 = vmatprep.mubr.bf16.mxu0 %v5973
    %6272 = vmatmul.mubr.bf16.gmra.mrb[0].mxu0 %v5972
    %v6273 = vpop.f32.mrb[0].mxu0
    %v6274 = vadd.f32 %v6045, %v6273
    %v6275 = vpop.f32.mrb[0].mxu0
    %v6276 = vpop.f32.mrb[0].mxu0
    %v6277 = vpop.f32.mrb[0].mxu0
    %6278 = vdwg.mxu0
    %6279 = vmatprep.subr.bf16.mxu0 0
    %6280 = vmatpush1.bf16.msra.mxu0 %v6191
    %6281 = vmatprep.subr.bf16.mxu0 0
    %6282 = vmatpush1.bf16.msra.mxu0 %v6192
    %6283 = vmatprep.subr.bf16.mxu0 0
    %6284 = vmatpush1.bf16.msra.mxu0 %v6193
    %6285 = vmatprep.subr.bf16.mxu0 0
    %6286 = vmatpush1.bf16.msra.mxu0 %v6194
    %6287 = vmatprep.subr.bf16.mxu0 0
    %6288 = vmatpush1.bf16.msra.mxu0 %v6195
    %6289 = vmatprep.subr.bf16.mxu0 0
    %6290 = vmatpush1.bf16.msra.mxu0 %v6196
    %6291 = vmatprep.subr.bf16.mxu0 0
    %6292 = vmatpush1.bf16.msra.mxu0 %v6197
    %6293 = vmatprep.subr.bf16.mxu0 0
    %6294 = vmatpush1.bf16.msra.mxu0 %v6198
    %6295 = vmatprep.subr.bf16.mxu0 0
    %6296 = vmatpush1.bf16.msra.mxu0 %v6199
    %6297 = vmatprep.subr.bf16.mxu0 0
    %6298 = vmatpush1.bf16.msra.mxu0 %v6200
    %6299 = vmatprep.subr.bf16.mxu0 0
    %6300 = vmatpush1.bf16.msra.mxu0 %v6201
    %6301 = vmatprep.subr.bf16.mxu0 0
    %6302 = vmatpush1.bf16.msra.mxu0 %v6202
    %6303 = vmatprep.subr.bf16.mxu0 0
    %6304 = vmatpush1.bf16.msra.mxu0 %v6203
    %6305 = vmatprep.subr.bf16.mxu0 0
    %6306 = vmatpush1.bf16.msra.mxu0 %v6204
    %6307 = vmatprep.subr.bf16.mxu0 0
    %6308 = vmatpush1.bf16.msra.mxu0 %v6205
    %6309 = vmatprep.subr.bf16.mxu0 0
    %6310 = vmatpush1.bf16.msra.mxu0 %v6206
    %6311 = vmatprep.mubr.bf16.mxu0 %v5975
    %6312 = vmatmul.mubr.bf16.gmra.mrb[0].mxu0 %v5974
    %v6313 = vpop.f32.mrb[0].mxu0
    %v6314 = vadd.f32 %v6274, %v6313
    %v6315 = vpop.f32.mrb[0].mxu0
    %v6316 = vpop.f32.mrb[0].mxu0
    %v6317 = vpop.f32.mrb[0].mxu0
    %6318 = vdwg.mxu0
    %6319 = vst [vmem:[#allocation11] sm:$0xff] %v6314
    // Predicated region
    $region66: #{tpu_custom_call.1} parent=1 // pred_check
      _
    $region67: #{tpu_custom_call.1} parent=1 // pred_check_branch
      %6321 = sbr.rel (0) target = $region69
    $region68: #{tpu_custom_call.1} parent=1 // pred_region
      %s6323 = ssub.s32 128, 128
      %6324 = vsyncadd [#allocation4], %s6323
      %s6326 = sshll.u32 [#allocation11], 4
      %s6327 = int_to_ptr.vmem [resolvable:$true] %s6326
      %6329 = dma.vmem_to_hbm [thread:$0]  %s6327, 128, %s11, [#allocation4]
    $region69: #{tpu_custom_call.1} parent=1 // pred_fallthru
      _
    // Predicated region
    $region70: #{tpu_custom_call.1} parent=1 // pred_check
      _
    $region71: #{tpu_custom_call.1} parent=1 // pred_check_branch
      %6331 = sbr.rel (0) target = $region73
    $region72: #{tpu_custom_call.1} parent=1 // pred_region
      %6332 = dma.done [#allocation4], 128
    $region73: #{tpu_custom_call.1} parent=1 // pred_fallthru
      _
    %6333 = vsyncpa [#allocation3], 1
    %6334 = vsyncpa [#allocation6], 1
    %6335 = vsyncpa [#allocation9], 1
    %6336 = vsyncpa [#allocation4], 1

</llo_original>
